<compile_context>
chip_gen: v6e
topology: v6e:2x2x1
jax: 0.10.0
libtpu: 0.0.40
codegen_flags: <defaults>
</compile_context>

<pallas_src>
import functools

import jax
import jax.numpy as jnp
from jax.experimental import pallas as pl
from jax.experimental.pallas import tpu as pltpu


def _front_pad(W):
    """Zero-band width (in flat lanes) placed before/after the image: a multiple of W, >= W+1,
    and >= 128 so the main interior store stays lane-aligned for typical widths."""
    return W * max(2, -(-128 // W))


def _cnn_fused_kernel(*refs, dims, H, pf):
    """Fused 3-block CNN for one batch element.

    refs = [x_ref,  (w_ref, scale_ref, shift_ref) * n_layers,  pool_ref,  o_ref,  xf_ref]
      x_ref:     (1, Cin0, H*W0)      input, channels on sublanes, flat (h, w) on lanes
      w_ref:     (3, 3, Cout, Cin)    conv weights, tap-major
      scale_ref: (Cout, 1)            folded (conv-bias + BN eval) scale
      shift_ref: (Cout, 1)            folded (conv-bias + BN eval) shift
      pool_ref:  (H*W0, H*W0 // pf)   avg-pool matrix; layer l uses the leading (H*Wl, H*Wl//pf) block
      o_ref:     (1, CoutL, H*WL)     final activation
      xf_ref:    VMEM scratch holding the zero-padded flat input of the current layer
    """
    n_layers = len(dims)
    x_ref = refs[0]
    layer_refs = refs[1:1 + 3 * n_layers]
    p_ref = refs[1 + 3 * n_layers]
    o_ref = refs[2 + 3 * n_layers]
    xf_ref = refs[3 + 3 * n_layers]

    y = x_ref[0].astype(jnp.float32)                     # (Cin0, H*W0)
    for li, (cin, cout, W) in enumerate(dims):
        w_ref, sc_ref, sh_ref = layer_refs[3 * li:3 * li + 3]
        HW = H * W
        F = _front_pad(W)                                # F % W == 0 and F >= W + 1
        NF = HW + 2 * F

        # ---- in-kernel zero padding: image lives at lanes [F, F+HW) of the flat scratch ----
        xf_ref[0:cin, 0:F] = jnp.zeros((cin, F), jnp.float32)
        xf_ref[0:cin, F + HW:NF] = jnp.zeros((cin, F), jnp.float32)
        xf_ref[0:cin, F:F + HW] = y
        xf = xf_ref[0:cin, 0:NF]                         # (cin, NF)

        # frequency column of every flat lane (F % W == 0 so col == lane % W)
        j_idx = jax.lax.broadcasted_iota(jnp.int32, (1, NF), 1)
        col = (j_idx & (W - 1)) if (W & (W - 1)) == 0 else (j_idx % W)
        xf_l = jnp.where(col == W - 1, 0.0, xf)          # source used by dx == 0 taps
        xf_r = jnp.where(col == 0, 0.0, xf)              # source used by dx == 2 taps

        # ---- 3x3 conv: 9 shifted (Cout,Cin) x (Cin,H*W) MXU matmuls, f32 accumulation ----
        acc = jnp.zeros((cout, HW), jnp.float32)
        for dy in range(3):
            for dx in range(3):
                src = (xf_l, xf, xf_r)[dx]
                start = F + (dy - 1) * W + (dx - 1)      # static lane offset
                win = src[:, start:start + HW]           # (cin, HW)
                acc = acc + jnp.dot(w_ref[dy, dx], win,
                                    preferred_element_type=jnp.float32)

        # ---- conv bias + BatchNorm2d(eval) folded affine, then ReLU (all f32, VPU) ----
        z = jnp.maximum(acc * sc_ref[...] + sh_ref[...], 0.0)   # (cout, HW)

        # ---- AvgPool2d((1, pf)) along frequency as one matmul with the pooling matrix ----
        y = jnp.dot(z, p_ref[0:HW, 0:HW // pf],
                    preferred_element_type=jnp.float32)         # (cout, HW // pf)

    o_ref[0] = y.astype(o_ref.dtype)


def cnn_forward(x_nchw, params, pooling):
    """Forward pass matching CNN.forward (inference mode: BatchNorm uses running stats,
    dropout p=0 is the identity). Input/output are NCHW like the PyTorch module."""
    eps = 1e-3                                           # BatchNorm2d(eps=0.001)
    B, C0, H, W0 = x_nchw.shape
    pf = pooling[0][1]
    for pt, pfi in pooling:
        # TODO(synk): time pooling > 1 / mixed pooling factors not needed for default (1, 4)
        assert pt == 1 and pfi == pf

    layer_args = []
    dims = []
    cin, W = C0, W0
    for p in params:
        cout = p["w"].shape[0]
        assert p["w"].shape[2:] == (3, 3) and W % pf == 0
        w_t = jnp.transpose(p["w"], (2, 3, 0, 1)).astype(jnp.float32)   # OIHW -> (ky, kx, O, I)
        s = p["gamma"] / jnp.sqrt(p["rvar"] + eps)
        t = (p["b"] - p["rmean"]) * s + p["beta"]                       # fold conv bias into BN
        layer_args += [w_t,
                       s.reshape(cout, 1).astype(jnp.float32),
                       t.reshape(cout, 1).astype(jnp.float32)]
        dims.append((cin, cout, W))
        cin, W = cout, W // pf
    cout_last, W_last = cin, W

    # Shared average-pool matrix: P[j, m] = 1/pf if j // pf == m.  Layer l uses P[:H*Wl, :H*Wl//pf].
    HW0 = H * W0
    jj = jnp.arange(HW0, dtype=jnp.int32)[:, None]
    mm = jnp.arange(HW0 // pf, dtype=jnp.int32)[None, :]
    P = jnp.where(jj // pf == mm, 1.0 / pf, 0.0).astype(jnp.float32)

    x_flat = x_nchw.reshape(B, C0, HW0).astype(jnp.float32)    # free reshape: NCHW is already (C, h*w)

    scratch_rows = max(ci for (ci, _, _) in dims)
    scratch_lanes = max(H * w + 2 * _front_pad(w) for (_, _, w) in dims)

    in_specs = [pl.BlockSpec((1, C0, HW0), lambda b: (b, 0, 0))]
    for (ci, co, _) in dims:
        in_specs += [
            pl.BlockSpec((3, 3, co, ci), lambda b: (0, 0, 0, 0)),
            pl.BlockSpec((co, 1), lambda b: (0, 0)),
            pl.BlockSpec((co, 1), lambda b: (0, 0)),
        ]
    in_specs.append(pl.BlockSpec((HW0, HW0 // pf), lambda b: (0, 0)))

    kernel = functools.partial(_cnn_fused_kernel, dims=tuple(dims), H=H, pf=pf)
    out = pl.pallas_call(
        kernel,
        out_shape=jax.ShapeDtypeStruct((B, cout_last, H * W_last), jnp.float32),
        grid=(B,),
        in_specs=in_specs,
        out_specs=pl.BlockSpec((1, cout_last, H * W_last), lambda b: (b, 0, 0)),
        scratch_shapes=[pltpu.VMEM((scratch_rows, scratch_lanes), jnp.float32)],
        compiler_params=pltpu.CompilerParams(dimension_semantics=("parallel",)),
    )(x_flat, *layer_args, P)
    return out.reshape(B, cout_last, H, W_last)


def init_cnn_params(key, n_in_channel, nb_filters):
    """Deterministic synthetic parameters (PyTorch layout for conv weights: OIHW)."""
    params = []
    cin = n_in_channel
    for cout in nb_filters:
        key, kw, kb, kg, kbe, krm, krv = jax.random.split(key, 7)
        params.append(dict(
            w=0.1 * jax.random.normal(kw, (cout, cin, 3, 3), jnp.float32),   # OIHW
            b=0.1 * jax.random.normal(kb, (cout,), jnp.float32),
            gamma=1.0 + 0.1 * jax.random.normal(kg, (cout,), jnp.float32),
            beta=0.1 * jax.random.normal(kbe, (cout,), jnp.float32),
            rmean=0.1 * jax.random.normal(krm, (cout,), jnp.float32),
            rvar=0.5 + jnp.abs(jax.random.normal(krv, (cout,), jnp.float32)),
        ))
        cin = cout
    return params


def reference_forward(x_nchw, params, pooling):
    """Pure-JAX reference (lax conv) for correctness checking."""
    eps = 1e-3
    y = x_nchw
    for p, (pt, pf) in zip(params, pooling):
        y = jax.lax.conv_general_dilated(
            y, p["w"], window_strides=(1, 1), padding=((1, 1), (1, 1)),
            dimension_numbers=("NCHW", "OIHW", "NCHW"))
        y = y + p["b"][None, :, None, None]
        s = (p["gamma"] / jnp.sqrt(p["rvar"] + eps))[None, :, None, None]
        y = (y - p["rmean"][None, :, None, None]) * s + p["beta"][None, :, None, None]
        y = jnp.maximum(y, 0.0)
        B, C, H, W = y.shape
        y = y.reshape(B, C, H // pt, pt, W // pf, pf).mean(axis=(3, 5))
    return y


if __name__ == "__main__":
    key = jax.random.PRNGKey(0)
    k_x, k_p = jax.random.split(key)

    # Small shapes consistent with the module: (batch, n_channels, n_frames, n_freq)
    B, Cin, n_frames, n_freq = 2, 4, 8, 64
    nb_filters = [32, 32, 32]
    pooling = [(1, 4), (1, 4), (1, 4)]

    x = jax.random.normal(k_x, (B, Cin, n_frames, n_freq), jnp.float32)
    params = init_cnn_params(k_p, Cin, nb_filters)

    out = jax.block_until_ready(cnn_forward(x, params, pooling))
    ref = jax.block_until_ready(reference_forward(x, params, pooling))

    assert out.shape == (B, nb_filters[-1], n_frames, 1), out.shape
    assert jnp.allclose(out, ref, atol=1e-3, rtol=1e-3), float(jnp.max(jnp.abs(out - ref)))
    print("KERNEL_OK")
</pallas_src>

<mosaic_0001>
module attributes {stable_mosaic.version = 11 : i64} {
  func.func @_cnn_fused_kernel(%arg0: i32, %arg1: memref<1x4x512xf32, #tpu.memory_space<vmem>>, %arg2: memref<3x3x32x4xf32, #tpu.memory_space<vmem>>, %arg3: memref<32x1xf32, #tpu.memory_space<vmem>>, %arg4: memref<32x1xf32, #tpu.memory_space<vmem>>, %arg5: memref<3x3x32x32xf32, #tpu.memory_space<vmem>>, %arg6: memref<32x1xf32, #tpu.memory_space<vmem>>, %arg7: memref<32x1xf32, #tpu.memory_space<vmem>>, %arg8: memref<3x3x32x32xf32, #tpu.memory_space<vmem>>, %arg9: memref<32x1xf32, #tpu.memory_space<vmem>>, %arg10: memref<32x1xf32, #tpu.memory_space<vmem>>, %arg11: memref<512x128xf32, #tpu.memory_space<vmem>>, %arg12: memref<1x32x8xf32, #tpu.memory_space<vmem>>, %arg13: memref<32x768xf32, #tpu.memory_space<vmem>>) attributes {dimension_semantics = [#tpu.dimension_semantics<parallel>], iteration_bounds = array<i64: 2>, scalar_prefetch = 0 : i64, scratch_operands = 1 : i64, tpu.core_type = #tpu.core_type<tc>, window_params = [{transform_indices = @transform_0, window_bounds = array<i64: 1, 4, 512>}, {pipeline_mode = #tpu.pipeline_mode<synchronous>, transform_indices = @transform_1, window_bounds = array<i64: 3, 3, 32, 4>}, {pipeline_mode = #tpu.pipeline_mode<synchronous>, transform_indices = @transform_2, window_bounds = array<i64: 32, 1>}, {pipeline_mode = #tpu.pipeline_mode<synchronous>, transform_indices = @transform_3, window_bounds = array<i64: 32, 1>}, {pipeline_mode = #tpu.pipeline_mode<synchronous>, transform_indices = @transform_4, window_bounds = array<i64: 3, 3, 32, 32>}, {pipeline_mode = #tpu.pipeline_mode<synchronous>, transform_indices = @transform_5, window_bounds = array<i64: 32, 1>}, {pipeline_mode = #tpu.pipeline_mode<synchronous>, transform_indices = @transform_6, window_bounds = array<i64: 32, 1>}, {pipeline_mode = #tpu.pipeline_mode<synchronous>, transform_indices = @transform_7, window_bounds = array<i64: 3, 3, 32, 32>}, {pipeline_mode = #tpu.pipeline_mode<synchronous>, transform_indices = @transform_8, window_bounds = array<i64: 32, 1>}, {pipeline_mode = #tpu.pipeline_mode<synchronous>, transform_indices = @transform_9, window_bounds = array<i64: 32, 1>}, {pipeline_mode = #tpu.pipeline_mode<synchronous>, transform_indices = @transform_10, window_bounds = array<i64: 512, 128>}, {transform_indices = @transform_11, window_bounds = array<i64: 1, 32, 8>}]} {
    %c0 = arith.constant 0 : index
    %c0_0 = arith.constant 0 : index
    %c0_1 = arith.constant 0 : index
    %0 = vector.load %arg1[%c0, %c0_0, %c0_1] : memref<1x4x512xf32, #tpu.memory_space<vmem>>, vector<1x4x512xf32>
    %1 = vector.shape_cast %0 : vector<1x4x512xf32> to vector<4x512xf32>
    %cst = arith.constant 0.000000e+00 : f32
    %2 = vector.broadcast %cst : f32 to vector<4x128xf32>
    %c0_2 = arith.constant 0 : index
    %c0_3 = arith.constant 0 : index
    %3 = vector.load %arg13[%c0_2, %c0_3] : memref<32x768xf32, #tpu.memory_space<vmem>>, vector<4x128xf32>
    tpu.vector_store %arg13[%c0_2, %c0_3], %2 {strides = array<i32>} : memref<32x768xf32, #tpu.memory_space<vmem>>, vector<4x128xf32>,
    %cst_4 = arith.constant 0.000000e+00 : f32
    %4 = vector.broadcast %cst_4 : f32 to vector<4x128xf32>
    %c0_5 = arith.constant 0 : index
    %c640 = arith.constant 640 : index
    %5 = vector.load %arg13[%c0_5, %c640] : memref<32x768xf32, #tpu.memory_space<vmem>>, vector<4x128xf32>
    tpu.vector_store %arg13[%c0_5, %c640], %4 {strides = array<i32>} : memref<32x768xf32, #tpu.memory_space<vmem>>, vector<4x128xf32>,
    %c0_6 = arith.constant 0 : index
    %c128 = arith.constant 128 : index
    %6 = vector.load %arg13[%c0_6, %c128] : memref<32x768xf32, #tpu.memory_space<vmem>>, vector<4x512xf32>
    tpu.vector_store %arg13[%c0_6, %c128], %1 {strides = array<i32>} : memref<32x768xf32, #tpu.memory_space<vmem>>, vector<4x512xf32>,
    %c0_7 = arith.constant 0 : index
    %c0_8 = arith.constant 0 : index
    %7 = vector.load %arg13[%c0_7, %c0_8] : memref<32x768xf32, #tpu.memory_space<vmem>>, vector<4x768xf32>
    %8 = tpu.iota {dimensions = array<i32: 1>} : vector<1x768xi32>
    %c63_i32 = arith.constant 63 : i32
    %9 = vector.broadcast %c63_i32 : i32 to vector<1x768xi32>
    %10 = arith.andi %8, %9 : vector<1x768xi32>
    %c63_i32_9 = arith.constant 63 : i32
    %11 = vector.broadcast %c63_i32_9 : i32 to vector<1x768xi32>
    %12 = arith.cmpi eq, %10, %11 : vector<1x768xi32>
    %cst_10 = arith.constant 0.000000e+00 : f32
    %13 = vector.shape_cast %12 : vector<1x768xi1> to vector<1x768xi1>
    %14 = vector.broadcast %13 : vector<1x768xi1> to vector<4x768xi1>
    %15 = vector.broadcast %cst_10 : f32 to vector<4x768xf32>
    %16 = arith.select %14, %15, %7 : vector<4x768xi1>, vector<4x768xf32>
    %c0_i32 = arith.constant 0 : i32
    %17 = vector.broadcast %c0_i32 : i32 to vector<1x768xi32>
    %18 = arith.cmpi eq, %10, %17 : vector<1x768xi32>
    %cst_11 = arith.constant 0.000000e+00 : f32
    %19 = vector.shape_cast %18 : vector<1x768xi1> to vector<1x768xi1>
    %20 = vector.broadcast %19 : vector<1x768xi1> to vector<4x768xi1>
    %21 = vector.broadcast %cst_11 : f32 to vector<4x768xf32>
    %22 = arith.select %20, %21, %7 : vector<4x768xi1>, vector<4x768xf32>
    %cst_12 = arith.constant 0.000000e+00 : f32
    %23 = vector.broadcast %cst_12 : f32 to vector<32x512xf32>
    %24 = vector.extract_strided_slice %16 {offsets = [0, 63], sizes = [4, 512], strides = [1, 1]} : vector<4x768xf32> to vector<4x512xf32>
    %c0_13 = arith.constant 0 : index
    %c0_14 = arith.constant 0 : index
    %c0_15 = arith.constant 0 : index
    %c0_16 = arith.constant 0 : index
    %25 = vector.load %arg2[%c0_13, %c0_14, %c0_15, %c0_16] : memref<3x3x32x4xf32, #tpu.memory_space<vmem>>, vector<1x1x32x4xf32>
    %26 = vector.shape_cast %25 : vector<1x1x32x4xf32> to vector<32x4xf32>
    %cst_17 = arith.constant dense<0.000000e+00> : vector<32x512xf32>
    %27 = tpu.matmul %26, %24, %cst_17 {dimension_numbers = #tpu.dot_dimension_numbers<[1], [0], [0], [1], [0, 0, 1, 1], [], []>} : vector<32x4xf32>, vector<4x512xf32>, vector<32x512xf32> -> vector<32x512xf32>
    %28 = arith.addf %23, %27 : vector<32x512xf32>
    %29 = vector.extract_strided_slice %7 {offsets = [0, 64], sizes = [4, 512], strides = [1, 1]} : vector<4x768xf32> to vector<4x512xf32>
    %c0_18 = arith.constant 0 : index
    %c1 = arith.constant 1 : index
    %c0_19 = arith.constant 0 : index
    %c0_20 = arith.constant 0 : index
    %30 = vector.load %arg2[%c0_18, %c1, %c0_19, %c0_20] : memref<3x3x32x4xf32, #tpu.memory_space<vmem>>, vector<1x1x32x4xf32>
    %31 = vector.shape_cast %30 : vector<1x1x32x4xf32> to vector<32x4xf32>
    %cst_21 = arith.constant dense<0.000000e+00> : vector<32x512xf32>
    %32 = tpu.matmul %31, %29, %cst_21 {dimension_numbers = #tpu.dot_dimension_numbers<[1], [0], [0], [1], [0, 0, 1, 1], [], []>} : vector<32x4xf32>, vector<4x512xf32>, vector<32x512xf32> -> vector<32x512xf32>
    %33 = arith.addf %28, %32 : vector<32x512xf32>
    %34 = vector.extract_strided_slice %22 {offsets = [0, 65], sizes = [4, 512], strides = [1, 1]} : vector<4x768xf32> to vector<4x512xf32>
    %c0_22 = arith.constant 0 : index
    %c2 = arith.constant 2 : index
    %c0_23 = arith.constant 0 : index
    %c0_24 = arith.constant 0 : index
    %35 = vector.load %arg2[%c0_22, %c2, %c0_23, %c0_24] : memref<3x3x32x4xf32, #tpu.memory_space<vmem>>, vector<1x1x32x4xf32>
    %36 = vector.shape_cast %35 : vector<1x1x32x4xf32> to vector<32x4xf32>
    %cst_25 = arith.constant dense<0.000000e+00> : vector<32x512xf32>
    %37 = tpu.matmul %36, %34, %cst_25 {dimension_numbers = #tpu.dot_dimension_numbers<[1], [0], [0], [1], [0, 0, 1, 1], [], []>} : vector<32x4xf32>, vector<4x512xf32>, vector<32x512xf32> -> vector<32x512xf32>
    %38 = arith.addf %33, %37 : vector<32x512xf32>
    %39 = vector.extract_strided_slice %16 {offsets = [0, 127], sizes = [4, 512], strides = [1, 1]} : vector<4x768xf32> to vector<4x512xf32>
    %c1_26 = arith.constant 1 : index
    %c0_27 = arith.constant 0 : index
    %c0_28 = arith.constant 0 : index
    %c0_29 = arith.constant 0 : index
    %40 = vector.load %arg2[%c1_26, %c0_27, %c0_28, %c0_29] : memref<3x3x32x4xf32, #tpu.memory_space<vmem>>, vector<1x1x32x4xf32>
    %41 = vector.shape_cast %40 : vector<1x1x32x4xf32> to vector<32x4xf32>
    %cst_30 = arith.constant dense<0.000000e+00> : vector<32x512xf32>
    %42 = tpu.matmul %41, %39, %cst_30 {dimension_numbers = #tpu.dot_dimension_numbers<[1], [0], [0], [1], [0, 0, 1, 1], [], []>} : vector<32x4xf32>, vector<4x512xf32>, vector<32x512xf32> -> vector<32x512xf32>
    %43 = arith.addf %38, %42 : vector<32x512xf32>
    %44 = vector.extract_strided_slice %7 {offsets = [0, 128], sizes = [4, 512], strides = [1, 1]} : vector<4x768xf32> to vector<4x512xf32>
    %c1_31 = arith.constant 1 : index
    %c1_32 = arith.constant 1 : index
    %c0_33 = arith.constant 0 : index
    %c0_34 = arith.constant 0 : index
    %45 = vector.load %arg2[%c1_31, %c1_32, %c0_33, %c0_34] : memref<3x3x32x4xf32, #tpu.memory_space<vmem>>, vector<1x1x32x4xf32>
    %46 = vector.shape_cast %45 : vector<1x1x32x4xf32> to vector<32x4xf32>
    %cst_35 = arith.constant dense<0.000000e+00> : vector<32x512xf32>
    %47 = tpu.matmul %46, %44, %cst_35 {dimension_numbers = #tpu.dot_dimension_numbers<[1], [0], [0], [1], [0, 0, 1, 1], [], []>} : vector<32x4xf32>, vector<4x512xf32>, vector<32x512xf32> -> vector<32x512xf32>
    %48 = arith.addf %43, %47 : vector<32x512xf32>
    %49 = vector.extract_strided_slice %22 {offsets = [0, 129], sizes = [4, 512], strides = [1, 1]} : vector<4x768xf32> to vector<4x512xf32>
    %c1_36 = arith.constant 1 : index
    %c2_37 = arith.constant 2 : index
    %c0_38 = arith.constant 0 : index
    %c0_39 = arith.constant 0 : index
    %50 = vector.load %arg2[%c1_36, %c2_37, %c0_38, %c0_39] : memref<3x3x32x4xf32, #tpu.memory_space<vmem>>, vector<1x1x32x4xf32>
    %51 = vector.shape_cast %50 : vector<1x1x32x4xf32> to vector<32x4xf32>
    %cst_40 = arith.constant dense<0.000000e+00> : vector<32x512xf32>
    %52 = tpu.matmul %51, %49, %cst_40 {dimension_numbers = #tpu.dot_dimension_numbers<[1], [0], [0], [1], [0, 0, 1, 1], [], []>} : vector<32x4xf32>, vector<4x512xf32>, vector<32x512xf32> -> vector<32x512xf32>
    %53 = arith.addf %48, %52 : vector<32x512xf32>
    %54 = vector.extract_strided_slice %16 {offsets = [0, 191], sizes = [4, 512], strides = [1, 1]} : vector<4x768xf32> to vector<4x512xf32>
    %c2_41 = arith.constant 2 : index
    %c0_42 = arith.constant 0 : index
    %c0_43 = arith.constant 0 : index
    %c0_44 = arith.constant 0 : index
    %55 = vector.load %arg2[%c2_41, %c0_42, %c0_43, %c0_44] : memref<3x3x32x4xf32, #tpu.memory_space<vmem>>, vector<1x1x32x4xf32>
    %56 = vector.shape_cast %55 : vector<1x1x32x4xf32> to vector<32x4xf32>
    %cst_45 = arith.constant dense<0.000000e+00> : vector<32x512xf32>
    %57 = tpu.matmul %56, %54, %cst_45 {dimension_numbers = #tpu.dot_dimension_numbers<[1], [0], [0], [1], [0, 0, 1, 1], [], []>} : vector<32x4xf32>, vector<4x512xf32>, vector<32x512xf32> -> vector<32x512xf32>
    %58 = arith.addf %53, %57 : vector<32x512xf32>
    %59 = vector.extract_strided_slice %7 {offsets = [0, 192], sizes = [4, 512], strides = [1, 1]} : vector<4x768xf32> to vector<4x512xf32>
    %c2_46 = arith.constant 2 : index
    %c1_47 = arith.constant 1 : index
    %c0_48 = arith.constant 0 : index
    %c0_49 = arith.constant 0 : index
    %60 = vector.load %arg2[%c2_46, %c1_47, %c0_48, %c0_49] : memref<3x3x32x4xf32, #tpu.memory_space<vmem>>, vector<1x1x32x4xf32>
    %61 = vector.shape_cast %60 : vector<1x1x32x4xf32> to vector<32x4xf32>
    %cst_50 = arith.constant dense<0.000000e+00> : vector<32x512xf32>
    %62 = tpu.matmul %61, %59, %cst_50 {dimension_numbers = #tpu.dot_dimension_numbers<[1], [0], [0], [1], [0, 0, 1, 1], [], []>} : vector<32x4xf32>, vector<4x512xf32>, vector<32x512xf32> -> vector<32x512xf32>
    %63 = arith.addf %58, %62 : vector<32x512xf32>
    %64 = vector.extract_strided_slice %22 {offsets = [0, 193], sizes = [4, 512], strides = [1, 1]} : vector<4x768xf32> to vector<4x512xf32>
    %c2_51 = arith.constant 2 : index
    %c2_52 = arith.constant 2 : index
    %c0_53 = arith.constant 0 : index
    %c0_54 = arith.constant 0 : index
    %65 = vector.load %arg2[%c2_51, %c2_52, %c0_53, %c0_54] : memref<3x3x32x4xf32, #tpu.memory_space<vmem>>, vector<1x1x32x4xf32>
    %66 = vector.shape_cast %65 : vector<1x1x32x4xf32> to vector<32x4xf32>
    %cst_55 = arith.constant dense<0.000000e+00> : vector<32x512xf32>
    %67 = tpu.matmul %66, %64, %cst_55 {dimension_numbers = #tpu.dot_dimension_numbers<[1], [0], [0], [1], [0, 0, 1, 1], [], []>} : vector<32x4xf32>, vector<4x512xf32>, vector<32x512xf32> -> vector<32x512xf32>
    %68 = arith.addf %63, %67 : vector<32x512xf32>
    %c0_56 = arith.constant 0 : index
    %c0_57 = arith.constant 0 : index
    %69 = vector.load %arg3[%c0_56, %c0_57] : memref<32x1xf32, #tpu.memory_space<vmem>>, vector<32x1xf32>
    %70 = vector.broadcast %69 : vector<32x1xf32> to vector<32x512xf32>
    %71 = arith.mulf %68, %70 : vector<32x512xf32>
    %c0_58 = arith.constant 0 : index
    %c0_59 = arith.constant 0 : index
    %72 = vector.load %arg4[%c0_58, %c0_59] : memref<32x1xf32, #tpu.memory_space<vmem>>, vector<32x1xf32>
    %73 = vector.broadcast %72 : vector<32x1xf32> to vector<32x512xf32>
    %74 = arith.addf %71, %73 : vector<32x512xf32>
    %cst_60 = arith.constant 0.000000e+00 : f32
    %75 = vector.broadcast %cst_60 : f32 to vector<32x512xf32>
    %76 = arith.maximumf %74, %75 : vector<32x512xf32>
    %c0_61 = arith.constant 0 : index
    %c0_62 = arith.constant 0 : index
    %77 = vector.load %arg11[%c0_61, %c0_62] : memref<512x128xf32, #tpu.memory_space<vmem>>, vector<512x128xf32>
    %cst_63 = arith.constant dense<0.000000e+00> : vector<32x128xf32>
    %78 = tpu.matmul %76, %77, %cst_63 {dimension_numbers = #tpu.dot_dimension_numbers<[1], [0], [0], [1], [0, 0, 1, 1], [], []>} : vector<32x512xf32>, vector<512x128xf32>, vector<32x128xf32> -> vector<32x128xf32>
    %cst_64 = arith.constant 0.000000e+00 : f32
    %79 = vector.broadcast %cst_64 : f32 to vector<32x128xf32>
    %c0_65 = arith.constant 0 : index
    %c0_66 = arith.constant 0 : index
    %80 = vector.load %arg13[%c0_65, %c0_66] : memref<32x768xf32, #tpu.memory_space<vmem>>, vector<32x128xf32>
    tpu.vector_store %arg13[%c0_65, %c0_66], %79 {strides = array<i32>} : memref<32x768xf32, #tpu.memory_space<vmem>>, vector<32x128xf32>,
    %cst_67 = arith.constant 0.000000e+00 : f32
    %81 = vector.broadcast %cst_67 : f32 to vector<32x128xf32>
    %c0_68 = arith.constant 0 : index
    %c256 = arith.constant 256 : index
    %82 = vector.load %arg13[%c0_68, %c256] : memref<32x768xf32, #tpu.memory_space<vmem>>, vector<32x128xf32>
    tpu.vector_store %arg13[%c0_68, %c256], %81 {strides = array<i32>} : memref<32x768xf32, #tpu.memory_space<vmem>>, vector<32x128xf32>,
    %c0_69 = arith.constant 0 : index
    %c128_70 = arith.constant 128 : index
    %83 = vector.load %arg13[%c0_69, %c128_70] : memref<32x768xf32, #tpu.memory_space<vmem>>, vector<32x128xf32>
    tpu.vector_store %arg13[%c0_69, %c128_70], %78 {strides = array<i32>} : memref<32x768xf32, #tpu.memory_space<vmem>>, vector<32x128xf32>,
    %c0_71 = arith.constant 0 : index
    %c0_72 = arith.constant 0 : index
    %84 = vector.load %arg13[%c0_71, %c0_72] : memref<32x768xf32, #tpu.memory_space<vmem>>, vector<32x384xf32>
    %85 = tpu.iota {dimensions = array<i32: 1>} : vector<1x384xi32>
    %c15_i32 = arith.constant 15 : i32
    %86 = vector.broadcast %c15_i32 : i32 to vector<1x384xi32>
    %87 = arith.andi %85, %86 : vector<1x384xi32>
    %c15_i32_73 = arith.constant 15 : i32
    %88 = vector.broadcast %c15_i32_73 : i32 to vector<1x384xi32>
    %89 = arith.cmpi eq, %87, %88 : vector<1x384xi32>
    %cst_74 = arith.constant 0.000000e+00 : f32
    %90 = vector.shape_cast %89 : vector<1x384xi1> to vector<1x384xi1>
    %91 = vector.broadcast %90 : vector<1x384xi1> to vector<32x384xi1>
    %92 = vector.broadcast %cst_74 : f32 to vector<32x384xf32>
    %93 = arith.select %91, %92, %84 : vector<32x384xi1>, vector<32x384xf32>
    %c0_i32_75 = arith.constant 0 : i32
    %94 = vector.broadcast %c0_i32_75 : i32 to vector<1x384xi32>
    %95 = arith.cmpi eq, %87, %94 : vector<1x384xi32>
    %cst_76 = arith.constant 0.000000e+00 : f32
    %96 = vector.shape_cast %95 : vector<1x384xi1> to vector<1x384xi1>
    %97 = vector.broadcast %96 : vector<1x384xi1> to vector<32x384xi1>
    %98 = vector.broadcast %cst_76 : f32 to vector<32x384xf32>
    %99 = arith.select %97, %98, %84 : vector<32x384xi1>, vector<32x384xf32>
    %cst_77 = arith.constant 0.000000e+00 : f32
    %100 = vector.broadcast %cst_77 : f32 to vector<32x128xf32>
    %101 = vector.extract_strided_slice %93 {offsets = [0, 111], sizes = [32, 128], strides = [1, 1]} : vector<32x384xf32> to vector<32x128xf32>
    %c0_78 = arith.constant 0 : index
    %c0_79 = arith.constant 0 : index
    %c0_80 = arith.constant 0 : index
    %c0_81 = arith.constant 0 : index
    %102 = vector.load %arg5[%c0_78, %c0_79, %c0_80, %c0_81] : memref<3x3x32x32xf32, #tpu.memory_space<vmem>>, vector<1x1x32x32xf32>
    %103 = vector.shape_cast %102 : vector<1x1x32x32xf32> to vector<32x32xf32>
    %cst_82 = arith.constant dense<0.000000e+00> : vector<32x128xf32>
    %104 = tpu.matmul %103, %101, %cst_82 {dimension_numbers = #tpu.dot_dimension_numbers<[1], [0], [0], [1], [0, 0, 1, 1], [], []>} : vector<32x32xf32>, vector<32x128xf32>, vector<32x128xf32> -> vector<32x128xf32>
    %105 = arith.addf %100, %104 : vector<32x128xf32>
    %106 = vector.extract_strided_slice %84 {offsets = [0, 112], sizes = [32, 128], strides = [1, 1]} : vector<32x384xf32> to vector<32x128xf32>
    %c0_83 = arith.constant 0 : index
    %c1_84 = arith.constant 1 : index
    %c0_85 = arith.constant 0 : index
    %c0_86 = arith.constant 0 : index
    %107 = vector.load %arg5[%c0_83, %c1_84, %c0_85, %c0_86] : memref<3x3x32x32xf32, #tpu.memory_space<vmem>>, vector<1x1x32x32xf32>
    %108 = vector.shape_cast %107 : vector<1x1x32x32xf32> to vector<32x32xf32>
    %cst_87 = arith.constant dense<0.000000e+00> : vector<32x128xf32>
    %109 = tpu.matmul %108, %106, %cst_87 {dimension_numbers = #tpu.dot_dimension_numbers<[1], [0], [0], [1], [0, 0, 1, 1], [], []>} : vector<32x32xf32>, vector<32x128xf32>, vector<32x128xf32> -> vector<32x128xf32>
    %110 = arith.addf %105, %109 : vector<32x128xf32>
    %111 = vector.extract_strided_slice %99 {offsets = [0, 113], sizes = [32, 128], strides = [1, 1]} : vector<32x384xf32> to vector<32x128xf32>
    %c0_88 = arith.constant 0 : index
    %c2_89 = arith.constant 2 : index
    %c0_90 = arith.constant 0 : index
    %c0_91 = arith.constant 0 : index
    %112 = vector.load %arg5[%c0_88, %c2_89, %c0_90, %c0_91] : memref<3x3x32x32xf32, #tpu.memory_space<vmem>>, vector<1x1x32x32xf32>
    %113 = vector.shape_cast %112 : vector<1x1x32x32xf32> to vector<32x32xf32>
    %cst_92 = arith.constant dense<0.000000e+00> : vector<32x128xf32>
    %114 = tpu.matmul %113, %111, %cst_92 {dimension_numbers = #tpu.dot_dimension_numbers<[1], [0], [0], [1], [0, 0, 1, 1], [], []>} : vector<32x32xf32>, vector<32x128xf32>, vector<32x128xf32> -> vector<32x128xf32>
    %115 = arith.addf %110, %114 : vector<32x128xf32>
    %116 = vector.extract_strided_slice %93 {offsets = [0, 127], sizes = [32, 128], strides = [1, 1]} : vector<32x384xf32> to vector<32x128xf32>
    %c1_93 = arith.constant 1 : index
    %c0_94 = arith.constant 0 : index
    %c0_95 = arith.constant 0 : index
    %c0_96 = arith.constant 0 : index
    %117 = vector.load %arg5[%c1_93, %c0_94, %c0_95, %c0_96] : memref<3x3x32x32xf32, #tpu.memory_space<vmem>>, vector<1x1x32x32xf32>
    %118 = vector.shape_cast %117 : vector<1x1x32x32xf32> to vector<32x32xf32>
    %cst_97 = arith.constant dense<0.000000e+00> : vector<32x128xf32>
    %119 = tpu.matmul %118, %116, %cst_97 {dimension_numbers = #tpu.dot_dimension_numbers<[1], [0], [0], [1], [0, 0, 1, 1], [], []>} : vector<32x32xf32>, vector<32x128xf32>, vector<32x128xf32> -> vector<32x128xf32>
    %120 = arith.addf %115, %119 : vector<32x128xf32>
    %121 = vector.extract_strided_slice %84 {offsets = [0, 128], sizes = [32, 128], strides = [1, 1]} : vector<32x384xf32> to vector<32x128xf32>
    %c1_98 = arith.constant 1 : index
    %c1_99 = arith.constant 1 : index
    %c0_100 = arith.constant 0 : index
    %c0_101 = arith.constant 0 : index
    %122 = vector.load %arg5[%c1_98, %c1_99, %c0_100, %c0_101] : memref<3x3x32x32xf32, #tpu.memory_space<vmem>>, vector<1x1x32x32xf32>
    %123 = vector.shape_cast %122 : vector<1x1x32x32xf32> to vector<32x32xf32>
    %cst_102 = arith.constant dense<0.000000e+00> : vector<32x128xf32>
    %124 = tpu.matmul %123, %121, %cst_102 {dimension_numbers = #tpu.dot_dimension_numbers<[1], [0], [0], [1], [0, 0, 1, 1], [], []>} : vector<32x32xf32>, vector<32x128xf32>, vector<32x128xf32> -> vector<32x128xf32>
    %125 = arith.addf %120, %124 : vector<32x128xf32>
    %126 = vector.extract_strided_slice %99 {offsets = [0, 129], sizes = [32, 128], strides = [1, 1]} : vector<32x384xf32> to vector<32x128xf32>
    %c1_103 = arith.constant 1 : index
    %c2_104 = arith.constant 2 : index
    %c0_105 = arith.constant 0 : index
    %c0_106 = arith.constant 0 : index
    %127 = vector.load %arg5[%c1_103, %c2_104, %c0_105, %c0_106] : memref<3x3x32x32xf32, #tpu.memory_space<vmem>>, vector<1x1x32x32xf32>
    %128 = vector.shape_cast %127 : vector<1x1x32x32xf32> to vector<32x32xf32>
    %cst_107 = arith.constant dense<0.000000e+00> : vector<32x128xf32>
    %129 = tpu.matmul %128, %126, %cst_107 {dimension_numbers = #tpu.dot_dimension_numbers<[1], [0], [0], [1], [0, 0, 1, 1], [], []>} : vector<32x32xf32>, vector<32x128xf32>, vector<32x128xf32> -> vector<32x128xf32>
    %130 = arith.addf %125, %129 : vector<32x128xf32>
    %131 = vector.extract_strided_slice %93 {offsets = [0, 143], sizes = [32, 128], strides = [1, 1]} : vector<32x384xf32> to vector<32x128xf32>
    %c2_108 = arith.constant 2 : index
    %c0_109 = arith.constant 0 : index
    %c0_110 = arith.constant 0 : index
    %c0_111 = arith.constant 0 : index
    %132 = vector.load %arg5[%c2_108, %c0_109, %c0_110, %c0_111] : memref<3x3x32x32xf32, #tpu.memory_space<vmem>>, vector<1x1x32x32xf32>
    %133 = vector.shape_cast %132 : vector<1x1x32x32xf32> to vector<32x32xf32>
    %cst_112 = arith.constant dense<0.000000e+00> : vector<32x128xf32>
    %134 = tpu.matmul %133, %131, %cst_112 {dimension_numbers = #tpu.dot_dimension_numbers<[1], [0], [0], [1], [0, 0, 1, 1], [], []>} : vector<32x32xf32>, vector<32x128xf32>, vector<32x128xf32> -> vector<32x128xf32>
    %135 = arith.addf %130, %134 : vector<32x128xf32>
    %136 = vector.extract_strided_slice %84 {offsets = [0, 144], sizes = [32, 128], strides = [1, 1]} : vector<32x384xf32> to vector<32x128xf32>
    %c2_113 = arith.constant 2 : index
    %c1_114 = arith.constant 1 : index
    %c0_115 = arith.constant 0 : index
    %c0_116 = arith.constant 0 : index
    %137 = vector.load %arg5[%c2_113, %c1_114, %c0_115, %c0_116] : memref<3x3x32x32xf32, #tpu.memory_space<vmem>>, vector<1x1x32x32xf32>
    %138 = vector.shape_cast %137 : vector<1x1x32x32xf32> to vector<32x32xf32>
    %cst_117 = arith.constant dense<0.000000e+00> : vector<32x128xf32>
    %139 = tpu.matmul %138, %136, %cst_117 {dimension_numbers = #tpu.dot_dimension_numbers<[1], [0], [0], [1], [0, 0, 1, 1], [], []>} : vector<32x32xf32>, vector<32x128xf32>, vector<32x128xf32> -> vector<32x128xf32>
    %140 = arith.addf %135, %139 : vector<32x128xf32>
    %141 = vector.extract_strided_slice %99 {offsets = [0, 145], sizes = [32, 128], strides = [1, 1]} : vector<32x384xf32> to vector<32x128xf32>
    %c2_118 = arith.constant 2 : index
    %c2_119 = arith.constant 2 : index
    %c0_120 = arith.constant 0 : index
    %c0_121 = arith.constant 0 : index
    %142 = vector.load %arg5[%c2_118, %c2_119, %c0_120, %c0_121] : memref<3x3x32x32xf32, #tpu.memory_space<vmem>>, vector<1x1x32x32xf32>
    %143 = vector.shape_cast %142 : vector<1x1x32x32xf32> to vector<32x32xf32>
    %cst_122 = arith.constant dense<0.000000e+00> : vector<32x128xf32>
    %144 = tpu.matmul %143, %141, %cst_122 {dimension_numbers = #tpu.dot_dimension_numbers<[1], [0], [0], [1], [0, 0, 1, 1], [], []>} : vector<32x32xf32>, vector<32x128xf32>, vector<32x128xf32> -> vector<32x128xf32>
    %145 = arith.addf %140, %144 : vector<32x128xf32>
    %c0_123 = arith.constant 0 : index
    %c0_124 = arith.constant 0 : index
    %146 = vector.load %arg6[%c0_123, %c0_124] : memref<32x1xf32, #tpu.memory_space<vmem>>, vector<32x1xf32>
    %147 = vector.broadcast %146 : vector<32x1xf32> to vector<32x128xf32>
    %148 = arith.mulf %145, %147 : vector<32x128xf32>
    %c0_125 = arith.constant 0 : index
    %c0_126 = arith.constant 0 : index
    %149 = vector.load %arg7[%c0_125, %c0_126] : memref<32x1xf32, #tpu.memory_space<vmem>>, vector<32x1xf32>
    %150 = vector.broadcast %149 : vector<32x1xf32> to vector<32x128xf32>
    %151 = arith.addf %148, %150 : vector<32x128xf32>
    %cst_127 = arith.constant 0.000000e+00 : f32
    %152 = vector.broadcast %cst_127 : f32 to vector<32x128xf32>
    %153 = arith.maximumf %151, %152 : vector<32x128xf32>
    %c0_128 = arith.constant 0 : index
    %c0_129 = arith.constant 0 : index
    %154 = vector.load %arg11[%c0_128, %c0_129] : memref<512x128xf32, #tpu.memory_space<vmem>>, vector<128x32xf32>
    %cst_130 = arith.constant dense<0.000000e+00> : vector<32x32xf32>
    %155 = tpu.matmul %153, %154, %cst_130 {dimension_numbers = #tpu.dot_dimension_numbers<[1], [0], [0], [1], [0, 0, 1, 1], [], []>} : vector<32x128xf32>, vector<128x32xf32>, vector<32x32xf32> -> vector<32x32xf32>
    %cst_131 = arith.constant 0.000000e+00 : f32
    %156 = vector.broadcast %cst_131 : f32 to vector<32x128xf32>
    %c0_132 = arith.constant 0 : index
    %c0_133 = arith.constant 0 : index
    %157 = vector.load %arg13[%c0_132, %c0_133] : memref<32x768xf32, #tpu.memory_space<vmem>>, vector<32x128xf32>
    tpu.vector_store %arg13[%c0_132, %c0_133], %156 {strides = array<i32>} : memref<32x768xf32, #tpu.memory_space<vmem>>, vector<32x128xf32>,
    %cst_134 = arith.constant 0.000000e+00 : f32
    %158 = vector.broadcast %cst_134 : f32 to vector<32x128xf32>
    %c0_135 = arith.constant 0 : index
    %c160 = arith.constant 160 : index
    %159 = vector.load %arg13[%c0_135, %c160] : memref<32x768xf32, #tpu.memory_space<vmem>>, vector<32x128xf32>
    tpu.vector_store %arg13[%c0_135, %c160], %158 {strides = array<i32>} : memref<32x768xf32, #tpu.memory_space<vmem>>, vector<32x128xf32>,
    %c0_136 = arith.constant 0 : index
    %c128_137 = arith.constant 128 : index
    %160 = vector.load %arg13[%c0_136, %c128_137] : memref<32x768xf32, #tpu.memory_space<vmem>>, vector<32x32xf32>
    tpu.vector_store %arg13[%c0_136, %c128_137], %155 {strides = array<i32>} : memref<32x768xf32, #tpu.memory_space<vmem>>, vector<32x32xf32>,
    %c0_138 = arith.constant 0 : index
    %c0_139 = arith.constant 0 : index
    %161 = vector.load %arg13[%c0_138, %c0_139] : memref<32x768xf32, #tpu.memory_space<vmem>>, vector<32x288xf32>
    %162 = tpu.iota {dimensions = array<i32: 1>} : vector<1x288xi32>
    %c3_i32 = arith.constant 3 : i32
    %163 = vector.broadcast %c3_i32 : i32 to vector<1x288xi32>
    %164 = arith.andi %162, %163 : vector<1x288xi32>
    %c3_i32_140 = arith.constant 3 : i32
    %165 = vector.broadcast %c3_i32_140 : i32 to vector<1x288xi32>
    %166 = arith.cmpi eq, %164, %165 : vector<1x288xi32>
    %cst_141 = arith.constant 0.000000e+00 : f32
    %167 = vector.shape_cast %166 : vector<1x288xi1> to vector<1x288xi1>
    %168 = vector.broadcast %167 : vector<1x288xi1> to vector<32x288xi1>
    %169 = vector.broadcast %cst_141 : f32 to vector<32x288xf32>
    %170 = arith.select %168, %169, %161 : vector<32x288xi1>, vector<32x288xf32>
    %c0_i32_142 = arith.constant 0 : i32
    %171 = vector.broadcast %c0_i32_142 : i32 to vector<1x288xi32>
    %172 = arith.cmpi eq, %164, %171 : vector<1x288xi32>
    %cst_143 = arith.constant 0.000000e+00 : f32
    %173 = vector.shape_cast %172 : vector<1x288xi1> to vector<1x288xi1>
    %174 = vector.broadcast %173 : vector<1x288xi1> to vector<32x288xi1>
    %175 = vector.broadcast %cst_143 : f32 to vector<32x288xf32>
    %176 = arith.select %174, %175, %161 : vector<32x288xi1>, vector<32x288xf32>
    %cst_144 = arith.constant 0.000000e+00 : f32
    %177 = vector.broadcast %cst_144 : f32 to vector<32x32xf32>
    %178 = vector.extract_strided_slice %170 {offsets = [0, 123], sizes = [32, 32], strides = [1, 1]} : vector<32x288xf32> to vector<32x32xf32>
    %c0_145 = arith.constant 0 : index
    %c0_146 = arith.constant 0 : index
    %c0_147 = arith.constant 0 : index
    %c0_148 = arith.constant 0 : index
    %179 = vector.load %arg8[%c0_145, %c0_146, %c0_147, %c0_148] : memref<3x3x32x32xf32, #tpu.memory_space<vmem>>, vector<1x1x32x32xf32>
    %180 = vector.shape_cast %179 : vector<1x1x32x32xf32> to vector<32x32xf32>
    %cst_149 = arith.constant dense<0.000000e+00> : vector<32x32xf32>
    %181 = tpu.matmul %180, %178, %cst_149 {dimension_numbers = #tpu.dot_dimension_numbers<[1], [0], [0], [1], [0, 0, 1, 1], [], []>} : vector<32x32xf32>, vector<32x32xf32>, vector<32x32xf32> -> vector<32x32xf32>
    %182 = arith.addf %177, %181 : vector<32x32xf32>
    %183 = vector.extract_strided_slice %161 {offsets = [0, 124], sizes = [32, 32], strides = [1, 1]} : vector<32x288xf32> to vector<32x32xf32>
    %c0_150 = arith.constant 0 : index
    %c1_151 = arith.constant 1 : index
    %c0_152 = arith.constant 0 : index
    %c0_153 = arith.constant 0 : index
    %184 = vector.load %arg8[%c0_150, %c1_151, %c0_152, %c0_153] : memref<3x3x32x32xf32, #tpu.memory_space<vmem>>, vector<1x1x32x32xf32>
    %185 = vector.shape_cast %184 : vector<1x1x32x32xf32> to vector<32x32xf32>
    %cst_154 = arith.constant dense<0.000000e+00> : vector<32x32xf32>
    %186 = tpu.matmul %185, %183, %cst_154 {dimension_numbers = #tpu.dot_dimension_numbers<[1], [0], [0], [1], [0, 0, 1, 1], [], []>} : vector<32x32xf32>, vector<32x32xf32>, vector<32x32xf32> -> vector<32x32xf32>
    %187 = arith.addf %182, %186 : vector<32x32xf32>
    %188 = vector.extract_strided_slice %176 {offsets = [0, 125], sizes = [32, 32], strides = [1, 1]} : vector<32x288xf32> to vector<32x32xf32>
    %c0_155 = arith.constant 0 : index
    %c2_156 = arith.constant 2 : index
    %c0_157 = arith.constant 0 : index
    %c0_158 = arith.constant 0 : index
    %189 = vector.load %arg8[%c0_155, %c2_156, %c0_157, %c0_158] : memref<3x3x32x32xf32, #tpu.memory_space<vmem>>, vector<1x1x32x32xf32>
    %190 = vector.shape_cast %189 : vector<1x1x32x32xf32> to vector<32x32xf32>
    %cst_159 = arith.constant dense<0.000000e+00> : vector<32x32xf32>
    %191 = tpu.matmul %190, %188, %cst_159 {dimension_numbers = #tpu.dot_dimension_numbers<[1], [0], [0], [1], [0, 0, 1, 1], [], []>} : vector<32x32xf32>, vector<32x32xf32>, vector<32x32xf32> -> vector<32x32xf32>
    %192 = arith.addf %187, %191 : vector<32x32xf32>
    %193 = vector.extract_strided_slice %170 {offsets = [0, 127], sizes = [32, 32], strides = [1, 1]} : vector<32x288xf32> to vector<32x32xf32>
    %c1_160 = arith.constant 1 : index
    %c0_161 = arith.constant 0 : index
    %c0_162 = arith.constant 0 : index
    %c0_163 = arith.constant 0 : index
    %194 = vector.load %arg8[%c1_160, %c0_161, %c0_162, %c0_163] : memref<3x3x32x32xf32, #tpu.memory_space<vmem>>, vector<1x1x32x32xf32>
    %195 = vector.shape_cast %194 : vector<1x1x32x32xf32> to vector<32x32xf32>
    %cst_164 = arith.constant dense<0.000000e+00> : vector<32x32xf32>
    %196 = tpu.matmul %195, %193, %cst_164 {dimension_numbers = #tpu.dot_dimension_numbers<[1], [0], [0], [1], [0, 0, 1, 1], [], []>} : vector<32x32xf32>, vector<32x32xf32>, vector<32x32xf32> -> vector<32x32xf32>
    %197 = arith.addf %192, %196 : vector<32x32xf32>
    %198 = vector.extract_strided_slice %161 {offsets = [0, 128], sizes = [32, 32], strides = [1, 1]} : vector<32x288xf32> to vector<32x32xf32>
    %c1_165 = arith.constant 1 : index
    %c1_166 = arith.constant 1 : index
    %c0_167 = arith.constant 0 : index
    %c0_168 = arith.constant 0 : index
    %199 = vector.load %arg8[%c1_165, %c1_166, %c0_167, %c0_168] : memref<3x3x32x32xf32, #tpu.memory_space<vmem>>, vector<1x1x32x32xf32>
    %200 = vector.shape_cast %199 : vector<1x1x32x32xf32> to vector<32x32xf32>
    %cst_169 = arith.constant dense<0.000000e+00> : vector<32x32xf32>
    %201 = tpu.matmul %200, %198, %cst_169 {dimension_numbers = #tpu.dot_dimension_numbers<[1], [0], [0], [1], [0, 0, 1, 1], [], []>} : vector<32x32xf32>, vector<32x32xf32>, vector<32x32xf32> -> vector<32x32xf32>
    %202 = arith.addf %197, %201 : vector<32x32xf32>
    %203 = vector.extract_strided_slice %176 {offsets = [0, 129], sizes = [32, 32], strides = [1, 1]} : vector<32x288xf32> to vector<32x32xf32>
    %c1_170 = arith.constant 1 : index
    %c2_171 = arith.constant 2 : index
    %c0_172 = arith.constant 0 : index
    %c0_173 = arith.constant 0 : index
    %204 = vector.load %arg8[%c1_170, %c2_171, %c0_172, %c0_173] : memref<3x3x32x32xf32, #tpu.memory_space<vmem>>, vector<1x1x32x32xf32>
    %205 = vector.shape_cast %204 : vector<1x1x32x32xf32> to vector<32x32xf32>
    %cst_174 = arith.constant dense<0.000000e+00> : vector<32x32xf32>
    %206 = tpu.matmul %205, %203, %cst_174 {dimension_numbers = #tpu.dot_dimension_numbers<[1], [0], [0], [1], [0, 0, 1, 1], [], []>} : vector<32x32xf32>, vector<32x32xf32>, vector<32x32xf32> -> vector<32x32xf32>
    %207 = arith.addf %202, %206 : vector<32x32xf32>
    %208 = vector.extract_strided_slice %170 {offsets = [0, 131], sizes = [32, 32], strides = [1, 1]} : vector<32x288xf32> to vector<32x32xf32>
    %c2_175 = arith.constant 2 : index
    %c0_176 = arith.constant 0 : index
    %c0_177 = arith.constant 0 : index
    %c0_178 = arith.constant 0 : index
    %209 = vector.load %arg8[%c2_175, %c0_176, %c0_177, %c0_178] : memref<3x3x32x32xf32, #tpu.memory_space<vmem>>, vector<1x1x32x32xf32>
    %210 = vector.shape_cast %209 : vector<1x1x32x32xf32> to vector<32x32xf32>
    %cst_179 = arith.constant dense<0.000000e+00> : vector<32x32xf32>
    %211 = tpu.matmul %210, %208, %cst_179 {dimension_numbers = #tpu.dot_dimension_numbers<[1], [0], [0], [1], [0, 0, 1, 1], [], []>} : vector<32x32xf32>, vector<32x32xf32>, vector<32x32xf32> -> vector<32x32xf32>
    %212 = arith.addf %207, %211 : vector<32x32xf32>
    %213 = vector.extract_strided_slice %161 {offsets = [0, 132], sizes = [32, 32], strides = [1, 1]} : vector<32x288xf32> to vector<32x32xf32>
    %c2_180 = arith.constant 2 : index
    %c1_181 = arith.constant 1 : index
    %c0_182 = arith.constant 0 : index
    %c0_183 = arith.constant 0 : index
    %214 = vector.load %arg8[%c2_180, %c1_181, %c0_182, %c0_183] : memref<3x3x32x32xf32, #tpu.memory_space<vmem>>, vector<1x1x32x32xf32>
    %215 = vector.shape_cast %214 : vector<1x1x32x32xf32> to vector<32x32xf32>
    %cst_184 = arith.constant dense<0.000000e+00> : vector<32x32xf32>
    %216 = tpu.matmul %215, %213, %cst_184 {dimension_numbers = #tpu.dot_dimension_numbers<[1], [0], [0], [1], [0, 0, 1, 1], [], []>} : vector<32x32xf32>, vector<32x32xf32>, vector<32x32xf32> -> vector<32x32xf32>
    %217 = arith.addf %212, %216 : vector<32x32xf32>
    %218 = vector.extract_strided_slice %176 {offsets = [0, 133], sizes = [32, 32], strides = [1, 1]} : vector<32x288xf32> to vector<32x32xf32>
    %c2_185 = arith.constant 2 : index
    %c2_186 = arith.constant 2 : index
    %c0_187 = arith.constant 0 : index
    %c0_188 = arith.constant 0 : index
    %219 = vector.load %arg8[%c2_185, %c2_186, %c0_187, %c0_188] : memref<3x3x32x32xf32, #tpu.memory_space<vmem>>, vector<1x1x32x32xf32>
    %220 = vector.shape_cast %219 : vector<1x1x32x32xf32> to vector<32x32xf32>
    %cst_189 = arith.constant dense<0.000000e+00> : vector<32x32xf32>
    %221 = tpu.matmul %220, %218, %cst_189 {dimension_numbers = #tpu.dot_dimension_numbers<[1], [0], [0], [1], [0, 0, 1, 1], [], []>} : vector<32x32xf32>, vector<32x32xf32>, vector<32x32xf32> -> vector<32x32xf32>
    %222 = arith.addf %217, %221 : vector<32x32xf32>
    %c0_190 = arith.constant 0 : index
    %c0_191 = arith.constant 0 : index
    %223 = vector.load %arg9[%c0_190, %c0_191] : memref<32x1xf32, #tpu.memory_space<vmem>>, vector<32x1xf32>
    %224 = vector.broadcast %223 : vector<32x1xf32> to vector<32x32xf32>
    %225 = arith.mulf %222, %224 : vector<32x32xf32>
    %c0_192 = arith.constant 0 : index
    %c0_193 = arith.constant 0 : index
    %226 = vector.load %arg10[%c0_192, %c0_193] : memref<32x1xf32, #tpu.memory_space<vmem>>, vector<32x1xf32>
    %227 = vector.broadcast %226 : vector<32x1xf32> to vector<32x32xf32>
    %228 = arith.addf %225, %227 : vector<32x32xf32>
    %cst_194 = arith.constant 0.000000e+00 : f32
    %229 = vector.broadcast %cst_194 : f32 to vector<32x32xf32>
    %230 = arith.maximumf %228, %229 : vector<32x32xf32>
    %c0_195 = arith.constant 0 : index
    %c0_196 = arith.constant 0 : index
    %231 = vector.load %arg11[%c0_195, %c0_196] : memref<512x128xf32, #tpu.memory_space<vmem>>, vector<32x8xf32>
    %cst_197 = arith.constant dense<0.000000e+00> : vector<32x8xf32>
    %232 = tpu.matmul %230, %231, %cst_197 {dimension_numbers = #tpu.dot_dimension_numbers<[1], [0], [0], [1], [0, 0, 1, 1], [], []>} : vector<32x32xf32>, vector<32x8xf32>, vector<32x8xf32> -> vector<32x8xf32>
    %c0_198 = arith.constant 0 : index
    %c0_199 = arith.constant 0 : index
    %c0_200 = arith.constant 0 : index
    %233 = vector.load %arg12[%c0_198, %c0_199, %c0_200] : memref<1x32x8xf32, #tpu.memory_space<vmem>>, vector<1x32x8xf32>
    %234 = vector.shape_cast %233 : vector<1x32x8xf32> to vector<32x8xf32>
    %235 = vector.shape_cast %232 : vector<32x8xf32> to vector<1x32x8xf32>
    tpu.vector_store %arg12[%c0_198, %c0_199, %c0_200], %235 {strides = array<i32>} : memref<1x32x8xf32, #tpu.memory_space<vmem>>, vector<1x32x8xf32>,
    return
  }
  func.func @transform_0(%arg0: i32) -> (i32, i32, i32) {
    %c0_i32 = arith.constant 0 : i32
    %c0_i32_0 = arith.constant 0 : i32
    %c0_i32_1 = arith.constant 0 : i32
    return %arg0, %c0_i32, %c0_i32_0 : i32, i32, i32
  }
  func.func @transform_1(%arg0: i32) -> (i32, i32, i32, i32) {
    %c0_i32 = arith.constant 0 : i32
    %c0_i32_0 = arith.constant 0 : i32
    %c0_i32_1 = arith.constant 0 : i32
    %c0_i32_2 = arith.constant 0 : i32
    %c0_i32_3 = arith.constant 0 : i32
    return %c0_i32, %c0_i32_0, %c0_i32_1, %c0_i32_2 : i32, i32, i32, i32
  }
  func.func @transform_2(%arg0: i32) -> (i32, i32) {
    %c0_i32 = arith.constant 0 : i32
    %c0_i32_0 = arith.constant 0 : i32
    %c0_i32_1 = arith.constant 0 : i32
    return %c0_i32, %c0_i32_0 : i32, i32
  }
  func.func @transform_3(%arg0: i32) -> (i32, i32) {
    %c0_i32 = arith.constant 0 : i32
    %c0_i32_0 = arith.constant 0 : i32
    %c0_i32_1 = arith.constant 0 : i32
    return %c0_i32, %c0_i32_0 : i32, i32
  }
  func.func @transform_4(%arg0: i32) -> (i32, i32, i32, i32) {
    %c0_i32 = arith.constant 0 : i32
    %c0_i32_0 = arith.constant 0 : i32
    %c0_i32_1 = arith.constant 0 : i32
    %c0_i32_2 = arith.constant 0 : i32
    %c0_i32_3 = arith.constant 0 : i32
    return %c0_i32, %c0_i32_0, %c0_i32_1, %c0_i32_2 : i32, i32, i32, i32
  }
  func.func @transform_5(%arg0: i32) -> (i32, i32) {
    %c0_i32 = arith.constant 0 : i32
    %c0_i32_0 = arith.constant 0 : i32
    %c0_i32_1 = arith.constant 0 : i32
    return %c0_i32, %c0_i32_0 : i32, i32
  }
  func.func @transform_6(%arg0: i32) -> (i32, i32) {
    %c0_i32 = arith.constant 0 : i32
    %c0_i32_0 = arith.constant 0 : i32
    %c0_i32_1 = arith.constant 0 : i32
    return %c0_i32, %c0_i32_0 : i32, i32
  }
  func.func @transform_7(%arg0: i32) -> (i32, i32, i32, i32) {
    %c0_i32 = arith.constant 0 : i32
    %c0_i32_0 = arith.constant 0 : i32
    %c0_i32_1 = arith.constant 0 : i32
    %c0_i32_2 = arith.constant 0 : i32
    %c0_i32_3 = arith.constant 0 : i32
    return %c0_i32, %c0_i32_0, %c0_i32_1, %c0_i32_2 : i32, i32, i32, i32
  }
  func.func @transform_8(%arg0: i32) -> (i32, i32) {
    %c0_i32 = arith.constant 0 : i32
    %c0_i32_0 = arith.constant 0 : i32
    %c0_i32_1 = arith.constant 0 : i32
    return %c0_i32, %c0_i32_0 : i32, i32
  }
  func.func @transform_9(%arg0: i32) -> (i32, i32) {
    %c0_i32 = arith.constant 0 : i32
    %c0_i32_0 = arith.constant 0 : i32
    %c0_i32_1 = arith.constant 0 : i32
    return %c0_i32, %c0_i32_0 : i32, i32
  }
  func.func @transform_10(%arg0: i32) -> (i32, i32) {
    %c0_i32 = arith.constant 0 : i32
    %c0_i32_0 = arith.constant 0 : i32
    %c0_i32_1 = arith.constant 0 : i32
    return %c0_i32, %c0_i32_0 : i32, i32
  }
  func.func @transform_11(%arg0: i32) -> (i32, i32, i32) {
    %c0_i32 = arith.constant 0 : i32
    %c0_i32_0 = arith.constant 0 : i32
    %c0_i32_1 = arith.constant 0 : i32
    return %arg0, %c0_i32, %c0_i32_0 : i32, i32, i32
  }
}

</mosaic_0001>

<llo_original>
// kernel: tpu_custom_call.1
$region0: #{tpu_custom_call.1}
  #allocation0 [shape = 'u32[]', space=smem, size = 0x4, offset = 0x4, fixed_abs, tag = 'smem constant byte address 0x4 - core index']
  #allocation1 [shape = 'u32[144,128]{1,0:T(1,128)}', space=vmem, size = 0x12000, scoped, tag = 'internal scratch']
  #allocation2 [shape = 'f32[32,768]{1,0:T(8,128)}', space=vmem, size = 0x18000, scoped, tag = 'scratch operand']
  %s0 = inlined_call_operand.hbm [shape: f32[2,4,512], index: 0, kind: input, shape index: {}]
  %s1 = inlined_call_operand.vmem [shape: f32[3,3,32,4], index: 1, kind: input, shape index: {}]
  %s2 = inlined_call_operand.vmem [shape: f32[32,1], index: 2, kind: input, shape index: {}]
  %s3 = inlined_call_operand.vmem [shape: f32[32,1], index: 3, kind: input, shape index: {}]
  %s4 = inlined_call_operand.hbm [shape: f32[3,3,32,32], index: 4, kind: input, shape index: {}]
  %s5 = inlined_call_operand.vmem [shape: f32[32,1], index: 5, kind: input, shape index: {}]
  %s6 = inlined_call_operand.vmem [shape: f32[32,1], index: 6, kind: input, shape index: {}]
  %s7 = inlined_call_operand.hbm [shape: f32[3,3,32,32], index: 7, kind: input, shape index: {}]
  %s8 = inlined_call_operand.vmem [shape: f32[32,1], index: 8, kind: input, shape index: {}]
  %s9 = inlined_call_operand.vmem [shape: f32[32,1], index: 9, kind: input, shape index: {}]
  %s10 = inlined_call_operand.vmem [shape: f32[512,128], index: 10, kind: input, shape index: {}]
  %s11 = inlined_call_operand.vmem [shape: f32[2,32,8], index: 11, kind: output, shape index: {}]
  %s12 = sld [smem:[#allocation0]]
  $region89: #{tpu_custom_call.1} parent=0
    _
  %s14 = ssub.s32 1, %s12
  %s15 = scalar_select 0, %s14, %s12
  $region1: #{tpu_custom_call.1} parent=0
    #allocation3 [shape = 'u8[16384]{0}', space=vmem, size = 0x4000, scoped, tag = 'input window, operand 0']
    #allocation4 [shape = 's32[2]{0}', space=sflag, size = 0x8, scoped, tag = 'scoped memory for tpu_custom_call.1']
    #allocation5 [shape = 'u8[147456]{0}', space=vmem, size = 0x24000, scoped, tag = 'input window, operand 4, single buffered']
    #allocation6 [shape = 's32[1]{0}', space=sflag, size = 0x4, scoped, tag = 'scoped memory for tpu_custom_call.1']
    #allocation7 [shape = 'u8[147456]{0}', space=vmem, size = 0x24000, scoped, tag = 'input window, operand 7, single buffered']
    %16 = vsyncpa [#allocation4], 0
    %s17 = scalar_lea.sflag [#allocation4], 1
    %18 = vsyncpa %s17, 0
    %19 = vsyncpa [#allocation6], 0
    loop: start=0, step=1, limit=4
    $region2: #{tpu_custom_call.1} parent=1 // loop_pre_header
      _
    $region3: #{tpu_custom_call.1} parent=1 // loop_header
      %s21 = sphi 0, %s25
      %p22 = scmp.ge.s32.totalorder %s21, 4
      %s31 = sphi 0, %s33
      %s34 = sphi 0, %s31
      %s35 = sphi 0, %s34
      %s51 = sphi 0, %s35
      %s55 = sphi 0, %s55
      %s57 = sphi 0, %s55
      %s58 = sphi 0, %s57
      %s72 = sphi 0, %s58
      %s76 = sphi 0, %s76
      %s78 = sphi 0, %s76
      %s79 = sphi 0, %s78
      %s93 = sphi 0, %s79
      %s97 = sphi 0, %s97
      %s99 = sphi 0, %s97
      %s100 = sphi 0, %s99
      %s114 = sphi 0, %s100
      %s118 = sphi 0, %s118
      %s120 = sphi 0, %s118
      %s121 = sphi 0, %s120
      %s135 = sphi 0, %s121
      %s139 = sphi 0, %s139
      %s141 = sphi 0, %s139
      %s142 = sphi 0, %s141
      %s156 = sphi 0, %s142
      %s160 = sphi 0, %s160
      %s162 = sphi 0, %s160
      %s163 = sphi 0, %s162
      %s177 = sphi 0, %s163
      %s181 = sphi 0, %s181
      %s183 = sphi 0, %s181
      %s184 = sphi 0, %s183
      %s198 = sphi 0, %s184
      %s202 = sphi 0, %s202
      %s204 = sphi 0, %s202
      %s205 = sphi 0, %s204
      %s219 = sphi 0, %s205
      %s223 = sphi 0, %s223
      %s225 = sphi 0, %s223
      %s226 = sphi 0, %s225
      %s240 = sphi 0, %s226
      %s244 = sphi 0, %s244
      %s246 = sphi 0, %s244
      %s247 = sphi 0, %s246
      %s261 = sphi 0, %s247
      %s267 = sphi 0, %s269
      %s270 = sphi 0, %s267
      %s271 = sphi 0, %s270
      %s287 = sphi 0, %s271
    $region4: #{tpu_custom_call.1} parent=1 // loop_header_branch
      %24 = sbr.rel (%p22) target = $region8
    $region5: #{tpu_custom_call.1} parent=1 // loop_body
      %s26 = ssub.s32 %s21, 1
      %s27 = ssub.s32 %s21, 2
      %s28 = sadd.s32 %s21, 1
      %s29 = ssub.s32 %s21, %s28
      %p30 = scmp.eq.s32.totalorder %s29, 0
      %s32 = sadd.s32 %s31, 1
      %s33 = scalar_select %p30, %s31, %s32
      %p36 = pneg %p30
      %p37 = scmp.eq.s32.totalorder %s21, 1
      %p38 = por %p36, %p37
      %p39 = scmp.ne.s32.totalorder %s31, %s34
      %p40 = scmp.eq.s32.totalorder %s21, 0
      %p41 = por %p39, %p40
      %p42 = scmp.ne.s32.totalorder %s31, %s34
      %p43 = scmp.eq.s32.totalorder %s26, 1
      %p44 = por %p42, %p43
      %p45 = scmp.ne.s32.totalorder %s34, %s35
      %p46 = scmp.eq.s32.totalorder %s26, 0
      %p47 = por %p45, %p46
      %p48 = scmp.ne.s32.totalorder %s34, %s35
      %p49 = scmp.eq.s32.totalorder %s27, 1
      %p50 = por %p48, %p49
      %p52 = scmp.ne.s32.totalorder %s35, %s51
      %p53 = scmp.eq.s32.totalorder %s27, 0
      %p54 = por %p52, %p53
      %s56 = sadd.s32 %s55, 1
      %p59 = scmp.eq.s32.totalorder %s21, 1
      %p60 = scmp.ne.s32.totalorder %s55, %s57
      %p61 = scmp.eq.s32.totalorder %s21, 0
      %p62 = por %p60, %p61
      %p63 = scmp.ne.s32.totalorder %s55, %s57
      %p64 = scmp.eq.s32.totalorder %s26, 1
      %p65 = por %p63, %p64
      %p66 = scmp.ne.s32.totalorder %s57, %s58
      %p67 = scmp.eq.s32.totalorder %s26, 0
      %p68 = por %p66, %p67
      %p69 = scmp.ne.s32.totalorder %s57, %s58
      %p70 = scmp.eq.s32.totalorder %s27, 1
      %p71 = por %p69, %p70
      %p73 = scmp.ne.s32.totalorder %s58, %s72
      %p74 = scmp.eq.s32.totalorder %s27, 0
      %p75 = por %p73, %p74
      %s77 = sadd.s32 %s76, 1
      %p80 = scmp.eq.s32.totalorder %s21, 1
      %p81 = scmp.ne.s32.totalorder %s76, %s78
      %p82 = scmp.eq.s32.totalorder %s21, 0
      %p83 = por %p81, %p82
      %p84 = scmp.ne.s32.totalorder %s76, %s78
      %p85 = scmp.eq.s32.totalorder %s26, 1
      %p86 = por %p84, %p85
      %p87 = scmp.ne.s32.totalorder %s78, %s79
      %p88 = scmp.eq.s32.totalorder %s26, 0
      %p89 = por %p87, %p88
      %p90 = scmp.ne.s32.totalorder %s78, %s79
      %p91 = scmp.eq.s32.totalorder %s27, 1
      %p92 = por %p90, %p91
      %p94 = scmp.ne.s32.totalorder %s79, %s93
      %p95 = scmp.eq.s32.totalorder %s27, 0
      %p96 = por %p94, %p95
      %s98 = sadd.s32 %s97, 1
      %p101 = scmp.eq.s32.totalorder %s21, 1
      %p102 = scmp.ne.s32.totalorder %s97, %s99
      %p103 = scmp.eq.s32.totalorder %s21, 0
      %p104 = por %p102, %p103
      %p105 = scmp.ne.s32.totalorder %s97, %s99
      %p106 = scmp.eq.s32.totalorder %s26, 1
      %p107 = por %p105, %p106
      %p108 = scmp.ne.s32.totalorder %s99, %s100
      %p109 = scmp.eq.s32.totalorder %s26, 0
      %p110 = por %p108, %p109
      %p111 = scmp.ne.s32.totalorder %s99, %s100
      %p112 = scmp.eq.s32.totalorder %s27, 1
      %p113 = por %p111, %p112
      %p115 = scmp.ne.s32.totalorder %s100, %s114
      %p116 = scmp.eq.s32.totalorder %s27, 0
      %p117 = por %p115, %p116
      %s119 = sadd.s32 %s118, 1
      %p122 = scmp.eq.s32.totalorder %s21, 1
      %p123 = scmp.ne.s32.totalorder %s118, %s120
      %p124 = scmp.eq.s32.totalorder %s21, 0
      %p125 = por %p123, %p124
      %p126 = scmp.ne.s32.totalorder %s118, %s120
      %p127 = scmp.eq.s32.totalorder %s26, 1
      %p128 = por %p126, %p127
      %p129 = scmp.ne.s32.totalorder %s120, %s121
      %p130 = scmp.eq.s32.totalorder %s26, 0
      %p131 = por %p129, %p130
      %p132 = scmp.ne.s32.totalorder %s120, %s121
      %p133 = scmp.eq.s32.totalorder %s27, 1
      %p134 = por %p132, %p133
      %p136 = scmp.ne.s32.totalorder %s121, %s135
      %p137 = scmp.eq.s32.totalorder %s27, 0
      %p138 = por %p136, %p137
      %s140 = sadd.s32 %s139, 1
      %p143 = scmp.eq.s32.totalorder %s21, 1
      %p144 = scmp.ne.s32.totalorder %s139, %s141
      %p145 = scmp.eq.s32.totalorder %s21, 0
      %p146 = por %p144, %p145
      %p147 = scmp.ne.s32.totalorder %s139, %s141
      %p148 = scmp.eq.s32.totalorder %s26, 1
      %p149 = por %p147, %p148
      %p150 = scmp.ne.s32.totalorder %s141, %s142
      %p151 = scmp.eq.s32.totalorder %s26, 0
      %p152 = por %p150, %p151
      %p153 = scmp.ne.s32.totalorder %s141, %s142
      %p154 = scmp.eq.s32.totalorder %s27, 1
      %p155 = por %p153, %p154
      %p157 = scmp.ne.s32.totalorder %s142, %s156
      %p158 = scmp.eq.s32.totalorder %s27, 0
      %p159 = por %p157, %p158
      %s161 = sadd.s32 %s160, 1
      %p164 = scmp.eq.s32.totalorder %s21, 1
      %p165 = scmp.ne.s32.totalorder %s160, %s162
      %p166 = scmp.eq.s32.totalorder %s21, 0
      %p167 = por %p165, %p166
      %p168 = scmp.ne.s32.totalorder %s160, %s162
      %p169 = scmp.eq.s32.totalorder %s26, 1
      %p170 = por %p168, %p169
      %p171 = scmp.ne.s32.totalorder %s162, %s163
      %p172 = scmp.eq.s32.totalorder %s26, 0
      %p173 = por %p171, %p172
      %p174 = scmp.ne.s32.totalorder %s162, %s163
      %p175 = scmp.eq.s32.totalorder %s27, 1
      %p176 = por %p174, %p175
      %p178 = scmp.ne.s32.totalorder %s163, %s177
      %p179 = scmp.eq.s32.totalorder %s27, 0
      %p180 = por %p178, %p179
      %s182 = sadd.s32 %s181, 1
      %p185 = scmp.eq.s32.totalorder %s21, 1
      %p186 = scmp.ne.s32.totalorder %s181, %s183
      %p187 = scmp.eq.s32.totalorder %s21, 0
      %p188 = por %p186, %p187
      %p189 = scmp.ne.s32.totalorder %s181, %s183
      %p190 = scmp.eq.s32.totalorder %s26, 1
      %p191 = por %p189, %p190
      %p192 = scmp.ne.s32.totalorder %s183, %s184
      %p193 = scmp.eq.s32.totalorder %s26, 0
      %p194 = por %p192, %p193
      %p195 = scmp.ne.s32.totalorder %s183, %s184
      %p196 = scmp.eq.s32.totalorder %s27, 1
      %p197 = por %p195, %p196
      %p199 = scmp.ne.s32.totalorder %s184, %s198
      %p200 = scmp.eq.s32.totalorder %s27, 0
      %p201 = por %p199, %p200
      %s203 = sadd.s32 %s202, 1
      %p206 = scmp.eq.s32.totalorder %s21, 1
      %p207 = scmp.ne.s32.totalorder %s202, %s204
      %p208 = scmp.eq.s32.totalorder %s21, 0
      %p209 = por %p207, %p208
      %p210 = scmp.ne.s32.totalorder %s202, %s204
      %p211 = scmp.eq.s32.totalorder %s26, 1
      %p212 = por %p210, %p211
      %p213 = scmp.ne.s32.totalorder %s204, %s205
      %p214 = scmp.eq.s32.totalorder %s26, 0
      %p215 = por %p213, %p214
      %p216 = scmp.ne.s32.totalorder %s204, %s205
      %p217 = scmp.eq.s32.totalorder %s27, 1
      %p218 = por %p216, %p217
      %p220 = scmp.ne.s32.totalorder %s205, %s219
      %p221 = scmp.eq.s32.totalorder %s27, 0
      %p222 = por %p220, %p221
      %s224 = sadd.s32 %s223, 1
      %p227 = scmp.eq.s32.totalorder %s21, 1
      %p228 = scmp.ne.s32.totalorder %s223, %s225
      %p229 = scmp.eq.s32.totalorder %s21, 0
      %p230 = por %p228, %p229
      %p231 = scmp.ne.s32.totalorder %s223, %s225
      %p232 = scmp.eq.s32.totalorder %s26, 1
      %p233 = por %p231, %p232
      %p234 = scmp.ne.s32.totalorder %s225, %s226
      %p235 = scmp.eq.s32.totalorder %s26, 0
      %p236 = por %p234, %p235
      %p237 = scmp.ne.s32.totalorder %s225, %s226
      %p238 = scmp.eq.s32.totalorder %s27, 1
      %p239 = por %p237, %p238
      %p241 = scmp.ne.s32.totalorder %s226, %s240
      %p242 = scmp.eq.s32.totalorder %s27, 0
      %p243 = por %p241, %p242
      %s245 = sadd.s32 %s244, 1
      %p248 = scmp.eq.s32.totalorder %s21, 1
      %p249 = scmp.ne.s32.totalorder %s244, %s246
      %p250 = scmp.eq.s32.totalorder %s21, 0
      %p251 = por %p249, %p250
      %p252 = scmp.ne.s32.totalorder %s244, %s246
      %p253 = scmp.eq.s32.totalorder %s26, 1
      %p254 = por %p252, %p253
      %p255 = scmp.ne.s32.totalorder %s246, %s247
      %p256 = scmp.eq.s32.totalorder %s26, 0
      %p257 = por %p255, %p256
      %p258 = scmp.ne.s32.totalorder %s246, %s247
      %p259 = scmp.eq.s32.totalorder %s27, 1
      %p260 = por %p258, %p259
      %p262 = scmp.ne.s32.totalorder %s247, %s261
      %p263 = scmp.eq.s32.totalorder %s27, 0
      %p264 = por %p262, %p263
      %s265 = ssub.s32 %s21, %s28
      %p266 = scmp.eq.s32.totalorder %s265, 0
      %s268 = sadd.s32 %s267, 1
      %s269 = scalar_select %p266, %s267, %s268
      %p272 = pneg %p266
      %p273 = scmp.eq.s32.totalorder %s21, 1
      %p274 = por %p272, %p273
      %p275 = scmp.ne.s32.totalorder %s267, %s270
      %p276 = scmp.eq.s32.totalorder %s21, 0
      %p277 = por %p275, %p276
      %p278 = scmp.ne.s32.totalorder %s267, %s270
      %p279 = scmp.eq.s32.totalorder %s26, 1
      %p280 = por %p278, %p279
      %p281 = scmp.ne.s32.totalorder %s270, %s271
      %p282 = scmp.eq.s32.totalorder %s26, 0
      %p283 = por %p281, %p282
      %p284 = scmp.ne.s32.totalorder %s270, %s271
      %p285 = scmp.eq.s32.totalorder %s27, 1
      %p286 = por %p284, %p285
      %p288 = scmp.ne.s32.totalorder %s271, %s287
      %p289 = scmp.eq.s32.totalorder %s27, 0
      %p290 = por %p288, %p289
      %p291 = scmp.le.s32.totalorder 1, %s21
      %p292 = scmp.lt.s32.totalorder %s21, 3
      %p293 = pnand %p291, %p292
      %p294 = pneg %p293
      // Predicated region
      $region9: #{tpu_custom_call.1} parent=5 // pred_check
        _
      $region10: #{tpu_custom_call.1} parent=5 // pred_check_branch
        %296 = sbr.rel (%p293) target = $region12
      $region11: #{tpu_custom_call.1} parent=5 // pred_region
        %s297 = ssub.s32 %s21, 1
        // Predicated region
        $region13: #{tpu_custom_call.1} parent=11 // pred_check
          %p298 = pneg %p68
        $region14: #{tpu_custom_call.1} parent=11 // pred_check_branch
          %300 = sbr.rel (%p298) target = $region16
        $region15: #{tpu_custom_call.1} parent=11 // pred_region
          _
        $region16: #{tpu_custom_call.1} parent=11 // pred_fallthru
          _
        // Predicated region
        $region17: #{tpu_custom_call.1} parent=11 // pred_check
          %p301 = pneg %p89
        $region18: #{tpu_custom_call.1} parent=11 // pred_check_branch
          %303 = sbr.rel (%p301) target = $region20
        $region19: #{tpu_custom_call.1} parent=11 // pred_region
          _
        $region20: #{tpu_custom_call.1} parent=11 // pred_fallthru
          _
        // Predicated region
        $region21: #{tpu_custom_call.1} parent=11 // pred_check
          %p304 = pneg %p110
        $region22: #{tpu_custom_call.1} parent=11 // pred_check_branch
          %306 = sbr.rel (%p304) target = $region24
        $region23: #{tpu_custom_call.1} parent=11 // pred_region
          _
        $region24: #{tpu_custom_call.1} parent=11 // pred_fallthru
          _
        // Predicated region
        $region25: #{tpu_custom_call.1} parent=11 // pred_check
          %p307 = pneg %p131
        $region26: #{tpu_custom_call.1} parent=11 // pred_check_branch
          %309 = sbr.rel (%p307) target = $region28
        $region27: #{tpu_custom_call.1} parent=11 // pred_region
          %s311 = ssub.s32 4608, 4608
          %312 = vsyncadd [#allocation6], %s311
          %s313 = sshll.u32 [#allocation5], 4
          %s314 = int_to_ptr.vmem [resolvable:$true] %s313
          %319 = dma.hbm_to_vmem [thread:$0]  %s4, 4608, %s314, [#allocation6], 128, 128, 8
        $region28: #{tpu_custom_call.1} parent=11 // pred_fallthru
          _
        // Predicated region
        $region29: #{tpu_custom_call.1} parent=11 // pred_check
          %p320 = pneg %p152
        $region30: #{tpu_custom_call.1} parent=11 // pred_check_branch
          %322 = sbr.rel (%p320) target = $region32
        $region31: #{tpu_custom_call.1} parent=11 // pred_region
          _
        $region32: #{tpu_custom_call.1} parent=11 // pred_fallthru
          _
        // Predicated region
        $region33: #{tpu_custom_call.1} parent=11 // pred_check
          %p323 = pneg %p173
        $region34: #{tpu_custom_call.1} parent=11 // pred_check_branch
          %325 = sbr.rel (%p323) target = $region36
        $region35: #{tpu_custom_call.1} parent=11 // pred_region
          _
        $region36: #{tpu_custom_call.1} parent=11 // pred_fallthru
          _
        // Predicated region
        $region37: #{tpu_custom_call.1} parent=11 // pred_check
          %p326 = pneg %p194
        $region38: #{tpu_custom_call.1} parent=11 // pred_check_branch
          %328 = sbr.rel (%p326) target = $region40
        $region39: #{tpu_custom_call.1} parent=11 // pred_region
          %s330 = ssub.s32 4608, 4608
          %331 = vsyncadd [#allocation6], %s330
          %s332 = sshll.u32 [#allocation7], 4
          %s333 = int_to_ptr.vmem [resolvable:$true] %s332
          %338 = dma.hbm_to_vmem [thread:$0]  %s7, 4608, %s333, [#allocation6], 128, 128, 8
        $region40: #{tpu_custom_call.1} parent=11 // pred_fallthru
          _
        // Predicated region
        $region41: #{tpu_custom_call.1} parent=11 // pred_check
          %p339 = pneg %p215
        $region42: #{tpu_custom_call.1} parent=11 // pred_check_branch
          %341 = sbr.rel (%p339) target = $region44
        $region43: #{tpu_custom_call.1} parent=11 // pred_region
          _
        $region44: #{tpu_custom_call.1} parent=11 // pred_fallthru
          _
        // Predicated region
        $region45: #{tpu_custom_call.1} parent=11 // pred_check
          %p342 = pneg %p236
        $region46: #{tpu_custom_call.1} parent=11 // pred_check_branch
          %344 = sbr.rel (%p342) target = $region48
        $region47: #{tpu_custom_call.1} parent=11 // pred_region
          _
        $region48: #{tpu_custom_call.1} parent=11 // pred_fallthru
          _
        // Predicated region
        $region49: #{tpu_custom_call.1} parent=11 // pred_check
          %p345 = pneg %p257
        $region50: #{tpu_custom_call.1} parent=11 // pred_check_branch
          %347 = sbr.rel (%p345) target = $region52
        $region51: #{tpu_custom_call.1} parent=11 // pred_region
          _
        $region52: #{tpu_custom_call.1} parent=11 // pred_fallthru
          _
      $region12: #{tpu_custom_call.1} parent=5 // pred_fallthru
        _
      %p348 = scmp.lt.s32.totalorder %s21, 2
      // Predicated region
      $region53: #{tpu_custom_call.1} parent=5 // pred_check
        %p349 = pneg %p348
      $region54: #{tpu_custom_call.1} parent=5 // pred_check_branch
        %351 = sbr.rel (%p349) target = $region56
      $region55: #{tpu_custom_call.1} parent=5 // pred_region
        // Predicated region
        $region57: #{tpu_custom_call.1} parent=55 // pred_check
          %p352 = pneg %p41
        $region58: #{tpu_custom_call.1} parent=55 // pred_check_branch
          %354 = sbr.rel (%p352) target = $region60
        $region59: #{tpu_custom_call.1} parent=55 // pred_region
          %s355 = sand.u32 %s31, 1
          %s356 = scalar_lea.sflag [#allocation4], %s355
          %s357 = sand.u32 %s31, 1
          %s358 = smul.addr %s357, 16
          %s359 = scalar_lea.vmem [#allocation3], %s358
          %s361 = ssub.s32 256, 256
          %362 = vsyncadd %s356, %s361
          %s363 = smul.addr %s21, 4
          %s364 = smul.addr %s363, 64
          %s365 = scalar_lea.hbm %s0, %s364
          %s367 = sshll.u32 %s359, 4
          %s368 = int_to_ptr.vmem [resolvable:$true] %s367
          %370 = dma.hbm_to_vmem [thread:$0]  %s365, 256, %s368, %s356
        $region60: #{tpu_custom_call.1} parent=55 // pred_fallthru
          _
      $region56: #{tpu_custom_call.1} parent=5 // pred_fallthru
        _
      %p371 = scmp.le.s32.totalorder 1, %s21
      %p372 = scmp.lt.s32.totalorder %s21, 3
      %p373 = pnand %p371, %p372
      %p374 = pneg %p373
      // Predicated region
      $region61: #{tpu_custom_call.1} parent=5 // pred_check
        _
      $region62: #{tpu_custom_call.1} parent=5 // pred_check_branch
        %376 = sbr.rel (%p373) target = $region64
      $region63: #{tpu_custom_call.1} parent=5 // pred_region
        %s377 = ssub.s32 %s21, 1
        %s378 = sand.u32 %s34, 1
        %s379 = scalar_lea.sflag [#allocation4], %s378
        %s380 = sand.u32 %s34, 1
        %s381 = smul.addr %s380, 16
        %s382 = scalar_lea.vmem [#allocation3], %s381
        // Predicated region
        $region65: #{tpu_custom_call.1} parent=63 // pred_check
          %p383 = pneg %p47
        $region66: #{tpu_custom_call.1} parent=63 // pred_check_branch
          %385 = sbr.rel (%p383) target = $region68
        $region67: #{tpu_custom_call.1} parent=63 // pred_region
          %386 = dma.done %s379, 256
        $region68: #{tpu_custom_call.1} parent=63 // pred_fallthru
          _
        // Predicated region
        $region69: #{tpu_custom_call.1} parent=63 // pred_check
          %p387 = pneg %p131
        $region70: #{tpu_custom_call.1} parent=63 // pred_check_branch
          %389 = sbr.rel (%p387) target = $region72
        $region71: #{tpu_custom_call.1} parent=63 // pred_region
          %390 = dma.done [#allocation6], 4608
        $region72: #{tpu_custom_call.1} parent=63 // pred_fallthru
          _
        // Predicated region
        $region73: #{tpu_custom_call.1} parent=63 // pred_check
          %p391 = pneg %p194
        $region74: #{tpu_custom_call.1} parent=63 // pred_check_branch
          %393 = sbr.rel (%p391) target = $region76
        $region75: #{tpu_custom_call.1} parent=63 // pred_region
          %394 = dma.done [#allocation6], 4608
        $region76: #{tpu_custom_call.1} parent=63 // pred_fallthru
          _
        %s395 = sand.u32 %s34, 1
        %s396 = scalar_lea.sflag [#allocation4], %s395
        %s397 = sand.u32 %s34, 1
        %s398 = smul.addr %s397, 16
        %s399 = scalar_lea.vmem [#allocation3], %s398
        %p400 = pneg %p47
        %p401 = pneg %p44
        %p402 = pneg %p68
        %p403 = pneg %p65
        %p404 = pneg %p89
        %p405 = pneg %p86
        %p406 = pneg %p110
        %p407 = pneg %p107
        %p408 = pneg %p131
        %p409 = pneg %p128
        %p410 = pneg %p152
        %p411 = pneg %p149
        %p412 = pneg %p173
        %p413 = pneg %p170
        %p414 = pneg %p194
        %p415 = pneg %p191
        %p416 = pneg %p215
        %p417 = pneg %p212
        %p418 = pneg %p236
        %p419 = pneg %p233
        %p420 = pneg %p257
        %p421 = pneg %p254
        %p422 = pneg %p283
        %p423 = pneg %p280
        %p424 = scmp.lt.s32.totalorder %s26, 1
        %s425 = scalar_select %p424, %s26, 1
        %s426 = smul.addr %s425, 4
        %s427 = smul.addr %s426, 8
        %s428 = scalar_lea.vmem %s11, %s427
        %p429 = scmp.lt.s32.totalorder %s26, 1
        %s430 = scalar_select %p429, %s26, 1
        %s431 = smul.addr %s430, 4
        %s432 = smul.addr %s431, 8
        %s433 = scalar_lea.vmem %s11, %s432
        %v434 = vld [vmem:[%s382] sm:$0xff]
        %v435 = vld [vmem:[%s382 + $0x8] sm:$0xff]
        %436 = vst [vmem:[#allocation2] sm:$0xf] 0.0
        %437 = vst [vmem:[#allocation2 + $0x28] sm:$0xf] 0.0
        %v440 = vcombine.high %v434, %v434
        %v441 = vcombine.high %v435, %v435
        %444 = vst [vmem:[#allocation2 + $0x8] sm:$0xf] %v434
        %445 = vst [vmem:[#allocation2 + $0x10] sm:$0xf] %v440
        %446 = vst [vmem:[#allocation2 + $0x18] sm:$0xf] %v435
        %447 = vst [vmem:[#allocation2 + $0x20] sm:$0xf] %v441
        %v448 = vld [vmem:[#allocation2] sm:$0xf]
        %v449 = vld [vmem:[#allocation2 + $0x8] sm:$0xf]
        %v450 = vld [vmem:[#allocation2 + $0x10] sm:$0xf]
        %v451 = vld [vmem:[#allocation2 + $0x18] sm:$0xf]
        %v452 = vld [vmem:[#allocation2 + $0x20] sm:$0xf]
        %v453 = vld [vmem:[#allocation2 + $0x28] sm:$0xf]
        %v454 = vlaneseq
        %v455 = vand.u32 %v454, 127
        %v456 = vadd.s32 %v455, 128
        %v457 = vadd.s32 %v455, 256
        %v458 = vadd.s32 %v455, 384
        %v459 = vadd.s32 %v455, 512
        %v460 = vadd.s32 %v455, 640
        %v461 = vand.u32 %v455, 63
        %v462 = vand.u32 %v456, 63
        %v463 = vand.u32 %v457, 63
        %v464 = vand.u32 %v458, 63
        %v465 = vand.u32 %v459, 63
        %v466 = vand.u32 %v460, 63
        %vm467 = vcmp.eq.s32.totalorder %v461, 63
        %vm468 = vcmp.eq.s32.totalorder %v462, 63
        %vm469 = vcmp.eq.s32.totalorder %v463, 63
        %vm470 = vcmp.eq.s32.totalorder %v464, 63
        %vm471 = vcmp.eq.s32.totalorder %v465, 63
        %vm472 = vcmp.eq.s32.totalorder %v466, 63
        %v473 = vsel %vm467, 1, 0
        %v474 = vsel %vm468, 1, 0
        %v475 = vsel %vm469, 1, 0
        %v476 = vsel %vm470, 1, 0
        %v477 = vsel %vm471, 1, 0
        %v478 = vsel %vm472, 1, 0
        %vm479 = vcmp.eq.s32.totalorder %v473, 1
        %vm480 = vcmp.eq.s32.totalorder %v474, 1
        %vm481 = vcmp.eq.s32.totalorder %v475, 1
        %vm482 = vcmp.eq.s32.totalorder %v476, 1
        %vm483 = vcmp.eq.s32.totalorder %v477, 1
        %vm484 = vcmp.eq.s32.totalorder %v478, 1
        %v485 = vsel %vm479, 0.0, %v448
        %v486 = vsel %vm480, 0.0, %v449
        %v487 = vsel %vm481, 0.0, %v450
        %v488 = vsel %vm482, 0.0, %v451
        %v489 = vsel %vm483, 0.0, %v452
        %v490 = vsel %vm484, 0.0, %v453
        %vm491 = vcmp.eq.s32.totalorder %v461, 0
        %vm492 = vcmp.eq.s32.totalorder %v462, 0
        %vm493 = vcmp.eq.s32.totalorder %v463, 0
        %vm494 = vcmp.eq.s32.totalorder %v464, 0
        %vm495 = vcmp.eq.s32.totalorder %v465, 0
        %vm496 = vcmp.eq.s32.totalorder %v466, 0
        %v497 = vsel %vm491, 1, 0
        %v498 = vsel %vm492, 1, 0
        %v499 = vsel %vm493, 1, 0
        %v500 = vsel %vm494, 1, 0
        %v501 = vsel %vm495, 1, 0
        %v502 = vsel %vm496, 1, 0
        %vm503 = vcmp.eq.s32.totalorder %v497, 1
        %vm504 = vcmp.eq.s32.totalorder %v498, 1
        %vm505 = vcmp.eq.s32.totalorder %v499, 1
        %vm506 = vcmp.eq.s32.totalorder %v500, 1
        %vm507 = vcmp.eq.s32.totalorder %v501, 1
        %vm508 = vcmp.eq.s32.totalorder %v502, 1
        %v509 = vsel %vm503, 0.0, %v448
        %v510 = vsel %vm504, 0.0, %v449
        %v511 = vsel %vm505, 0.0, %v450
        %v512 = vsel %vm506, 0.0, %v451
        %v513 = vsel %vm507, 0.0, %v452
        %v514 = vsel %vm508, 0.0, %v453
        %v515 = vld [vmem:[%s1] sm:$0xff]
        %v516 = vld [vmem:[%s1 + $0x8] sm:$0xff]
        %v517 = vld [vmem:[%s1 + $0x10] sm:$0xff]
        %v518 = vld [vmem:[%s1 + $0x18] sm:$0xff]
        %s519 = scalar_lea.vmem %s1, 32
        %v520 = vld [vmem:[%s519] sm:$0xff]
        %v521 = vld [vmem:[%s519 + $0x8] sm:$0xff]
        %v522 = vld [vmem:[%s519 + $0x10] sm:$0xff]
        %v523 = vld [vmem:[%s519 + $0x18] sm:$0xff]
        %529 = vrot.lane.b32.xlu0 %v448, 64
        %v530 = vpop.permute.xlu0 %529
        %531 = vrot.lane.b32.xlu0 %v449, 64
        %v532 = vpop.permute.xlu0 %531
        %533 = vrot.lane.b32.xlu0 %v450, 64
        %v534 = vpop.permute.xlu0 %533
        %535 = vrot.lane.b32.xlu0 %v451, 64
        %v536 = vpop.permute.xlu0 %535
        %537 = vrot.lane.b32.xlu0 %v452, 64
        %v538 = vpop.permute.xlu0 %537
        %vm539 = vcmask 523264
        %v540 = vsel %vm539, %v530, %v532
        %v541 = vsel %vm539, %v532, %v534
        %v542 = vsel %vm539, %v534, %v536
        %v543 = vsel %vm539, %v536, %v538
        %vm544 = vcmask 31744
        %v546 = vsel %vm544, %v520, 0
        %v549 = vsel %vm544, %v521, 0
        %v552 = vsel %vm544, %v522, 0
        %v555 = vsel %vm544, %v523, 0
        %vm557 = vcmask 1043456
        %v558 = vsel %vm557, %v540, 0
        %v560 = vsel %vm557, %v541, 0
        %v562 = vsel %vm557, %v542, 0
        %v564 = vsel %vm557, %v543, 0
        %566 = vmatprep.subr.mxu0 0.0
        %567 = vmatpush1.msra.mxu0 0.0
        %568 = vmatprep.subr.mxu0 0.0
        %569 = vmatpush1.msra.mxu0 0.0
        %570 = vmatprep.subr.mxu0 0.0
        %571 = vmatpush1.msra.mxu0 0.0
        %572 = vmatprep.subr.mxu0 0.0
        %573 = vmatpush1.msra.mxu0 0.0
        %574 = vmatprep.subr.mxu0 0.0
        %575 = vmatpush1.msra.mxu0 0.0
        %576 = vmatprep.subr.mxu0 0.0
        %577 = vmatpush1.msra.mxu0 0.0
        %578 = vmatprep.subr.mxu0 0.0
        %579 = vmatpush1.msra.mxu0 0.0
        %580 = vmatprep.subr.mxu0 0.0
        %581 = vmatpush1.msra.mxu0 0.0
        %582 = vmatprep.subr.mxu0 0.0
        %583 = vmatpush1.msra.mxu0 0.0
        %584 = vmatprep.subr.mxu0 0.0
        %585 = vmatpush1.msra.mxu0 0.0
        %586 = vmatprep.subr.mxu0 0.0
        %587 = vmatpush1.msra.mxu0 0.0
        %588 = vmatprep.subr.mxu0 0.0
        %589 = vmatpush1.msra.mxu0 0.0
        %590 = vmatprep.subr.mxu0 0.0
        %591 = vmatpush1.msra.mxu0 0.0
        %592 = vmatprep.subr.mxu0 0.0
        %593 = vmatpush1.msra.mxu0 0.0
        %594 = vmatprep.subr.mxu0 0.0
        %595 = vmatpush1.msra.mxu0 0.0
        %596 = vmatprep.subr.mxu0 %v560
        %597 = vmatpush1.msra.mxu0 %v558
        %598 = vmatprep.subr.mxu0 0.0
        %599 = vmatpush2.msra.mxu0 0.0
        %600 = vmatprep.subr.mxu0 0.0
        %601 = vmatpush2.msra.mxu0 0.0
        %602 = vmatprep.subr.mxu0 0.0
        %603 = vmatpush2.msra.mxu0 0.0
        %604 = vmatprep.subr.mxu0 0.0
        %605 = vmatpush2.msra.mxu0 0.0
        %606 = vmatprep.subr.mxu0 0.0
        %607 = vmatpush2.msra.mxu0 0.0
        %608 = vmatprep.subr.mxu0 0.0
        %609 = vmatpush2.msra.mxu0 0.0
        %610 = vmatprep.subr.mxu0 0.0
        %611 = vmatpush2.msra.mxu0 0.0
        %612 = vmatprep.subr.mxu0 0.0
        %613 = vmatpush2.msra.mxu0 0.0
        %614 = vmatprep.subr.mxu0 0.0
        %615 = vmatpush2.msra.mxu0 0.0
        %616 = vmatprep.subr.mxu0 0.0
        %617 = vmatpush2.msra.mxu0 0.0
        %618 = vmatprep.subr.mxu0 0.0
        %619 = vmatpush2.msra.mxu0 0.0
        %620 = vmatprep.subr.mxu0 0.0
        %621 = vmatpush2.msra.mxu0 0.0
        %622 = vmatprep.subr.mxu0 0.0
        %623 = vmatpush2.msra.mxu0 0.0
        %624 = vmatprep.subr.mxu0 0.0
        %625 = vmatpush2.msra.mxu0 0.0
        %626 = vmatprep.subr.mxu0 0.0
        %627 = vmatpush2.msra.mxu0 0.0
        %628 = vmatprep.subr.mxu0 0.0
        %629 = vmatpush2.msra.mxu0 0.0
        %630 = vmatprep.mubr.f32.mxu0 0.0
        %631 = vmatmul.mubr.f32.gmra.mxu0 %v546
        %v632 = vpop.f32.mrf.mxu0
        %v633 = vadd.f32 0.0, %v632
        %v634 = vpop.f32.mrf.mxu0
        %v635 = vadd.f32 0.0, %v634
        %636 = vmatprep.mubr.f32.mxu0 0.0
        %637 = vmatmul.mubr.f32.gmra.mxu0 %v549
        %v638 = vpop.f32.mrf.mxu0
        %v639 = vadd.f32 0.0, %v638
        %v640 = vpop.f32.mrf.mxu0
        %v641 = vadd.f32 0.0, %v640
        %642 = vmatprep.mubr.f32.mxu0 0.0
        %643 = vmatmul.mubr.f32.gmra.mxu0 %v552
        %v644 = vpop.f32.mrf.mxu0
        %v645 = vadd.f32 0.0, %v644
        %v646 = vpop.f32.mrf.mxu0
        %v647 = vadd.f32 0.0, %v646
        %648 = vmatprep.mubr.f32.mxu0 0.0
        %649 = vmatmul.mubr.f32.gmra.mxu0 %v555
        %v650 = vpop.f32.mrf.mxu0
        %v651 = vadd.f32 0.0, %v650
        %v652 = vpop.f32.mrf.mxu0
        %v653 = vadd.f32 0.0, %v652
        %654 = vdwg.mxu0
        %655 = vmatprep.subr.mxu0 0.0
        %656 = vmatpush1.msra.mxu0 0.0
        %657 = vmatprep.subr.mxu0 0.0
        %658 = vmatpush1.msra.mxu0 0.0
        %659 = vmatprep.subr.mxu0 0.0
        %660 = vmatpush1.msra.mxu0 0.0
        %661 = vmatprep.subr.mxu0 0.0
        %662 = vmatpush1.msra.mxu0 0.0
        %663 = vmatprep.subr.mxu0 0.0
        %664 = vmatpush1.msra.mxu0 0.0
        %665 = vmatprep.subr.mxu0 0.0
        %666 = vmatpush1.msra.mxu0 0.0
        %667 = vmatprep.subr.mxu0 0.0
        %668 = vmatpush1.msra.mxu0 0.0
        %669 = vmatprep.subr.mxu0 0.0
        %670 = vmatpush1.msra.mxu0 0.0
        %671 = vmatprep.subr.mxu0 0.0
        %672 = vmatpush1.msra.mxu0 0.0
        %673 = vmatprep.subr.mxu0 0.0
        %674 = vmatpush1.msra.mxu0 0.0
        %675 = vmatprep.subr.mxu0 0.0
        %676 = vmatpush1.msra.mxu0 0.0
        %677 = vmatprep.subr.mxu0 0.0
        %678 = vmatpush1.msra.mxu0 0.0
        %679 = vmatprep.subr.mxu0 0.0
        %680 = vmatpush1.msra.mxu0 0.0
        %681 = vmatprep.subr.mxu0 0.0
        %682 = vmatpush1.msra.mxu0 0.0
        %683 = vmatprep.subr.mxu0 0.0
        %684 = vmatpush1.msra.mxu0 0.0
        %685 = vmatprep.subr.mxu0 %v564
        %686 = vmatpush1.msra.mxu0 %v562
        %687 = vmatprep.subr.mxu0 0.0
        %688 = vmatpush2.msra.mxu0 0.0
        %689 = vmatprep.subr.mxu0 0.0
        %690 = vmatpush2.msra.mxu0 0.0
        %691 = vmatprep.subr.mxu0 0.0
        %692 = vmatpush2.msra.mxu0 0.0
        %693 = vmatprep.subr.mxu0 0.0
        %694 = vmatpush2.msra.mxu0 0.0
        %695 = vmatprep.subr.mxu0 0.0
        %696 = vmatpush2.msra.mxu0 0.0
        %697 = vmatprep.subr.mxu0 0.0
        %698 = vmatpush2.msra.mxu0 0.0
        %699 = vmatprep.subr.mxu0 0.0
        %700 = vmatpush2.msra.mxu0 0.0
        %701 = vmatprep.subr.mxu0 0.0
        %702 = vmatpush2.msra.mxu0 0.0
        %703 = vmatprep.subr.mxu0 0.0
        %704 = vmatpush2.msra.mxu0 0.0
        %705 = vmatprep.subr.mxu0 0.0
        %706 = vmatpush2.msra.mxu0 0.0
        %707 = vmatprep.subr.mxu0 0.0
        %708 = vmatpush2.msra.mxu0 0.0
        %709 = vmatprep.subr.mxu0 0.0
        %710 = vmatpush2.msra.mxu0 0.0
        %711 = vmatprep.subr.mxu0 0.0
        %712 = vmatpush2.msra.mxu0 0.0
        %713 = vmatprep.subr.mxu0 0.0
        %714 = vmatpush2.msra.mxu0 0.0
        %715 = vmatprep.subr.mxu0 0.0
        %716 = vmatpush2.msra.mxu0 0.0
        %717 = vmatprep.subr.mxu0 0.0
        %718 = vmatpush2.msra.mxu0 0.0
        %719 = vmatprep.mubr.f32.mxu0 0.0
        %720 = vmatmul.mubr.f32.gmra.mxu0 %v546
        %v721 = vpop.f32.mrf.mxu0
        %v722 = vadd.f32 0.0, %v721
        %v723 = vpop.f32.mrf.mxu0
        %v724 = vadd.f32 0.0, %v723
        %725 = vmatprep.mubr.f32.mxu0 0.0
        %726 = vmatmul.mubr.f32.gmra.mxu0 %v549
        %v727 = vpop.f32.mrf.mxu0
        %v728 = vadd.f32 0.0, %v727
        %v729 = vpop.f32.mrf.mxu0
        %v730 = vadd.f32 0.0, %v729
        %731 = vmatprep.mubr.f32.mxu0 0.0
        %732 = vmatmul.mubr.f32.gmra.mxu0 %v552
        %v733 = vpop.f32.mrf.mxu0
        %v734 = vadd.f32 0.0, %v733
        %v735 = vpop.f32.mrf.mxu0
        %v736 = vadd.f32 0.0, %v735
        %737 = vmatprep.mubr.f32.mxu0 0.0
        %738 = vmatmul.mubr.f32.gmra.mxu0 %v555
        %v739 = vpop.f32.mrf.mxu0
        %v740 = vadd.f32 0.0, %v739
        %v741 = vpop.f32.mrf.mxu0
        %v742 = vadd.f32 0.0, %v741
        %743 = vdwg.mxu0
        %749 = vrot.lane.b32.xlu0 %v485, 65
        %v750 = vpop.permute.xlu0 %749
        %751 = vrot.lane.b32.xlu0 %v486, 65
        %v752 = vpop.permute.xlu0 %751
        %753 = vrot.lane.b32.xlu0 %v487, 65
        %v754 = vpop.permute.xlu0 %753
        %755 = vrot.lane.b32.xlu0 %v488, 65
        %v756 = vpop.permute.xlu0 %755
        %757 = vrot.lane.b32.xlu0 %v489, 65
        %v758 = vpop.permute.xlu0 %757
        %vm759 = vcmask 531456
        %v760 = vsel %vm759, %v750, %v752
        %v761 = vsel %vm759, %v752, %v754
        %v762 = vsel %vm759, %v754, %v756
        %v763 = vsel %vm759, %v756, %v758
        %v765 = vsel %vm544, %v515, 0
        %v768 = vsel %vm544, %v516, 0
        %v771 = vsel %vm544, %v517, 0
        %v774 = vsel %vm544, %v518, 0
        %v776 = vsel %vm557, %v760, 0
        %v778 = vsel %vm557, %v761, 0
        %v780 = vsel %vm557, %v762, 0
        %v782 = vsel %vm557, %v763, 0
        %784 = vmatprep.subr.mxu0 0.0
        %785 = vmatpush1.msra.mxu0 0.0
        %786 = vmatprep.subr.mxu0 0.0
        %787 = vmatpush1.msra.mxu0 0.0
        %788 = vmatprep.subr.mxu0 0.0
        %789 = vmatpush1.msra.mxu0 0.0
        %790 = vmatprep.subr.mxu0 0.0
        %791 = vmatpush1.msra.mxu0 0.0
        %792 = vmatprep.subr.mxu0 0.0
        %793 = vmatpush1.msra.mxu0 0.0
        %794 = vmatprep.subr.mxu0 0.0
        %795 = vmatpush1.msra.mxu0 0.0
        %796 = vmatprep.subr.mxu0 0.0
        %797 = vmatpush1.msra.mxu0 0.0
        %798 = vmatprep.subr.mxu0 0.0
        %799 = vmatpush1.msra.mxu0 0.0
        %800 = vmatprep.subr.mxu0 0.0
        %801 = vmatpush1.msra.mxu0 0.0
        %802 = vmatprep.subr.mxu0 0.0
        %803 = vmatpush1.msra.mxu0 0.0
        %804 = vmatprep.subr.mxu0 0.0
        %805 = vmatpush1.msra.mxu0 0.0
        %806 = vmatprep.subr.mxu0 0.0
        %807 = vmatpush1.msra.mxu0 0.0
        %808 = vmatprep.subr.mxu0 0.0
        %809 = vmatpush1.msra.mxu0 0.0
        %810 = vmatprep.subr.mxu0 0.0
        %811 = vmatpush1.msra.mxu0 0.0
        %812 = vmatprep.subr.mxu0 0.0
        %813 = vmatpush1.msra.mxu0 0.0
        %814 = vmatprep.subr.mxu0 %v778
        %815 = vmatpush1.msra.mxu0 %v776
        %816 = vmatprep.subr.mxu0 0.0
        %817 = vmatpush2.msra.mxu0 0.0
        %818 = vmatprep.subr.mxu0 0.0
        %819 = vmatpush2.msra.mxu0 0.0
        %820 = vmatprep.subr.mxu0 0.0
        %821 = vmatpush2.msra.mxu0 0.0
        %822 = vmatprep.subr.mxu0 0.0
        %823 = vmatpush2.msra.mxu0 0.0
        %824 = vmatprep.subr.mxu0 0.0
        %825 = vmatpush2.msra.mxu0 0.0
        %826 = vmatprep.subr.mxu0 0.0
        %827 = vmatpush2.msra.mxu0 0.0
        %828 = vmatprep.subr.mxu0 0.0
        %829 = vmatpush2.msra.mxu0 0.0
        %830 = vmatprep.subr.mxu0 0.0
        %831 = vmatpush2.msra.mxu0 0.0
        %832 = vmatprep.subr.mxu0 0.0
        %833 = vmatpush2.msra.mxu0 0.0
        %834 = vmatprep.subr.mxu0 0.0
        %835 = vmatpush2.msra.mxu0 0.0
        %836 = vmatprep.subr.mxu0 0.0
        %837 = vmatpush2.msra.mxu0 0.0
        %838 = vmatprep.subr.mxu0 0.0
        %839 = vmatpush2.msra.mxu0 0.0
        %840 = vmatprep.subr.mxu0 0.0
        %841 = vmatpush2.msra.mxu0 0.0
        %842 = vmatprep.subr.mxu0 0.0
        %843 = vmatpush2.msra.mxu0 0.0
        %844 = vmatprep.subr.mxu0 0.0
        %845 = vmatpush2.msra.mxu0 0.0
        %846 = vmatprep.subr.mxu0 0.0
        %847 = vmatpush2.msra.mxu0 0.0
        %848 = vmatprep.mubr.f32.mxu0 0.0
        %849 = vmatmul.mubr.f32.gmra.mxu0 %v765
        %v850 = vpop.f32.mrf.mxu0
        %v851 = vadd.f32 %v633, %v850
        %v852 = vpop.f32.mrf.mxu0
        %v853 = vadd.f32 %v635, %v852
        %854 = vmatprep.mubr.f32.mxu0 0.0
        %855 = vmatmul.mubr.f32.gmra.mxu0 %v768
        %v856 = vpop.f32.mrf.mxu0
        %v857 = vadd.f32 %v639, %v856
        %v858 = vpop.f32.mrf.mxu0
        %v859 = vadd.f32 %v641, %v858
        %860 = vmatprep.mubr.f32.mxu0 0.0
        %861 = vmatmul.mubr.f32.gmra.mxu0 %v771
        %v862 = vpop.f32.mrf.mxu0
        %v863 = vadd.f32 %v645, %v862
        %v864 = vpop.f32.mrf.mxu0
        %v865 = vadd.f32 %v647, %v864
        %866 = vmatprep.mubr.f32.mxu0 0.0
        %867 = vmatmul.mubr.f32.gmra.mxu0 %v774
        %v868 = vpop.f32.mrf.mxu0
        %v869 = vadd.f32 %v651, %v868
        %v870 = vpop.f32.mrf.mxu0
        %v871 = vadd.f32 %v653, %v870
        %872 = vdwg.mxu0
        %873 = vmatprep.subr.mxu0 0.0
        %874 = vmatpush1.msra.mxu0 0.0
        %875 = vmatprep.subr.mxu0 0.0
        %876 = vmatpush1.msra.mxu0 0.0
        %877 = vmatprep.subr.mxu0 0.0
        %878 = vmatpush1.msra.mxu0 0.0
        %879 = vmatprep.subr.mxu0 0.0
        %880 = vmatpush1.msra.mxu0 0.0
        %881 = vmatprep.subr.mxu0 0.0
        %882 = vmatpush1.msra.mxu0 0.0
        %883 = vmatprep.subr.mxu0 0.0
        %884 = vmatpush1.msra.mxu0 0.0
        %885 = vmatprep.subr.mxu0 0.0
        %886 = vmatpush1.msra.mxu0 0.0
        %887 = vmatprep.subr.mxu0 0.0
        %888 = vmatpush1.msra.mxu0 0.0
        %889 = vmatprep.subr.mxu0 0.0
        %890 = vmatpush1.msra.mxu0 0.0
        %891 = vmatprep.subr.mxu0 0.0
        %892 = vmatpush1.msra.mxu0 0.0
        %893 = vmatprep.subr.mxu0 0.0
        %894 = vmatpush1.msra.mxu0 0.0
        %895 = vmatprep.subr.mxu0 0.0
        %896 = vmatpush1.msra.mxu0 0.0
        %897 = vmatprep.subr.mxu0 0.0
        %898 = vmatpush1.msra.mxu0 0.0
        %899 = vmatprep.subr.mxu0 0.0
        %900 = vmatpush1.msra.mxu0 0.0
        %901 = vmatprep.subr.mxu0 0.0
        %902 = vmatpush1.msra.mxu0 0.0
        %903 = vmatprep.subr.mxu0 %v782
        %904 = vmatpush1.msra.mxu0 %v780
        %905 = vmatprep.subr.mxu0 0.0
        %906 = vmatpush2.msra.mxu0 0.0
        %907 = vmatprep.subr.mxu0 0.0
        %908 = vmatpush2.msra.mxu0 0.0
        %909 = vmatprep.subr.mxu0 0.0
        %910 = vmatpush2.msra.mxu0 0.0
        %911 = vmatprep.subr.mxu0 0.0
        %912 = vmatpush2.msra.mxu0 0.0
        %913 = vmatprep.subr.mxu0 0.0
        %914 = vmatpush2.msra.mxu0 0.0
        %915 = vmatprep.subr.mxu0 0.0
        %916 = vmatpush2.msra.mxu0 0.0
        %917 = vmatprep.subr.mxu0 0.0
        %918 = vmatpush2.msra.mxu0 0.0
        %919 = vmatprep.subr.mxu0 0.0
        %920 = vmatpush2.msra.mxu0 0.0
        %921 = vmatprep.subr.mxu0 0.0
        %922 = vmatpush2.msra.mxu0 0.0
        %923 = vmatprep.subr.mxu0 0.0
        %924 = vmatpush2.msra.mxu0 0.0
        %925 = vmatprep.subr.mxu0 0.0
        %926 = vmatpush2.msra.mxu0 0.0
        %927 = vmatprep.subr.mxu0 0.0
        %928 = vmatpush2.msra.mxu0 0.0
        %929 = vmatprep.subr.mxu0 0.0
        %930 = vmatpush2.msra.mxu0 0.0
        %931 = vmatprep.subr.mxu0 0.0
        %932 = vmatpush2.msra.mxu0 0.0
        %933 = vmatprep.subr.mxu0 0.0
        %934 = vmatpush2.msra.mxu0 0.0
        %935 = vmatprep.subr.mxu0 0.0
        %936 = vmatpush2.msra.mxu0 0.0
        %937 = vmatprep.mubr.f32.mxu0 0.0
        %938 = vmatmul.mubr.f32.gmra.mxu0 %v765
        %v939 = vpop.f32.mrf.mxu0
        %v940 = vadd.f32 %v722, %v939
        %v941 = vpop.f32.mrf.mxu0
        %v942 = vadd.f32 %v724, %v941
        %943 = vmatprep.mubr.f32.mxu0 0.0
        %944 = vmatmul.mubr.f32.gmra.mxu0 %v768
        %v945 = vpop.f32.mrf.mxu0
        %v946 = vadd.f32 %v728, %v945
        %v947 = vpop.f32.mrf.mxu0
        %v948 = vadd.f32 %v730, %v947
        %949 = vmatprep.mubr.f32.mxu0 0.0
        %950 = vmatmul.mubr.f32.gmra.mxu0 %v771
        %v951 = vpop.f32.mrf.mxu0
        %v952 = vadd.f32 %v734, %v951
        %v953 = vpop.f32.mrf.mxu0
        %v954 = vadd.f32 %v736, %v953
        %955 = vmatprep.mubr.f32.mxu0 0.0
        %956 = vmatmul.mubr.f32.gmra.mxu0 %v774
        %v957 = vpop.f32.mrf.mxu0
        %v958 = vadd.f32 %v740, %v957
        %v959 = vpop.f32.mrf.mxu0
        %v960 = vadd.f32 %v742, %v959
        %961 = vdwg.mxu0
        %s962 = scalar_lea.vmem %s1, 64
        %v963 = vld [vmem:[%s962] sm:$0xff]
        %v964 = vld [vmem:[%s962 + $0x8] sm:$0xff]
        %v965 = vld [vmem:[%s962 + $0x10] sm:$0xff]
        %v966 = vld [vmem:[%s962 + $0x18] sm:$0xff]
        %972 = vrot.lane.b32.xlu0 %v509, 63
        %v973 = vpop.permute.xlu0 %972
        %974 = vrot.lane.b32.xlu0 %v510, 63
        %v975 = vpop.permute.xlu0 %974
        %976 = vrot.lane.b32.xlu0 %v511, 63
        %v977 = vpop.permute.xlu0 %976
        %978 = vrot.lane.b32.xlu0 %v512, 63
        %v979 = vpop.permute.xlu0 %978
        %980 = vrot.lane.b32.xlu0 %v513, 63
        %v981 = vpop.permute.xlu0 %980
        %vm982 = vcmask 515072
        %v983 = vsel %vm982, %v973, %v975
        %v984 = vsel %vm982, %v975, %v977
        %v985 = vsel %vm982, %v977, %v979
        %v986 = vsel %vm982, %v979, %v981
        %v988 = vsel %vm544, %v963, 0
        %v991 = vsel %vm544, %v964, 0
        %v994 = vsel %vm544, %v965, 0
        %v997 = vsel %vm544, %v966, 0
        %v999 = vsel %vm557, %v983, 0
        %v1001 = vsel %vm557, %v984, 0
        %v1003 = vsel %vm557, %v985, 0
        %v1005 = vsel %vm557, %v986, 0
        %1007 = vmatprep.subr.mxu0 0.0
        %1008 = vmatpush1.msra.mxu0 0.0
        %1009 = vmatprep.subr.mxu0 0.0
        %1010 = vmatpush1.msra.mxu0 0.0
        %1011 = vmatprep.subr.mxu0 0.0
        %1012 = vmatpush1.msra.mxu0 0.0
        %1013 = vmatprep.subr.mxu0 0.0
        %1014 = vmatpush1.msra.mxu0 0.0
        %1015 = vmatprep.subr.mxu0 0.0
        %1016 = vmatpush1.msra.mxu0 0.0
        %1017 = vmatprep.subr.mxu0 0.0
        %1018 = vmatpush1.msra.mxu0 0.0
        %1019 = vmatprep.subr.mxu0 0.0
        %1020 = vmatpush1.msra.mxu0 0.0
        %1021 = vmatprep.subr.mxu0 0.0
        %1022 = vmatpush1.msra.mxu0 0.0
        %1023 = vmatprep.subr.mxu0 0.0
        %1024 = vmatpush1.msra.mxu0 0.0
        %1025 = vmatprep.subr.mxu0 0.0
        %1026 = vmatpush1.msra.mxu0 0.0
        %1027 = vmatprep.subr.mxu0 0.0
        %1028 = vmatpush1.msra.mxu0 0.0
        %1029 = vmatprep.subr.mxu0 0.0
        %1030 = vmatpush1.msra.mxu0 0.0
        %1031 = vmatprep.subr.mxu0 0.0
        %1032 = vmatpush1.msra.mxu0 0.0
        %1033 = vmatprep.subr.mxu0 0.0
        %1034 = vmatpush1.msra.mxu0 0.0
        %1035 = vmatprep.subr.mxu0 0.0
        %1036 = vmatpush1.msra.mxu0 0.0
        %1037 = vmatprep.subr.mxu0 %v1001
        %1038 = vmatpush1.msra.mxu0 %v999
        %1039 = vmatprep.subr.mxu0 0.0
        %1040 = vmatpush2.msra.mxu0 0.0
        %1041 = vmatprep.subr.mxu0 0.0
        %1042 = vmatpush2.msra.mxu0 0.0
        %1043 = vmatprep.subr.mxu0 0.0
        %1044 = vmatpush2.msra.mxu0 0.0
        %1045 = vmatprep.subr.mxu0 0.0
        %1046 = vmatpush2.msra.mxu0 0.0
        %1047 = vmatprep.subr.mxu0 0.0
        %1048 = vmatpush2.msra.mxu0 0.0
        %1049 = vmatprep.subr.mxu0 0.0
        %1050 = vmatpush2.msra.mxu0 0.0
        %1051 = vmatprep.subr.mxu0 0.0
        %1052 = vmatpush2.msra.mxu0 0.0
        %1053 = vmatprep.subr.mxu0 0.0
        %1054 = vmatpush2.msra.mxu0 0.0
        %1055 = vmatprep.subr.mxu0 0.0
        %1056 = vmatpush2.msra.mxu0 0.0
        %1057 = vmatprep.subr.mxu0 0.0
        %1058 = vmatpush2.msra.mxu0 0.0
        %1059 = vmatprep.subr.mxu0 0.0
        %1060 = vmatpush2.msra.mxu0 0.0
        %1061 = vmatprep.subr.mxu0 0.0
        %1062 = vmatpush2.msra.mxu0 0.0
        %1063 = vmatprep.subr.mxu0 0.0
        %1064 = vmatpush2.msra.mxu0 0.0
        %1065 = vmatprep.subr.mxu0 0.0
        %1066 = vmatpush2.msra.mxu0 0.0
        %1067 = vmatprep.subr.mxu0 0.0
        %1068 = vmatpush2.msra.mxu0 0.0
        %1069 = vmatprep.subr.mxu0 0.0
        %1070 = vmatpush2.msra.mxu0 0.0
        %1071 = vmatprep.mubr.f32.mxu0 0.0
        %1072 = vmatmul.mubr.f32.gmra.mxu0 %v988
        %v1073 = vpop.f32.mrf.mxu0
        %v1074 = vadd.f32 0.0, %v1073
        %v1075 = vpop.f32.mrf.mxu0
        %v1076 = vadd.f32 0.0, %v1075
        %1077 = vmatprep.mubr.f32.mxu0 0.0
        %1078 = vmatmul.mubr.f32.gmra.mxu0 %v991
        %v1079 = vpop.f32.mrf.mxu0
        %v1080 = vadd.f32 0.0, %v1079
        %v1081 = vpop.f32.mrf.mxu0
        %v1082 = vadd.f32 0.0, %v1081
        %1083 = vmatprep.mubr.f32.mxu0 0.0
        %1084 = vmatmul.mubr.f32.gmra.mxu0 %v994
        %v1085 = vpop.f32.mrf.mxu0
        %v1086 = vadd.f32 0.0, %v1085
        %v1087 = vpop.f32.mrf.mxu0
        %v1088 = vadd.f32 0.0, %v1087
        %1089 = vmatprep.mubr.f32.mxu0 0.0
        %1090 = vmatmul.mubr.f32.gmra.mxu0 %v997
        %v1091 = vpop.f32.mrf.mxu0
        %v1092 = vadd.f32 0.0, %v1091
        %v1093 = vpop.f32.mrf.mxu0
        %v1094 = vadd.f32 0.0, %v1093
        %1095 = vdwg.mxu0
        %1096 = vmatprep.subr.mxu0 0.0
        %1097 = vmatpush1.msra.mxu0 0.0
        %1098 = vmatprep.subr.mxu0 0.0
        %1099 = vmatpush1.msra.mxu0 0.0
        %1100 = vmatprep.subr.mxu0 0.0
        %1101 = vmatpush1.msra.mxu0 0.0
        %1102 = vmatprep.subr.mxu0 0.0
        %1103 = vmatpush1.msra.mxu0 0.0
        %1104 = vmatprep.subr.mxu0 0.0
        %1105 = vmatpush1.msra.mxu0 0.0
        %1106 = vmatprep.subr.mxu0 0.0
        %1107 = vmatpush1.msra.mxu0 0.0
        %1108 = vmatprep.subr.mxu0 0.0
        %1109 = vmatpush1.msra.mxu0 0.0
        %1110 = vmatprep.subr.mxu0 0.0
        %1111 = vmatpush1.msra.mxu0 0.0
        %1112 = vmatprep.subr.mxu0 0.0
        %1113 = vmatpush1.msra.mxu0 0.0
        %1114 = vmatprep.subr.mxu0 0.0
        %1115 = vmatpush1.msra.mxu0 0.0
        %1116 = vmatprep.subr.mxu0 0.0
        %1117 = vmatpush1.msra.mxu0 0.0
        %1118 = vmatprep.subr.mxu0 0.0
        %1119 = vmatpush1.msra.mxu0 0.0
        %1120 = vmatprep.subr.mxu0 0.0
        %1121 = vmatpush1.msra.mxu0 0.0
        %1122 = vmatprep.subr.mxu0 0.0
        %1123 = vmatpush1.msra.mxu0 0.0
        %1124 = vmatprep.subr.mxu0 0.0
        %1125 = vmatpush1.msra.mxu0 0.0
        %1126 = vmatprep.subr.mxu0 %v1005
        %1127 = vmatpush1.msra.mxu0 %v1003
        %1128 = vmatprep.subr.mxu0 0.0
        %1129 = vmatpush2.msra.mxu0 0.0
        %1130 = vmatprep.subr.mxu0 0.0
        %1131 = vmatpush2.msra.mxu0 0.0
        %1132 = vmatprep.subr.mxu0 0.0
        %1133 = vmatpush2.msra.mxu0 0.0
        %1134 = vmatprep.subr.mxu0 0.0
        %1135 = vmatpush2.msra.mxu0 0.0
        %1136 = vmatprep.subr.mxu0 0.0
        %1137 = vmatpush2.msra.mxu0 0.0
        %1138 = vmatprep.subr.mxu0 0.0
        %1139 = vmatpush2.msra.mxu0 0.0
        %1140 = vmatprep.subr.mxu0 0.0
        %1141 = vmatpush2.msra.mxu0 0.0
        %1142 = vmatprep.subr.mxu0 0.0
        %1143 = vmatpush2.msra.mxu0 0.0
        %1144 = vmatprep.subr.mxu0 0.0
        %1145 = vmatpush2.msra.mxu0 0.0
        %1146 = vmatprep.subr.mxu0 0.0
        %1147 = vmatpush2.msra.mxu0 0.0
        %1148 = vmatprep.subr.mxu0 0.0
        %1149 = vmatpush2.msra.mxu0 0.0
        %1150 = vmatprep.subr.mxu0 0.0
        %1151 = vmatpush2.msra.mxu0 0.0
        %1152 = vmatprep.subr.mxu0 0.0
        %1153 = vmatpush2.msra.mxu0 0.0
        %1154 = vmatprep.subr.mxu0 0.0
        %1155 = vmatpush2.msra.mxu0 0.0
        %1156 = vmatprep.subr.mxu0 0.0
        %1157 = vmatpush2.msra.mxu0 0.0
        %1158 = vmatprep.subr.mxu0 0.0
        %1159 = vmatpush2.msra.mxu0 0.0
        %1160 = vmatprep.mubr.f32.mxu0 0.0
        %1161 = vmatmul.mubr.f32.gmra.mxu0 %v988
        %v1162 = vpop.f32.mrf.mxu0
        %v1163 = vadd.f32 0.0, %v1162
        %v1164 = vpop.f32.mrf.mxu0
        %v1165 = vadd.f32 0.0, %v1164
        %1166 = vmatprep.mubr.f32.mxu0 0.0
        %1167 = vmatmul.mubr.f32.gmra.mxu0 %v991
        %v1168 = vpop.f32.mrf.mxu0
        %v1169 = vadd.f32 0.0, %v1168
        %v1170 = vpop.f32.mrf.mxu0
        %v1171 = vadd.f32 0.0, %v1170
        %1172 = vmatprep.mubr.f32.mxu0 0.0
        %1173 = vmatmul.mubr.f32.gmra.mxu0 %v994
        %v1174 = vpop.f32.mrf.mxu0
        %v1175 = vadd.f32 0.0, %v1174
        %v1176 = vpop.f32.mrf.mxu0
        %v1177 = vadd.f32 0.0, %v1176
        %1178 = vmatprep.mubr.f32.mxu0 0.0
        %1179 = vmatmul.mubr.f32.gmra.mxu0 %v997
        %v1180 = vpop.f32.mrf.mxu0
        %v1181 = vadd.f32 0.0, %v1180
        %v1182 = vpop.f32.mrf.mxu0
        %v1183 = vadd.f32 0.0, %v1182
        %1184 = vdwg.mxu0
        %v1185 = vadd.f32 %v851, %v1074
        %v1186 = vadd.f32 %v853, %v1076
        %v1187 = vadd.f32 %v940, %v1163
        %v1188 = vadd.f32 %v942, %v1165
        %v1189 = vadd.f32 %v857, %v1080
        %v1190 = vadd.f32 %v859, %v1082
        %v1191 = vadd.f32 %v946, %v1169
        %v1192 = vadd.f32 %v948, %v1171
        %v1193 = vadd.f32 %v863, %v1086
        %v1194 = vadd.f32 %v865, %v1088
        %v1195 = vadd.f32 %v952, %v1175
        %v1196 = vadd.f32 %v954, %v1177
        %v1197 = vadd.f32 %v869, %v1092
        %v1198 = vadd.f32 %v871, %v1094
        %v1199 = vadd.f32 %v958, %v1181
        %v1200 = vadd.f32 %v960, %v1183
        %s1201 = scalar_lea.vmem %s1, 96
        %v1202 = vld [vmem:[%s1201] sm:$0xff]
        %v1203 = vld [vmem:[%s1201 + $0x8] sm:$0xff]
        %v1204 = vld [vmem:[%s1201 + $0x10] sm:$0xff]
        %v1205 = vld [vmem:[%s1201 + $0x18] sm:$0xff]
        %1206 = vrot.lane.b32.xlu0 %v485, 1
        %v1207 = vpop.permute.xlu0 %1206
        %1208 = vrot.lane.b32.xlu0 %v486, 1
        %v1209 = vpop.permute.xlu0 %1208
        %1210 = vrot.lane.b32.xlu0 %v487, 1
        %v1211 = vpop.permute.xlu0 %1210
        %1212 = vrot.lane.b32.xlu0 %v488, 1
        %v1213 = vpop.permute.xlu0 %1212
        %1214 = vrot.lane.b32.xlu0 %v489, 1
        %v1215 = vpop.permute.xlu0 %1214
        %vm1216 = vcmask 7168
        %v1217 = vsel %vm1216, %v1207, %v1209
        %v1218 = vsel %vm1216, %v1209, %v1211
        %v1219 = vsel %vm1216, %v1211, %v1213
        %v1220 = vsel %vm1216, %v1213, %v1215
        %v1222 = vsel %vm544, %v1202, 0
        %v1225 = vsel %vm544, %v1203, 0
        %v1228 = vsel %vm544, %v1204, 0
        %v1231 = vsel %vm544, %v1205, 0
        %v1233 = vsel %vm557, %v1217, 0
        %v1235 = vsel %vm557, %v1218, 0
        %v1237 = vsel %vm557, %v1219, 0
        %v1239 = vsel %vm557, %v1220, 0
        %1241 = vmatprep.subr.mxu0 0.0
        %1242 = vmatpush1.msra.mxu0 0.0
        %1243 = vmatprep.subr.mxu0 0.0
        %1244 = vmatpush1.msra.mxu0 0.0
        %1245 = vmatprep.subr.mxu0 0.0
        %1246 = vmatpush1.msra.mxu0 0.0
        %1247 = vmatprep.subr.mxu0 0.0
        %1248 = vmatpush1.msra.mxu0 0.0
        %1249 = vmatprep.subr.mxu0 0.0
        %1250 = vmatpush1.msra.mxu0 0.0
        %1251 = vmatprep.subr.mxu0 0.0
        %1252 = vmatpush1.msra.mxu0 0.0
        %1253 = vmatprep.subr.mxu0 0.0
        %1254 = vmatpush1.msra.mxu0 0.0
        %1255 = vmatprep.subr.mxu0 0.0
        %1256 = vmatpush1.msra.mxu0 0.0
        %1257 = vmatprep.subr.mxu0 0.0
        %1258 = vmatpush1.msra.mxu0 0.0
        %1259 = vmatprep.subr.mxu0 0.0
        %1260 = vmatpush1.msra.mxu0 0.0
        %1261 = vmatprep.subr.mxu0 0.0
        %1262 = vmatpush1.msra.mxu0 0.0
        %1263 = vmatprep.subr.mxu0 0.0
        %1264 = vmatpush1.msra.mxu0 0.0
        %1265 = vmatprep.subr.mxu0 0.0
        %1266 = vmatpush1.msra.mxu0 0.0
        %1267 = vmatprep.subr.mxu0 0.0
        %1268 = vmatpush1.msra.mxu0 0.0
        %1269 = vmatprep.subr.mxu0 0.0
        %1270 = vmatpush1.msra.mxu0 0.0
        %1271 = vmatprep.subr.mxu0 %v1235
        %1272 = vmatpush1.msra.mxu0 %v1233
        %1273 = vmatprep.subr.mxu0 0.0
        %1274 = vmatpush2.msra.mxu0 0.0
        %1275 = vmatprep.subr.mxu0 0.0
        %1276 = vmatpush2.msra.mxu0 0.0
        %1277 = vmatprep.subr.mxu0 0.0
        %1278 = vmatpush2.msra.mxu0 0.0
        %1279 = vmatprep.subr.mxu0 0.0
        %1280 = vmatpush2.msra.mxu0 0.0
        %1281 = vmatprep.subr.mxu0 0.0
        %1282 = vmatpush2.msra.mxu0 0.0
        %1283 = vmatprep.subr.mxu0 0.0
        %1284 = vmatpush2.msra.mxu0 0.0
        %1285 = vmatprep.subr.mxu0 0.0
        %1286 = vmatpush2.msra.mxu0 0.0
        %1287 = vmatprep.subr.mxu0 0.0
        %1288 = vmatpush2.msra.mxu0 0.0
        %1289 = vmatprep.subr.mxu0 0.0
        %1290 = vmatpush2.msra.mxu0 0.0
        %1291 = vmatprep.subr.mxu0 0.0
        %1292 = vmatpush2.msra.mxu0 0.0
        %1293 = vmatprep.subr.mxu0 0.0
        %1294 = vmatpush2.msra.mxu0 0.0
        %1295 = vmatprep.subr.mxu0 0.0
        %1296 = vmatpush2.msra.mxu0 0.0
        %1297 = vmatprep.subr.mxu0 0.0
        %1298 = vmatpush2.msra.mxu0 0.0
        %1299 = vmatprep.subr.mxu0 0.0
        %1300 = vmatpush2.msra.mxu0 0.0
        %1301 = vmatprep.subr.mxu0 0.0
        %1302 = vmatpush2.msra.mxu0 0.0
        %1303 = vmatprep.subr.mxu0 0.0
        %1304 = vmatpush2.msra.mxu0 0.0
        %1305 = vmatprep.mubr.f32.mxu0 0.0
        %1306 = vmatmul.mubr.f32.gmra.mxu0 %v1222
        %v1307 = vpop.f32.mrf.mxu0
        %v1308 = vadd.f32 0.0, %v1307
        %v1309 = vpop.f32.mrf.mxu0
        %v1310 = vadd.f32 0.0, %v1309
        %1311 = vmatprep.mubr.f32.mxu0 0.0
        %1312 = vmatmul.mubr.f32.gmra.mxu0 %v1225
        %v1313 = vpop.f32.mrf.mxu0
        %v1314 = vadd.f32 0.0, %v1313
        %v1315 = vpop.f32.mrf.mxu0
        %v1316 = vadd.f32 0.0, %v1315
        %1317 = vmatprep.mubr.f32.mxu0 0.0
        %1318 = vmatmul.mubr.f32.gmra.mxu0 %v1228
        %v1319 = vpop.f32.mrf.mxu0
        %v1320 = vadd.f32 0.0, %v1319
        %v1321 = vpop.f32.mrf.mxu0
        %v1322 = vadd.f32 0.0, %v1321
        %1323 = vmatprep.mubr.f32.mxu0 0.0
        %1324 = vmatmul.mubr.f32.gmra.mxu0 %v1231
        %v1325 = vpop.f32.mrf.mxu0
        %v1326 = vadd.f32 0.0, %v1325
        %v1327 = vpop.f32.mrf.mxu0
        %v1328 = vadd.f32 0.0, %v1327
        %1329 = vdwg.mxu0
        %1330 = vmatprep.subr.mxu0 0.0
        %1331 = vmatpush1.msra.mxu0 0.0
        %1332 = vmatprep.subr.mxu0 0.0
        %1333 = vmatpush1.msra.mxu0 0.0
        %1334 = vmatprep.subr.mxu0 0.0
        %1335 = vmatpush1.msra.mxu0 0.0
        %1336 = vmatprep.subr.mxu0 0.0
        %1337 = vmatpush1.msra.mxu0 0.0
        %1338 = vmatprep.subr.mxu0 0.0
        %1339 = vmatpush1.msra.mxu0 0.0
        %1340 = vmatprep.subr.mxu0 0.0
        %1341 = vmatpush1.msra.mxu0 0.0
        %1342 = vmatprep.subr.mxu0 0.0
        %1343 = vmatpush1.msra.mxu0 0.0
        %1344 = vmatprep.subr.mxu0 0.0
        %1345 = vmatpush1.msra.mxu0 0.0
        %1346 = vmatprep.subr.mxu0 0.0
        %1347 = vmatpush1.msra.mxu0 0.0
        %1348 = vmatprep.subr.mxu0 0.0
        %1349 = vmatpush1.msra.mxu0 0.0
        %1350 = vmatprep.subr.mxu0 0.0
        %1351 = vmatpush1.msra.mxu0 0.0
        %1352 = vmatprep.subr.mxu0 0.0
        %1353 = vmatpush1.msra.mxu0 0.0
        %1354 = vmatprep.subr.mxu0 0.0
        %1355 = vmatpush1.msra.mxu0 0.0
        %1356 = vmatprep.subr.mxu0 0.0
        %1357 = vmatpush1.msra.mxu0 0.0
        %1358 = vmatprep.subr.mxu0 0.0
        %1359 = vmatpush1.msra.mxu0 0.0
        %1360 = vmatprep.subr.mxu0 %v1239
        %1361 = vmatpush1.msra.mxu0 %v1237
        %1362 = vmatprep.subr.mxu0 0.0
        %1363 = vmatpush2.msra.mxu0 0.0
        %1364 = vmatprep.subr.mxu0 0.0
        %1365 = vmatpush2.msra.mxu0 0.0
        %1366 = vmatprep.subr.mxu0 0.0
        %1367 = vmatpush2.msra.mxu0 0.0
        %1368 = vmatprep.subr.mxu0 0.0
        %1369 = vmatpush2.msra.mxu0 0.0
        %1370 = vmatprep.subr.mxu0 0.0
        %1371 = vmatpush2.msra.mxu0 0.0
        %1372 = vmatprep.subr.mxu0 0.0
        %1373 = vmatpush2.msra.mxu0 0.0
        %1374 = vmatprep.subr.mxu0 0.0
        %1375 = vmatpush2.msra.mxu0 0.0
        %1376 = vmatprep.subr.mxu0 0.0
        %1377 = vmatpush2.msra.mxu0 0.0
        %1378 = vmatprep.subr.mxu0 0.0
        %1379 = vmatpush2.msra.mxu0 0.0
        %1380 = vmatprep.subr.mxu0 0.0
        %1381 = vmatpush2.msra.mxu0 0.0
        %1382 = vmatprep.subr.mxu0 0.0
        %1383 = vmatpush2.msra.mxu0 0.0
        %1384 = vmatprep.subr.mxu0 0.0
        %1385 = vmatpush2.msra.mxu0 0.0
        %1386 = vmatprep.subr.mxu0 0.0
        %1387 = vmatpush2.msra.mxu0 0.0
        %1388 = vmatprep.subr.mxu0 0.0
        %1389 = vmatpush2.msra.mxu0 0.0
        %1390 = vmatprep.subr.mxu0 0.0
        %1391 = vmatpush2.msra.mxu0 0.0
        %1392 = vmatprep.subr.mxu0 0.0
        %1393 = vmatpush2.msra.mxu0 0.0
        %1394 = vmatprep.mubr.f32.mxu0 0.0
        %1395 = vmatmul.mubr.f32.gmra.mxu0 %v1222
        %v1396 = vpop.f32.mrf.mxu0
        %v1397 = vadd.f32 0.0, %v1396
        %v1398 = vpop.f32.mrf.mxu0
        %v1399 = vadd.f32 0.0, %v1398
        %1400 = vmatprep.mubr.f32.mxu0 0.0
        %1401 = vmatmul.mubr.f32.gmra.mxu0 %v1225
        %v1402 = vpop.f32.mrf.mxu0
        %v1403 = vadd.f32 0.0, %v1402
        %v1404 = vpop.f32.mrf.mxu0
        %v1405 = vadd.f32 0.0, %v1404
        %1406 = vmatprep.mubr.f32.mxu0 0.0
        %1407 = vmatmul.mubr.f32.gmra.mxu0 %v1228
        %v1408 = vpop.f32.mrf.mxu0
        %v1409 = vadd.f32 0.0, %v1408
        %v1410 = vpop.f32.mrf.mxu0
        %v1411 = vadd.f32 0.0, %v1410
        %1412 = vmatprep.mubr.f32.mxu0 0.0
        %1413 = vmatmul.mubr.f32.gmra.mxu0 %v1231
        %v1414 = vpop.f32.mrf.mxu0
        %v1415 = vadd.f32 0.0, %v1414
        %v1416 = vpop.f32.mrf.mxu0
        %v1417 = vadd.f32 0.0, %v1416
        %1418 = vdwg.mxu0
        %v1419 = vadd.f32 %v1185, %v1308
        %v1420 = vadd.f32 %v1186, %v1310
        %v1421 = vadd.f32 %v1187, %v1397
        %v1422 = vadd.f32 %v1188, %v1399
        %v1423 = vadd.f32 %v1189, %v1314
        %v1424 = vadd.f32 %v1190, %v1316
        %v1425 = vadd.f32 %v1191, %v1403
        %v1426 = vadd.f32 %v1192, %v1405
        %v1427 = vadd.f32 %v1193, %v1320
        %v1428 = vadd.f32 %v1194, %v1322
        %v1429 = vadd.f32 %v1195, %v1409
        %v1430 = vadd.f32 %v1196, %v1411
        %v1431 = vadd.f32 %v1197, %v1326
        %v1432 = vadd.f32 %v1198, %v1328
        %v1433 = vadd.f32 %v1199, %v1415
        %v1434 = vadd.f32 %v1200, %v1417
        %s1435 = scalar_lea.vmem %s1, 128
        %v1436 = vld [vmem:[%s1435] sm:$0xff]
        %v1437 = vld [vmem:[%s1435 + $0x8] sm:$0xff]
        %v1438 = vld [vmem:[%s1435 + $0x10] sm:$0xff]
        %v1439 = vld [vmem:[%s1435 + $0x18] sm:$0xff]
        %v1441 = vsel %vm544, %v1436, 0
        %v1444 = vsel %vm544, %v1437, 0
        %v1447 = vsel %vm544, %v1438, 0
        %v1450 = vsel %vm544, %v1439, 0
        %v1452 = vsel %vm557, %v449, 0
        %v1454 = vsel %vm557, %v450, 0
        %v1456 = vsel %vm557, %v451, 0
        %v1458 = vsel %vm557, %v452, 0
        %1460 = vmatprep.subr.mxu0 0.0
        %1461 = vmatpush1.msra.mxu0 0.0
        %1462 = vmatprep.subr.mxu0 0.0
        %1463 = vmatpush1.msra.mxu0 0.0
        %1464 = vmatprep.subr.mxu0 0.0
        %1465 = vmatpush1.msra.mxu0 0.0
        %1466 = vmatprep.subr.mxu0 0.0
        %1467 = vmatpush1.msra.mxu0 0.0
        %1468 = vmatprep.subr.mxu0 0.0
        %1469 = vmatpush1.msra.mxu0 0.0
        %1470 = vmatprep.subr.mxu0 0.0
        %1471 = vmatpush1.msra.mxu0 0.0
        %1472 = vmatprep.subr.mxu0 0.0
        %1473 = vmatpush1.msra.mxu0 0.0
        %1474 = vmatprep.subr.mxu0 0.0
        %1475 = vmatpush1.msra.mxu0 0.0
        %1476 = vmatprep.subr.mxu0 0.0
        %1477 = vmatpush1.msra.mxu0 0.0
        %1478 = vmatprep.subr.mxu0 0.0
        %1479 = vmatpush1.msra.mxu0 0.0
        %1480 = vmatprep.subr.mxu0 0.0
        %1481 = vmatpush1.msra.mxu0 0.0
        %1482 = vmatprep.subr.mxu0 0.0
        %1483 = vmatpush1.msra.mxu0 0.0
        %1484 = vmatprep.subr.mxu0 0.0
        %1485 = vmatpush1.msra.mxu0 0.0
        %1486 = vmatprep.subr.mxu0 0.0
        %1487 = vmatpush1.msra.mxu0 0.0
        %1488 = vmatprep.subr.mxu0 0.0
        %1489 = vmatpush1.msra.mxu0 0.0
        %1490 = vmatprep.subr.mxu0 %v1454
        %1491 = vmatpush1.msra.mxu0 %v1452
        %1492 = vmatprep.subr.mxu0 0.0
        %1493 = vmatpush2.msra.mxu0 0.0
        %1494 = vmatprep.subr.mxu0 0.0
        %1495 = vmatpush2.msra.mxu0 0.0
        %1496 = vmatprep.subr.mxu0 0.0
        %1497 = vmatpush2.msra.mxu0 0.0
        %1498 = vmatprep.subr.mxu0 0.0
        %1499 = vmatpush2.msra.mxu0 0.0
        %1500 = vmatprep.subr.mxu0 0.0
        %1501 = vmatpush2.msra.mxu0 0.0
        %1502 = vmatprep.subr.mxu0 0.0
        %1503 = vmatpush2.msra.mxu0 0.0
        %1504 = vmatprep.subr.mxu0 0.0
        %1505 = vmatpush2.msra.mxu0 0.0
        %1506 = vmatprep.subr.mxu0 0.0
        %1507 = vmatpush2.msra.mxu0 0.0
        %1508 = vmatprep.subr.mxu0 0.0
        %1509 = vmatpush2.msra.mxu0 0.0
        %1510 = vmatprep.subr.mxu0 0.0
        %1511 = vmatpush2.msra.mxu0 0.0
        %1512 = vmatprep.subr.mxu0 0.0
        %1513 = vmatpush2.msra.mxu0 0.0
        %1514 = vmatprep.subr.mxu0 0.0
        %1515 = vmatpush2.msra.mxu0 0.0
        %1516 = vmatprep.subr.mxu0 0.0
        %1517 = vmatpush2.msra.mxu0 0.0
        %1518 = vmatprep.subr.mxu0 0.0
        %1519 = vmatpush2.msra.mxu0 0.0
        %1520 = vmatprep.subr.mxu0 0.0
        %1521 = vmatpush2.msra.mxu0 0.0
        %1522 = vmatprep.subr.mxu0 0.0
        %1523 = vmatpush2.msra.mxu0 0.0
        %1524 = vmatprep.mubr.f32.mxu0 0.0
        %1525 = vmatmul.mubr.f32.gmra.mxu0 %v1441
        %v1526 = vpop.f32.mrf.mxu0
        %v1527 = vadd.f32 0.0, %v1526
        %v1528 = vpop.f32.mrf.mxu0
        %v1529 = vadd.f32 0.0, %v1528
        %1530 = vmatprep.mubr.f32.mxu0 0.0
        %1531 = vmatmul.mubr.f32.gmra.mxu0 %v1444
        %v1532 = vpop.f32.mrf.mxu0
        %v1533 = vadd.f32 0.0, %v1532
        %v1534 = vpop.f32.mrf.mxu0
        %v1535 = vadd.f32 0.0, %v1534
        %1536 = vmatprep.mubr.f32.mxu0 0.0
        %1537 = vmatmul.mubr.f32.gmra.mxu0 %v1447
        %v1538 = vpop.f32.mrf.mxu0
        %v1539 = vadd.f32 0.0, %v1538
        %v1540 = vpop.f32.mrf.mxu0
        %v1541 = vadd.f32 0.0, %v1540
        %1542 = vmatprep.mubr.f32.mxu0 0.0
        %1543 = vmatmul.mubr.f32.gmra.mxu0 %v1450
        %v1544 = vpop.f32.mrf.mxu0
        %v1545 = vadd.f32 0.0, %v1544
        %v1546 = vpop.f32.mrf.mxu0
        %v1547 = vadd.f32 0.0, %v1546
        %1548 = vdwg.mxu0
        %1549 = vmatprep.subr.mxu0 0.0
        %1550 = vmatpush1.msra.mxu0 0.0
        %1551 = vmatprep.subr.mxu0 0.0
        %1552 = vmatpush1.msra.mxu0 0.0
        %1553 = vmatprep.subr.mxu0 0.0
        %1554 = vmatpush1.msra.mxu0 0.0
        %1555 = vmatprep.subr.mxu0 0.0
        %1556 = vmatpush1.msra.mxu0 0.0
        %1557 = vmatprep.subr.mxu0 0.0
        %1558 = vmatpush1.msra.mxu0 0.0
        %1559 = vmatprep.subr.mxu0 0.0
        %1560 = vmatpush1.msra.mxu0 0.0
        %1561 = vmatprep.subr.mxu0 0.0
        %1562 = vmatpush1.msra.mxu0 0.0
        %1563 = vmatprep.subr.mxu0 0.0
        %1564 = vmatpush1.msra.mxu0 0.0
        %1565 = vmatprep.subr.mxu0 0.0
        %1566 = vmatpush1.msra.mxu0 0.0
        %1567 = vmatprep.subr.mxu0 0.0
        %1568 = vmatpush1.msra.mxu0 0.0
        %1569 = vmatprep.subr.mxu0 0.0
        %1570 = vmatpush1.msra.mxu0 0.0
        %1571 = vmatprep.subr.mxu0 0.0
        %1572 = vmatpush1.msra.mxu0 0.0
        %1573 = vmatprep.subr.mxu0 0.0
        %1574 = vmatpush1.msra.mxu0 0.0
        %1575 = vmatprep.subr.mxu0 0.0
        %1576 = vmatpush1.msra.mxu0 0.0
        %1577 = vmatprep.subr.mxu0 0.0
        %1578 = vmatpush1.msra.mxu0 0.0
        %1579 = vmatprep.subr.mxu0 %v1458
        %1580 = vmatpush1.msra.mxu0 %v1456
        %1581 = vmatprep.subr.mxu0 0.0
        %1582 = vmatpush2.msra.mxu0 0.0
        %1583 = vmatprep.subr.mxu0 0.0
        %1584 = vmatpush2.msra.mxu0 0.0
        %1585 = vmatprep.subr.mxu0 0.0
        %1586 = vmatpush2.msra.mxu0 0.0
        %1587 = vmatprep.subr.mxu0 0.0
        %1588 = vmatpush2.msra.mxu0 0.0
        %1589 = vmatprep.subr.mxu0 0.0
        %1590 = vmatpush2.msra.mxu0 0.0
        %1591 = vmatprep.subr.mxu0 0.0
        %1592 = vmatpush2.msra.mxu0 0.0
        %1593 = vmatprep.subr.mxu0 0.0
        %1594 = vmatpush2.msra.mxu0 0.0
        %1595 = vmatprep.subr.mxu0 0.0
        %1596 = vmatpush2.msra.mxu0 0.0
        %1597 = vmatprep.subr.mxu0 0.0
        %1598 = vmatpush2.msra.mxu0 0.0
        %1599 = vmatprep.subr.mxu0 0.0
        %1600 = vmatpush2.msra.mxu0 0.0
        %1601 = vmatprep.subr.mxu0 0.0
        %1602 = vmatpush2.msra.mxu0 0.0
        %1603 = vmatprep.subr.mxu0 0.0
        %1604 = vmatpush2.msra.mxu0 0.0
        %1605 = vmatprep.subr.mxu0 0.0
        %1606 = vmatpush2.msra.mxu0 0.0
        %1607 = vmatprep.subr.mxu0 0.0
        %1608 = vmatpush2.msra.mxu0 0.0
        %1609 = vmatprep.subr.mxu0 0.0
        %1610 = vmatpush2.msra.mxu0 0.0
        %1611 = vmatprep.subr.mxu0 0.0
        %1612 = vmatpush2.msra.mxu0 0.0
        %1613 = vmatprep.mubr.f32.mxu0 0.0
        %1614 = vmatmul.mubr.f32.gmra.mxu0 %v1441
        %v1615 = vpop.f32.mrf.mxu0
        %v1616 = vadd.f32 0.0, %v1615
        %v1617 = vpop.f32.mrf.mxu0
        %v1618 = vadd.f32 0.0, %v1617
        %1619 = vmatprep.mubr.f32.mxu0 0.0
        %1620 = vmatmul.mubr.f32.gmra.mxu0 %v1444
        %v1621 = vpop.f32.mrf.mxu0
        %v1622 = vadd.f32 0.0, %v1621
        %v1623 = vpop.f32.mrf.mxu0
        %v1624 = vadd.f32 0.0, %v1623
        %1625 = vmatprep.mubr.f32.mxu0 0.0
        %1626 = vmatmul.mubr.f32.gmra.mxu0 %v1447
        %v1627 = vpop.f32.mrf.mxu0
        %v1628 = vadd.f32 0.0, %v1627
        %v1629 = vpop.f32.mrf.mxu0
        %v1630 = vadd.f32 0.0, %v1629
        %1631 = vmatprep.mubr.f32.mxu0 0.0
        %1632 = vmatmul.mubr.f32.gmra.mxu0 %v1450
        %v1633 = vpop.f32.mrf.mxu0
        %v1634 = vadd.f32 0.0, %v1633
        %v1635 = vpop.f32.mrf.mxu0
        %v1636 = vadd.f32 0.0, %v1635
        %1637 = vdwg.mxu0
        %v1638 = vadd.f32 %v1419, %v1527
        %v1639 = vadd.f32 %v1420, %v1529
        %v1640 = vadd.f32 %v1421, %v1616
        %v1641 = vadd.f32 %v1422, %v1618
        %v1642 = vadd.f32 %v1423, %v1533
        %v1643 = vadd.f32 %v1424, %v1535
        %v1644 = vadd.f32 %v1425, %v1622
        %v1645 = vadd.f32 %v1426, %v1624
        %v1646 = vadd.f32 %v1427, %v1539
        %v1647 = vadd.f32 %v1428, %v1541
        %v1648 = vadd.f32 %v1429, %v1628
        %v1649 = vadd.f32 %v1430, %v1630
        %v1650 = vadd.f32 %v1431, %v1545
        %v1651 = vadd.f32 %v1432, %v1547
        %v1652 = vadd.f32 %v1433, %v1634
        %v1653 = vadd.f32 %v1434, %v1636
        %s1654 = scalar_lea.vmem %s1, 160
        %v1655 = vld [vmem:[%s1654] sm:$0xff]
        %v1656 = vld [vmem:[%s1654 + $0x8] sm:$0xff]
        %v1657 = vld [vmem:[%s1654 + $0x10] sm:$0xff]
        %v1658 = vld [vmem:[%s1654 + $0x18] sm:$0xff]
        %1660 = vrot.lane.b32.xlu0 %v510, 127
        %v1661 = vpop.permute.xlu0 %1660
        %1662 = vrot.lane.b32.xlu0 %v511, 127
        %v1663 = vpop.permute.xlu0 %1662
        %1664 = vrot.lane.b32.xlu0 %v512, 127
        %v1665 = vpop.permute.xlu0 %1664
        %1666 = vrot.lane.b32.xlu0 %v513, 127
        %v1667 = vpop.permute.xlu0 %1666
        %1668 = vrot.lane.b32.xlu0 %v514, 127
        %v1669 = vpop.permute.xlu0 %1668
        %vm1670 = vcmask 1039360
        %v1671 = vsel %vm1670, %v1661, %v1663
        %v1672 = vsel %vm1670, %v1663, %v1665
        %v1673 = vsel %vm1670, %v1665, %v1667
        %v1674 = vsel %vm1670, %v1667, %v1669
        %v1676 = vsel %vm544, %v1655, 0
        %v1679 = vsel %vm544, %v1656, 0
        %v1682 = vsel %vm544, %v1657, 0
        %v1685 = vsel %vm544, %v1658, 0
        %v1687 = vsel %vm557, %v1671, 0
        %v1689 = vsel %vm557, %v1672, 0
        %v1691 = vsel %vm557, %v1673, 0
        %v1693 = vsel %vm557, %v1674, 0
        %1695 = vmatprep.subr.mxu0 0.0
        %1696 = vmatpush1.msra.mxu0 0.0
        %1697 = vmatprep.subr.mxu0 0.0
        %1698 = vmatpush1.msra.mxu0 0.0
        %1699 = vmatprep.subr.mxu0 0.0
        %1700 = vmatpush1.msra.mxu0 0.0
        %1701 = vmatprep.subr.mxu0 0.0
        %1702 = vmatpush1.msra.mxu0 0.0
        %1703 = vmatprep.subr.mxu0 0.0
        %1704 = vmatpush1.msra.mxu0 0.0
        %1705 = vmatprep.subr.mxu0 0.0
        %1706 = vmatpush1.msra.mxu0 0.0
        %1707 = vmatprep.subr.mxu0 0.0
        %1708 = vmatpush1.msra.mxu0 0.0
        %1709 = vmatprep.subr.mxu0 0.0
        %1710 = vmatpush1.msra.mxu0 0.0
        %1711 = vmatprep.subr.mxu0 0.0
        %1712 = vmatpush1.msra.mxu0 0.0
        %1713 = vmatprep.subr.mxu0 0.0
        %1714 = vmatpush1.msra.mxu0 0.0
        %1715 = vmatprep.subr.mxu0 0.0
        %1716 = vmatpush1.msra.mxu0 0.0
        %1717 = vmatprep.subr.mxu0 0.0
        %1718 = vmatpush1.msra.mxu0 0.0
        %1719 = vmatprep.subr.mxu0 0.0
        %1720 = vmatpush1.msra.mxu0 0.0
        %1721 = vmatprep.subr.mxu0 0.0
        %1722 = vmatpush1.msra.mxu0 0.0
        %1723 = vmatprep.subr.mxu0 0.0
        %1724 = vmatpush1.msra.mxu0 0.0
        %1725 = vmatprep.subr.mxu0 %v1689
        %1726 = vmatpush1.msra.mxu0 %v1687
        %1727 = vmatprep.subr.mxu0 0.0
        %1728 = vmatpush2.msra.mxu0 0.0
        %1729 = vmatprep.subr.mxu0 0.0
        %1730 = vmatpush2.msra.mxu0 0.0
        %1731 = vmatprep.subr.mxu0 0.0
        %1732 = vmatpush2.msra.mxu0 0.0
        %1733 = vmatprep.subr.mxu0 0.0
        %1734 = vmatpush2.msra.mxu0 0.0
        %1735 = vmatprep.subr.mxu0 0.0
        %1736 = vmatpush2.msra.mxu0 0.0
        %1737 = vmatprep.subr.mxu0 0.0
        %1738 = vmatpush2.msra.mxu0 0.0
        %1739 = vmatprep.subr.mxu0 0.0
        %1740 = vmatpush2.msra.mxu0 0.0
        %1741 = vmatprep.subr.mxu0 0.0
        %1742 = vmatpush2.msra.mxu0 0.0
        %1743 = vmatprep.subr.mxu0 0.0
        %1744 = vmatpush2.msra.mxu0 0.0
        %1745 = vmatprep.subr.mxu0 0.0
        %1746 = vmatpush2.msra.mxu0 0.0
        %1747 = vmatprep.subr.mxu0 0.0
        %1748 = vmatpush2.msra.mxu0 0.0
        %1749 = vmatprep.subr.mxu0 0.0
        %1750 = vmatpush2.msra.mxu0 0.0
        %1751 = vmatprep.subr.mxu0 0.0
        %1752 = vmatpush2.msra.mxu0 0.0
        %1753 = vmatprep.subr.mxu0 0.0
        %1754 = vmatpush2.msra.mxu0 0.0
        %1755 = vmatprep.subr.mxu0 0.0
        %1756 = vmatpush2.msra.mxu0 0.0
        %1757 = vmatprep.subr.mxu0 0.0
        %1758 = vmatpush2.msra.mxu0 0.0
        %1759 = vmatprep.mubr.f32.mxu0 0.0
        %1760 = vmatmul.mubr.f32.gmra.mxu0 %v1676
        %v1761 = vpop.f32.mrf.mxu0
        %v1762 = vadd.f32 0.0, %v1761
        %v1763 = vpop.f32.mrf.mxu0
        %v1764 = vadd.f32 0.0, %v1763
        %1765 = vmatprep.mubr.f32.mxu0 0.0
        %1766 = vmatmul.mubr.f32.gmra.mxu0 %v1679
        %v1767 = vpop.f32.mrf.mxu0
        %v1768 = vadd.f32 0.0, %v1767
        %v1769 = vpop.f32.mrf.mxu0
        %v1770 = vadd.f32 0.0, %v1769
        %1771 = vmatprep.mubr.f32.mxu0 0.0
        %1772 = vmatmul.mubr.f32.gmra.mxu0 %v1682
        %v1773 = vpop.f32.mrf.mxu0
        %v1774 = vadd.f32 0.0, %v1773
        %v1775 = vpop.f32.mrf.mxu0
        %v1776 = vadd.f32 0.0, %v1775
        %1777 = vmatprep.mubr.f32.mxu0 0.0
        %1778 = vmatmul.mubr.f32.gmra.mxu0 %v1685
        %v1779 = vpop.f32.mrf.mxu0
        %v1780 = vadd.f32 0.0, %v1779
        %v1781 = vpop.f32.mrf.mxu0
        %v1782 = vadd.f32 0.0, %v1781
        %1783 = vdwg.mxu0
        %1784 = vmatprep.subr.mxu0 0.0
        %1785 = vmatpush1.msra.mxu0 0.0
        %1786 = vmatprep.subr.mxu0 0.0
        %1787 = vmatpush1.msra.mxu0 0.0
        %1788 = vmatprep.subr.mxu0 0.0
        %1789 = vmatpush1.msra.mxu0 0.0
        %1790 = vmatprep.subr.mxu0 0.0
        %1791 = vmatpush1.msra.mxu0 0.0
        %1792 = vmatprep.subr.mxu0 0.0
        %1793 = vmatpush1.msra.mxu0 0.0
        %1794 = vmatprep.subr.mxu0 0.0
        %1795 = vmatpush1.msra.mxu0 0.0
        %1796 = vmatprep.subr.mxu0 0.0
        %1797 = vmatpush1.msra.mxu0 0.0
        %1798 = vmatprep.subr.mxu0 0.0
        %1799 = vmatpush1.msra.mxu0 0.0
        %1800 = vmatprep.subr.mxu0 0.0
        %1801 = vmatpush1.msra.mxu0 0.0
        %1802 = vmatprep.subr.mxu0 0.0
        %1803 = vmatpush1.msra.mxu0 0.0
        %1804 = vmatprep.subr.mxu0 0.0
        %1805 = vmatpush1.msra.mxu0 0.0
        %1806 = vmatprep.subr.mxu0 0.0
        %1807 = vmatpush1.msra.mxu0 0.0
        %1808 = vmatprep.subr.mxu0 0.0
        %1809 = vmatpush1.msra.mxu0 0.0
        %1810 = vmatprep.subr.mxu0 0.0
        %1811 = vmatpush1.msra.mxu0 0.0
        %1812 = vmatprep.subr.mxu0 0.0
        %1813 = vmatpush1.msra.mxu0 0.0
        %1814 = vmatprep.subr.mxu0 %v1693
        %1815 = vmatpush1.msra.mxu0 %v1691
        %1816 = vmatprep.subr.mxu0 0.0
        %1817 = vmatpush2.msra.mxu0 0.0
        %1818 = vmatprep.subr.mxu0 0.0
        %1819 = vmatpush2.msra.mxu0 0.0
        %1820 = vmatprep.subr.mxu0 0.0
        %1821 = vmatpush2.msra.mxu0 0.0
        %1822 = vmatprep.subr.mxu0 0.0
        %1823 = vmatpush2.msra.mxu0 0.0
        %1824 = vmatprep.subr.mxu0 0.0
        %1825 = vmatpush2.msra.mxu0 0.0
        %1826 = vmatprep.subr.mxu0 0.0
        %1827 = vmatpush2.msra.mxu0 0.0
        %1828 = vmatprep.subr.mxu0 0.0
        %1829 = vmatpush2.msra.mxu0 0.0
        %1830 = vmatprep.subr.mxu0 0.0
        %1831 = vmatpush2.msra.mxu0 0.0
        %1832 = vmatprep.subr.mxu0 0.0
        %1833 = vmatpush2.msra.mxu0 0.0
        %1834 = vmatprep.subr.mxu0 0.0
        %1835 = vmatpush2.msra.mxu0 0.0
        %1836 = vmatprep.subr.mxu0 0.0
        %1837 = vmatpush2.msra.mxu0 0.0
        %1838 = vmatprep.subr.mxu0 0.0
        %1839 = vmatpush2.msra.mxu0 0.0
        %1840 = vmatprep.subr.mxu0 0.0
        %1841 = vmatpush2.msra.mxu0 0.0
        %1842 = vmatprep.subr.mxu0 0.0
        %1843 = vmatpush2.msra.mxu0 0.0
        %1844 = vmatprep.subr.mxu0 0.0
        %1845 = vmatpush2.msra.mxu0 0.0
        %1846 = vmatprep.subr.mxu0 0.0
        %1847 = vmatpush2.msra.mxu0 0.0
        %1848 = vmatprep.mubr.f32.mxu0 0.0
        %1849 = vmatmul.mubr.f32.gmra.mxu0 %v1676
        %v1850 = vpop.f32.mrf.mxu0
        %v1851 = vadd.f32 0.0, %v1850
        %v1852 = vpop.f32.mrf.mxu0
        %v1853 = vadd.f32 0.0, %v1852
        %1854 = vmatprep.mubr.f32.mxu0 0.0
        %1855 = vmatmul.mubr.f32.gmra.mxu0 %v1679
        %v1856 = vpop.f32.mrf.mxu0
        %v1857 = vadd.f32 0.0, %v1856
        %v1858 = vpop.f32.mrf.mxu0
        %v1859 = vadd.f32 0.0, %v1858
        %1860 = vmatprep.mubr.f32.mxu0 0.0
        %1861 = vmatmul.mubr.f32.gmra.mxu0 %v1682
        %v1862 = vpop.f32.mrf.mxu0
        %v1863 = vadd.f32 0.0, %v1862
        %v1864 = vpop.f32.mrf.mxu0
        %v1865 = vadd.f32 0.0, %v1864
        %1866 = vmatprep.mubr.f32.mxu0 0.0
        %1867 = vmatmul.mubr.f32.gmra.mxu0 %v1685
        %v1868 = vpop.f32.mrf.mxu0
        %v1869 = vadd.f32 0.0, %v1868
        %v1870 = vpop.f32.mrf.mxu0
        %v1871 = vadd.f32 0.0, %v1870
        %1872 = vdwg.mxu0
        %v1873 = vadd.f32 %v1638, %v1762
        %v1874 = vadd.f32 %v1639, %v1764
        %v1875 = vadd.f32 %v1640, %v1851
        %v1876 = vadd.f32 %v1641, %v1853
        %v1877 = vadd.f32 %v1642, %v1768
        %v1878 = vadd.f32 %v1643, %v1770
        %v1879 = vadd.f32 %v1644, %v1857
        %v1880 = vadd.f32 %v1645, %v1859
        %v1881 = vadd.f32 %v1646, %v1774
        %v1882 = vadd.f32 %v1647, %v1776
        %v1883 = vadd.f32 %v1648, %v1863
        %v1884 = vadd.f32 %v1649, %v1865
        %v1885 = vadd.f32 %v1650, %v1780
        %v1886 = vadd.f32 %v1651, %v1782
        %v1887 = vadd.f32 %v1652, %v1869
        %v1888 = vadd.f32 %v1653, %v1871
        %s1889 = scalar_lea.vmem %s1, 192
        %v1890 = vld [vmem:[%s1889] sm:$0xff]
        %v1891 = vld [vmem:[%s1889 + $0x8] sm:$0xff]
        %v1892 = vld [vmem:[%s1889 + $0x10] sm:$0xff]
        %v1893 = vld [vmem:[%s1889 + $0x18] sm:$0xff]
        %1895 = vrot.lane.b32.xlu0 %v490, 65
        %v1896 = vpop.permute.xlu0 %1895
        %v1897 = vsel %vm759, %v758, %v1896
        %v1899 = vsel %vm544, %v1890, 0
        %v1902 = vsel %vm544, %v1891, 0
        %v1905 = vsel %vm544, %v1892, 0
        %v1908 = vsel %vm544, %v1893, 0
        %v1910 = vsel %vm557, %v1897, 0
        %1912 = vmatprep.subr.mxu0 0.0
        %1913 = vmatpush1.msra.mxu0 0.0
        %1914 = vmatprep.subr.mxu0 0.0
        %1915 = vmatpush1.msra.mxu0 0.0
        %1916 = vmatprep.subr.mxu0 0.0
        %1917 = vmatpush1.msra.mxu0 0.0
        %1918 = vmatprep.subr.mxu0 0.0
        %1919 = vmatpush1.msra.mxu0 0.0
        %1920 = vmatprep.subr.mxu0 0.0
        %1921 = vmatpush1.msra.mxu0 0.0
        %1922 = vmatprep.subr.mxu0 0.0
        %1923 = vmatpush1.msra.mxu0 0.0
        %1924 = vmatprep.subr.mxu0 0.0
        %1925 = vmatpush1.msra.mxu0 0.0
        %1926 = vmatprep.subr.mxu0 0.0
        %1927 = vmatpush1.msra.mxu0 0.0
        %1928 = vmatprep.subr.mxu0 0.0
        %1929 = vmatpush1.msra.mxu0 0.0
        %1930 = vmatprep.subr.mxu0 0.0
        %1931 = vmatpush1.msra.mxu0 0.0
        %1932 = vmatprep.subr.mxu0 0.0
        %1933 = vmatpush1.msra.mxu0 0.0
        %1934 = vmatprep.subr.mxu0 0.0
        %1935 = vmatpush1.msra.mxu0 0.0
        %1936 = vmatprep.subr.mxu0 0.0
        %1937 = vmatpush1.msra.mxu0 0.0
        %1938 = vmatprep.subr.mxu0 0.0
        %1939 = vmatpush1.msra.mxu0 0.0
        %1940 = vmatprep.subr.mxu0 0.0
        %1941 = vmatpush1.msra.mxu0 0.0
        %1942 = vmatprep.subr.mxu0 %v780
        %1943 = vmatpush1.msra.mxu0 %v778
        %1944 = vmatprep.subr.mxu0 0.0
        %1945 = vmatpush2.msra.mxu0 0.0
        %1946 = vmatprep.subr.mxu0 0.0
        %1947 = vmatpush2.msra.mxu0 0.0
        %1948 = vmatprep.subr.mxu0 0.0
        %1949 = vmatpush2.msra.mxu0 0.0
        %1950 = vmatprep.subr.mxu0 0.0
        %1951 = vmatpush2.msra.mxu0 0.0
        %1952 = vmatprep.subr.mxu0 0.0
        %1953 = vmatpush2.msra.mxu0 0.0
        %1954 = vmatprep.subr.mxu0 0.0
        %1955 = vmatpush2.msra.mxu0 0.0
        %1956 = vmatprep.subr.mxu0 0.0
        %1957 = vmatpush2.msra.mxu0 0.0
        %1958 = vmatprep.subr.mxu0 0.0
        %1959 = vmatpush2.msra.mxu0 0.0
        %1960 = vmatprep.subr.mxu0 0.0
        %1961 = vmatpush2.msra.mxu0 0.0
        %1962 = vmatprep.subr.mxu0 0.0
        %1963 = vmatpush2.msra.mxu0 0.0
        %1964 = vmatprep.subr.mxu0 0.0
        %1965 = vmatpush2.msra.mxu0 0.0
        %1966 = vmatprep.subr.mxu0 0.0
        %1967 = vmatpush2.msra.mxu0 0.0
        %1968 = vmatprep.subr.mxu0 0.0
        %1969 = vmatpush2.msra.mxu0 0.0
        %1970 = vmatprep.subr.mxu0 0.0
        %1971 = vmatpush2.msra.mxu0 0.0
        %1972 = vmatprep.subr.mxu0 0.0
        %1973 = vmatpush2.msra.mxu0 0.0
        %1974 = vmatprep.subr.mxu0 0.0
        %1975 = vmatpush2.msra.mxu0 0.0
        %1976 = vmatprep.mubr.f32.mxu0 0.0
        %1977 = vmatmul.mubr.f32.gmra.mxu0 %v1899
        %v1978 = vpop.f32.mrf.mxu0
        %v1979 = vadd.f32 0.0, %v1978
        %v1980 = vpop.f32.mrf.mxu0
        %v1981 = vadd.f32 0.0, %v1980
        %1982 = vmatprep.mubr.f32.mxu0 0.0
        %1983 = vmatmul.mubr.f32.gmra.mxu0 %v1902
        %v1984 = vpop.f32.mrf.mxu0
        %v1985 = vadd.f32 0.0, %v1984
        %v1986 = vpop.f32.mrf.mxu0
        %v1987 = vadd.f32 0.0, %v1986
        %1988 = vmatprep.mubr.f32.mxu0 0.0
        %1989 = vmatmul.mubr.f32.gmra.mxu0 %v1905
        %v1990 = vpop.f32.mrf.mxu0
        %v1991 = vadd.f32 0.0, %v1990
        %v1992 = vpop.f32.mrf.mxu0
        %v1993 = vadd.f32 0.0, %v1992
        %1994 = vmatprep.mubr.f32.mxu0 0.0
        %1995 = vmatmul.mubr.f32.gmra.mxu0 %v1908
        %v1996 = vpop.f32.mrf.mxu0
        %v1997 = vadd.f32 0.0, %v1996
        %v1998 = vpop.f32.mrf.mxu0
        %v1999 = vadd.f32 0.0, %v1998
        %2000 = vdwg.mxu0
        %2001 = vmatprep.subr.mxu0 0.0
        %2002 = vmatpush1.msra.mxu0 0.0
        %2003 = vmatprep.subr.mxu0 0.0
        %2004 = vmatpush1.msra.mxu0 0.0
        %2005 = vmatprep.subr.mxu0 0.0
        %2006 = vmatpush1.msra.mxu0 0.0
        %2007 = vmatprep.subr.mxu0 0.0
        %2008 = vmatpush1.msra.mxu0 0.0
        %2009 = vmatprep.subr.mxu0 0.0
        %2010 = vmatpush1.msra.mxu0 0.0
        %2011 = vmatprep.subr.mxu0 0.0
        %2012 = vmatpush1.msra.mxu0 0.0
        %2013 = vmatprep.subr.mxu0 0.0
        %2014 = vmatpush1.msra.mxu0 0.0
        %2015 = vmatprep.subr.mxu0 0.0
        %2016 = vmatpush1.msra.mxu0 0.0
        %2017 = vmatprep.subr.mxu0 0.0
        %2018 = vmatpush1.msra.mxu0 0.0
        %2019 = vmatprep.subr.mxu0 0.0
        %2020 = vmatpush1.msra.mxu0 0.0
        %2021 = vmatprep.subr.mxu0 0.0
        %2022 = vmatpush1.msra.mxu0 0.0
        %2023 = vmatprep.subr.mxu0 0.0
        %2024 = vmatpush1.msra.mxu0 0.0
        %2025 = vmatprep.subr.mxu0 0.0
        %2026 = vmatpush1.msra.mxu0 0.0
        %2027 = vmatprep.subr.mxu0 0.0
        %2028 = vmatpush1.msra.mxu0 0.0
        %2029 = vmatprep.subr.mxu0 0.0
        %2030 = vmatpush1.msra.mxu0 0.0
        %2031 = vmatprep.subr.mxu0 %v1910
        %2032 = vmatpush1.msra.mxu0 %v782
        %2033 = vmatprep.subr.mxu0 0.0
        %2034 = vmatpush2.msra.mxu0 0.0
        %2035 = vmatprep.subr.mxu0 0.0
        %2036 = vmatpush2.msra.mxu0 0.0
        %2037 = vmatprep.subr.mxu0 0.0
        %2038 = vmatpush2.msra.mxu0 0.0
        %2039 = vmatprep.subr.mxu0 0.0
        %2040 = vmatpush2.msra.mxu0 0.0
        %2041 = vmatprep.subr.mxu0 0.0
        %2042 = vmatpush2.msra.mxu0 0.0
        %2043 = vmatprep.subr.mxu0 0.0
        %2044 = vmatpush2.msra.mxu0 0.0
        %2045 = vmatprep.subr.mxu0 0.0
        %2046 = vmatpush2.msra.mxu0 0.0
        %2047 = vmatprep.subr.mxu0 0.0
        %2048 = vmatpush2.msra.mxu0 0.0
        %2049 = vmatprep.subr.mxu0 0.0
        %2050 = vmatpush2.msra.mxu0 0.0
        %2051 = vmatprep.subr.mxu0 0.0
        %2052 = vmatpush2.msra.mxu0 0.0
        %2053 = vmatprep.subr.mxu0 0.0
        %2054 = vmatpush2.msra.mxu0 0.0
        %2055 = vmatprep.subr.mxu0 0.0
        %2056 = vmatpush2.msra.mxu0 0.0
        %2057 = vmatprep.subr.mxu0 0.0
        %2058 = vmatpush2.msra.mxu0 0.0
        %2059 = vmatprep.subr.mxu0 0.0
        %2060 = vmatpush2.msra.mxu0 0.0
        %2061 = vmatprep.subr.mxu0 0.0
        %2062 = vmatpush2.msra.mxu0 0.0
        %2063 = vmatprep.subr.mxu0 0.0
        %2064 = vmatpush2.msra.mxu0 0.0
        %2065 = vmatprep.mubr.f32.mxu0 0.0
        %2066 = vmatmul.mubr.f32.gmra.mxu0 %v1899
        %v2067 = vpop.f32.mrf.mxu0
        %v2068 = vadd.f32 0.0, %v2067
        %v2069 = vpop.f32.mrf.mxu0
        %v2070 = vadd.f32 0.0, %v2069
        %2071 = vmatprep.mubr.f32.mxu0 0.0
        %2072 = vmatmul.mubr.f32.gmra.mxu0 %v1902
        %v2073 = vpop.f32.mrf.mxu0
        %v2074 = vadd.f32 0.0, %v2073
        %v2075 = vpop.f32.mrf.mxu0
        %v2076 = vadd.f32 0.0, %v2075
        %2077 = vmatprep.mubr.f32.mxu0 0.0
        %2078 = vmatmul.mubr.f32.gmra.mxu0 %v1905
        %v2079 = vpop.f32.mrf.mxu0
        %v2080 = vadd.f32 0.0, %v2079
        %v2081 = vpop.f32.mrf.mxu0
        %v2082 = vadd.f32 0.0, %v2081
        %2083 = vmatprep.mubr.f32.mxu0 0.0
        %2084 = vmatmul.mubr.f32.gmra.mxu0 %v1908
        %v2085 = vpop.f32.mrf.mxu0
        %v2086 = vadd.f32 0.0, %v2085
        %v2087 = vpop.f32.mrf.mxu0
        %v2088 = vadd.f32 0.0, %v2087
        %2089 = vdwg.mxu0
        %v2090 = vadd.f32 %v1873, %v1979
        %v2091 = vadd.f32 %v1874, %v1981
        %v2092 = vadd.f32 %v1875, %v2068
        %v2093 = vadd.f32 %v1876, %v2070
        %v2094 = vadd.f32 %v1877, %v1985
        %v2095 = vadd.f32 %v1878, %v1987
        %v2096 = vadd.f32 %v1879, %v2074
        %v2097 = vadd.f32 %v1880, %v2076
        %v2098 = vadd.f32 %v1881, %v1991
        %v2099 = vadd.f32 %v1882, %v1993
        %v2100 = vadd.f32 %v1883, %v2080
        %v2101 = vadd.f32 %v1884, %v2082
        %v2102 = vadd.f32 %v1885, %v1997
        %v2103 = vadd.f32 %v1886, %v1999
        %v2104 = vadd.f32 %v1887, %v2086
        %v2105 = vadd.f32 %v1888, %v2088
        %s2106 = scalar_lea.vmem %s1, 224
        %v2107 = vld [vmem:[%s2106] sm:$0xff]
        %v2108 = vld [vmem:[%s2106 + $0x8] sm:$0xff]
        %v2109 = vld [vmem:[%s2106 + $0x10] sm:$0xff]
        %v2110 = vld [vmem:[%s2106 + $0x18] sm:$0xff]
        %2112 = vrot.lane.b32.xlu0 %v453, 64
        %v2113 = vpop.permute.xlu0 %2112
        %v2114 = vsel %vm539, %v538, %v2113
        %v2116 = vsel %vm544, %v2107, 0
        %v2119 = vsel %vm544, %v2108, 0
        %v2122 = vsel %vm544, %v2109, 0
        %v2125 = vsel %vm544, %v2110, 0
        %v2127 = vsel %vm557, %v2114, 0
        %2129 = vmatprep.subr.mxu0 0.0
        %2130 = vmatpush1.msra.mxu0 0.0
        %2131 = vmatprep.subr.mxu0 0.0
        %2132 = vmatpush1.msra.mxu0 0.0
        %2133 = vmatprep.subr.mxu0 0.0
        %2134 = vmatpush1.msra.mxu0 0.0
        %2135 = vmatprep.subr.mxu0 0.0
        %2136 = vmatpush1.msra.mxu0 0.0
        %2137 = vmatprep.subr.mxu0 0.0
        %2138 = vmatpush1.msra.mxu0 0.0
        %2139 = vmatprep.subr.mxu0 0.0
        %2140 = vmatpush1.msra.mxu0 0.0
        %2141 = vmatprep.subr.mxu0 0.0
        %2142 = vmatpush1.msra.mxu0 0.0
        %2143 = vmatprep.subr.mxu0 0.0
        %2144 = vmatpush1.msra.mxu0 0.0
        %2145 = vmatprep.subr.mxu0 0.0
        %2146 = vmatpush1.msra.mxu0 0.0
        %2147 = vmatprep.subr.mxu0 0.0
        %2148 = vmatpush1.msra.mxu0 0.0
        %2149 = vmatprep.subr.mxu0 0.0
        %2150 = vmatpush1.msra.mxu0 0.0
        %2151 = vmatprep.subr.mxu0 0.0
        %2152 = vmatpush1.msra.mxu0 0.0
        %2153 = vmatprep.subr.mxu0 0.0
        %2154 = vmatpush1.msra.mxu0 0.0
        %2155 = vmatprep.subr.mxu0 0.0
        %2156 = vmatpush1.msra.mxu0 0.0
        %2157 = vmatprep.subr.mxu0 0.0
        %2158 = vmatpush1.msra.mxu0 0.0
        %2159 = vmatprep.subr.mxu0 %v562
        %2160 = vmatpush1.msra.mxu0 %v560
        %2161 = vmatprep.subr.mxu0 0.0
        %2162 = vmatpush2.msra.mxu0 0.0
        %2163 = vmatprep.subr.mxu0 0.0
        %2164 = vmatpush2.msra.mxu0 0.0
        %2165 = vmatprep.subr.mxu0 0.0
        %2166 = vmatpush2.msra.mxu0 0.0
        %2167 = vmatprep.subr.mxu0 0.0
        %2168 = vmatpush2.msra.mxu0 0.0
        %2169 = vmatprep.subr.mxu0 0.0
        %2170 = vmatpush2.msra.mxu0 0.0
        %2171 = vmatprep.subr.mxu0 0.0
        %2172 = vmatpush2.msra.mxu0 0.0
        %2173 = vmatprep.subr.mxu0 0.0
        %2174 = vmatpush2.msra.mxu0 0.0
        %2175 = vmatprep.subr.mxu0 0.0
        %2176 = vmatpush2.msra.mxu0 0.0
        %2177 = vmatprep.subr.mxu0 0.0
        %2178 = vmatpush2.msra.mxu0 0.0
        %2179 = vmatprep.subr.mxu0 0.0
        %2180 = vmatpush2.msra.mxu0 0.0
        %2181 = vmatprep.subr.mxu0 0.0
        %2182 = vmatpush2.msra.mxu0 0.0
        %2183 = vmatprep.subr.mxu0 0.0
        %2184 = vmatpush2.msra.mxu0 0.0
        %2185 = vmatprep.subr.mxu0 0.0
        %2186 = vmatpush2.msra.mxu0 0.0
        %2187 = vmatprep.subr.mxu0 0.0
        %2188 = vmatpush2.msra.mxu0 0.0
        %2189 = vmatprep.subr.mxu0 0.0
        %2190 = vmatpush2.msra.mxu0 0.0
        %2191 = vmatprep.subr.mxu0 0.0
        %2192 = vmatpush2.msra.mxu0 0.0
        %2193 = vmatprep.mubr.f32.mxu0 0.0
        %2194 = vmatmul.mubr.f32.gmra.mxu0 %v2116
        %v2195 = vpop.f32.mrf.mxu0
        %v2196 = vadd.f32 0.0, %v2195
        %v2197 = vpop.f32.mrf.mxu0
        %v2198 = vadd.f32 0.0, %v2197
        %2199 = vmatprep.mubr.f32.mxu0 0.0
        %2200 = vmatmul.mubr.f32.gmra.mxu0 %v2119
        %v2201 = vpop.f32.mrf.mxu0
        %v2202 = vadd.f32 0.0, %v2201
        %v2203 = vpop.f32.mrf.mxu0
        %v2204 = vadd.f32 0.0, %v2203
        %2205 = vmatprep.mubr.f32.mxu0 0.0
        %2206 = vmatmul.mubr.f32.gmra.mxu0 %v2122
        %v2207 = vpop.f32.mrf.mxu0
        %v2208 = vadd.f32 0.0, %v2207
        %v2209 = vpop.f32.mrf.mxu0
        %v2210 = vadd.f32 0.0, %v2209
        %2211 = vmatprep.mubr.f32.mxu0 0.0
        %2212 = vmatmul.mubr.f32.gmra.mxu0 %v2125
        %v2213 = vpop.f32.mrf.mxu0
        %v2214 = vadd.f32 0.0, %v2213
        %v2215 = vpop.f32.mrf.mxu0
        %v2216 = vadd.f32 0.0, %v2215
        %2217 = vdwg.mxu0
        %2218 = vmatprep.subr.mxu0 0.0
        %2219 = vmatpush1.msra.mxu0 0.0
        %2220 = vmatprep.subr.mxu0 0.0
        %2221 = vmatpush1.msra.mxu0 0.0
        %2222 = vmatprep.subr.mxu0 0.0
        %2223 = vmatpush1.msra.mxu0 0.0
        %2224 = vmatprep.subr.mxu0 0.0
        %2225 = vmatpush1.msra.mxu0 0.0
        %2226 = vmatprep.subr.mxu0 0.0
        %2227 = vmatpush1.msra.mxu0 0.0
        %2228 = vmatprep.subr.mxu0 0.0
        %2229 = vmatpush1.msra.mxu0 0.0
        %2230 = vmatprep.subr.mxu0 0.0
        %2231 = vmatpush1.msra.mxu0 0.0
        %2232 = vmatprep.subr.mxu0 0.0
        %2233 = vmatpush1.msra.mxu0 0.0
        %2234 = vmatprep.subr.mxu0 0.0
        %2235 = vmatpush1.msra.mxu0 0.0
        %2236 = vmatprep.subr.mxu0 0.0
        %2237 = vmatpush1.msra.mxu0 0.0
        %2238 = vmatprep.subr.mxu0 0.0
        %2239 = vmatpush1.msra.mxu0 0.0
        %2240 = vmatprep.subr.mxu0 0.0
        %2241 = vmatpush1.msra.mxu0 0.0
        %2242 = vmatprep.subr.mxu0 0.0
        %2243 = vmatpush1.msra.mxu0 0.0
        %2244 = vmatprep.subr.mxu0 0.0
        %2245 = vmatpush1.msra.mxu0 0.0
        %2246 = vmatprep.subr.mxu0 0.0
        %2247 = vmatpush1.msra.mxu0 0.0
        %2248 = vmatprep.subr.mxu0 %v2127
        %2249 = vmatpush1.msra.mxu0 %v564
        %2250 = vmatprep.subr.mxu0 0.0
        %2251 = vmatpush2.msra.mxu0 0.0
        %2252 = vmatprep.subr.mxu0 0.0
        %2253 = vmatpush2.msra.mxu0 0.0
        %2254 = vmatprep.subr.mxu0 0.0
        %2255 = vmatpush2.msra.mxu0 0.0
        %2256 = vmatprep.subr.mxu0 0.0
        %2257 = vmatpush2.msra.mxu0 0.0
        %2258 = vmatprep.subr.mxu0 0.0
        %2259 = vmatpush2.msra.mxu0 0.0
        %2260 = vmatprep.subr.mxu0 0.0
        %2261 = vmatpush2.msra.mxu0 0.0
        %2262 = vmatprep.subr.mxu0 0.0
        %2263 = vmatpush2.msra.mxu0 0.0
        %2264 = vmatprep.subr.mxu0 0.0
        %2265 = vmatpush2.msra.mxu0 0.0
        %2266 = vmatprep.subr.mxu0 0.0
        %2267 = vmatpush2.msra.mxu0 0.0
        %2268 = vmatprep.subr.mxu0 0.0
        %2269 = vmatpush2.msra.mxu0 0.0
        %2270 = vmatprep.subr.mxu0 0.0
        %2271 = vmatpush2.msra.mxu0 0.0
        %2272 = vmatprep.subr.mxu0 0.0
        %2273 = vmatpush2.msra.mxu0 0.0
        %2274 = vmatprep.subr.mxu0 0.0
        %2275 = vmatpush2.msra.mxu0 0.0
        %2276 = vmatprep.subr.mxu0 0.0
        %2277 = vmatpush2.msra.mxu0 0.0
        %2278 = vmatprep.subr.mxu0 0.0
        %2279 = vmatpush2.msra.mxu0 0.0
        %2280 = vmatprep.subr.mxu0 0.0
        %2281 = vmatpush2.msra.mxu0 0.0
        %2282 = vmatprep.mubr.f32.mxu0 0.0
        %2283 = vmatmul.mubr.f32.gmra.mxu0 %v2116
        %v2284 = vpop.f32.mrf.mxu0
        %v2285 = vadd.f32 0.0, %v2284
        %v2286 = vpop.f32.mrf.mxu0
        %v2287 = vadd.f32 0.0, %v2286
        %2288 = vmatprep.mubr.f32.mxu0 0.0
        %2289 = vmatmul.mubr.f32.gmra.mxu0 %v2119
        %v2290 = vpop.f32.mrf.mxu0
        %v2291 = vadd.f32 0.0, %v2290
        %v2292 = vpop.f32.mrf.mxu0
        %v2293 = vadd.f32 0.0, %v2292
        %2294 = vmatprep.mubr.f32.mxu0 0.0
        %2295 = vmatmul.mubr.f32.gmra.mxu0 %v2122
        %v2296 = vpop.f32.mrf.mxu0
        %v2297 = vadd.f32 0.0, %v2296
        %v2298 = vpop.f32.mrf.mxu0
        %v2299 = vadd.f32 0.0, %v2298
        %2300 = vmatprep.mubr.f32.mxu0 0.0
        %2301 = vmatmul.mubr.f32.gmra.mxu0 %v2125
        %v2302 = vpop.f32.mrf.mxu0
        %v2303 = vadd.f32 0.0, %v2302
        %v2304 = vpop.f32.mrf.mxu0
        %v2305 = vadd.f32 0.0, %v2304
        %2306 = vdwg.mxu0
        %v2307 = vadd.f32 %v2090, %v2196
        %v2308 = vadd.f32 %v2091, %v2198
        %v2309 = vadd.f32 %v2092, %v2285
        %v2310 = vadd.f32 %v2093, %v2287
        %v2311 = vadd.f32 %v2094, %v2202
        %v2312 = vadd.f32 %v2095, %v2204
        %v2313 = vadd.f32 %v2096, %v2291
        %v2314 = vadd.f32 %v2097, %v2293
        %v2315 = vadd.f32 %v2098, %v2208
        %v2316 = vadd.f32 %v2099, %v2210
        %v2317 = vadd.f32 %v2100, %v2297
        %v2318 = vadd.f32 %v2101, %v2299
        %v2319 = vadd.f32 %v2102, %v2214
        %v2320 = vadd.f32 %v2103, %v2216
        %v2321 = vadd.f32 %v2104, %v2303
        %v2322 = vadd.f32 %v2105, %v2305
        %s2323 = scalar_lea.vmem %s1, 256
        %v2324 = vld [vmem:[%s2323] sm:$0xff]
        %v2325 = vld [vmem:[%s2323 + $0x8] sm:$0xff]
        %v2326 = vld [vmem:[%s2323 + $0x10] sm:$0xff]
        %v2327 = vld [vmem:[%s2323 + $0x18] sm:$0xff]
        %2328 = vrot.lane.b32.xlu0 %v514, 63
        %v2329 = vpop.permute.xlu0 %2328
        %v2330 = vsel %vm982, %v981, %v2329
        %v2332 = vsel %vm544, %v2324, 0
        %v2335 = vsel %vm544, %v2325, 0
        %v2338 = vsel %vm544, %v2326, 0
        %v2341 = vsel %vm544, %v2327, 0
        %v2343 = vsel %vm557, %v2330, 0
        %2345 = vmatprep.subr.mxu0 0.0
        %2346 = vmatpush1.msra.mxu0 0.0
        %2347 = vmatprep.subr.mxu0 0.0
        %2348 = vmatpush1.msra.mxu0 0.0
        %2349 = vmatprep.subr.mxu0 0.0
        %2350 = vmatpush1.msra.mxu0 0.0
        %2351 = vmatprep.subr.mxu0 0.0
        %2352 = vmatpush1.msra.mxu0 0.0
        %2353 = vmatprep.subr.mxu0 0.0
        %2354 = vmatpush1.msra.mxu0 0.0
        %2355 = vmatprep.subr.mxu0 0.0
        %2356 = vmatpush1.msra.mxu0 0.0
        %2357 = vmatprep.subr.mxu0 0.0
        %2358 = vmatpush1.msra.mxu0 0.0
        %2359 = vmatprep.subr.mxu0 0.0
        %2360 = vmatpush1.msra.mxu0 0.0
        %2361 = vmatprep.subr.mxu0 0.0
        %2362 = vmatpush1.msra.mxu0 0.0
        %2363 = vmatprep.subr.mxu0 0.0
        %2364 = vmatpush1.msra.mxu0 0.0
        %2365 = vmatprep.subr.mxu0 0.0
        %2366 = vmatpush1.msra.mxu0 0.0
        %2367 = vmatprep.subr.mxu0 0.0
        %2368 = vmatpush1.msra.mxu0 0.0
        %2369 = vmatprep.subr.mxu0 0.0
        %2370 = vmatpush1.msra.mxu0 0.0
        %2371 = vmatprep.subr.mxu0 0.0
        %2372 = vmatpush1.msra.mxu0 0.0
        %2373 = vmatprep.subr.mxu0 0.0
        %2374 = vmatpush1.msra.mxu0 0.0
        %2375 = vmatprep.subr.mxu0 %v1003
        %2376 = vmatpush1.msra.mxu0 %v1001
        %2377 = vmatprep.subr.mxu0 0.0
        %2378 = vmatpush2.msra.mxu0 0.0
        %2379 = vmatprep.subr.mxu0 0.0
        %2380 = vmatpush2.msra.mxu0 0.0
        %2381 = vmatprep.subr.mxu0 0.0
        %2382 = vmatpush2.msra.mxu0 0.0
        %2383 = vmatprep.subr.mxu0 0.0
        %2384 = vmatpush2.msra.mxu0 0.0
        %2385 = vmatprep.subr.mxu0 0.0
        %2386 = vmatpush2.msra.mxu0 0.0
        %2387 = vmatprep.subr.mxu0 0.0
        %2388 = vmatpush2.msra.mxu0 0.0
        %2389 = vmatprep.subr.mxu0 0.0
        %2390 = vmatpush2.msra.mxu0 0.0
        %2391 = vmatprep.subr.mxu0 0.0
        %2392 = vmatpush2.msra.mxu0 0.0
        %2393 = vmatprep.subr.mxu0 0.0
        %2394 = vmatpush2.msra.mxu0 0.0
        %2395 = vmatprep.subr.mxu0 0.0
        %2396 = vmatpush2.msra.mxu0 0.0
        %2397 = vmatprep.subr.mxu0 0.0
        %2398 = vmatpush2.msra.mxu0 0.0
        %2399 = vmatprep.subr.mxu0 0.0
        %2400 = vmatpush2.msra.mxu0 0.0
        %2401 = vmatprep.subr.mxu0 0.0
        %2402 = vmatpush2.msra.mxu0 0.0
        %2403 = vmatprep.subr.mxu0 0.0
        %2404 = vmatpush2.msra.mxu0 0.0
        %2405 = vmatprep.subr.mxu0 0.0
        %2406 = vmatpush2.msra.mxu0 0.0
        %2407 = vmatprep.subr.mxu0 0.0
        %2408 = vmatpush2.msra.mxu0 0.0
        %2409 = vmatprep.mubr.f32.mxu0 0.0
        %2410 = vmatmul.mubr.f32.gmra.mxu0 %v2332
        %v2411 = vpop.f32.mrf.mxu0
        %v2412 = vadd.f32 0.0, %v2411
        %v2413 = vpop.f32.mrf.mxu0
        %v2414 = vadd.f32 0.0, %v2413
        %2415 = vmatprep.mubr.f32.mxu0 0.0
        %2416 = vmatmul.mubr.f32.gmra.mxu0 %v2335
        %v2417 = vpop.f32.mrf.mxu0
        %v2418 = vadd.f32 0.0, %v2417
        %v2419 = vpop.f32.mrf.mxu0
        %v2420 = vadd.f32 0.0, %v2419
        %2421 = vmatprep.mubr.f32.mxu0 0.0
        %2422 = vmatmul.mubr.f32.gmra.mxu0 %v2338
        %v2423 = vpop.f32.mrf.mxu0
        %v2424 = vadd.f32 0.0, %v2423
        %v2425 = vpop.f32.mrf.mxu0
        %v2426 = vadd.f32 0.0, %v2425
        %2427 = vmatprep.mubr.f32.mxu0 0.0
        %2428 = vmatmul.mubr.f32.gmra.mxu0 %v2341
        %v2429 = vpop.f32.mrf.mxu0
        %v2430 = vadd.f32 0.0, %v2429
        %v2431 = vpop.f32.mrf.mxu0
        %v2432 = vadd.f32 0.0, %v2431
        %2433 = vdwg.mxu0
        %2434 = vmatprep.subr.mxu0 0.0
        %2435 = vmatpush1.msra.mxu0 0.0
        %2436 = vmatprep.subr.mxu0 0.0
        %2437 = vmatpush1.msra.mxu0 0.0
        %2438 = vmatprep.subr.mxu0 0.0
        %2439 = vmatpush1.msra.mxu0 0.0
        %2440 = vmatprep.subr.mxu0 0.0
        %2441 = vmatpush1.msra.mxu0 0.0
        %2442 = vmatprep.subr.mxu0 0.0
        %2443 = vmatpush1.msra.mxu0 0.0
        %2444 = vmatprep.subr.mxu0 0.0
        %2445 = vmatpush1.msra.mxu0 0.0
        %2446 = vmatprep.subr.mxu0 0.0
        %2447 = vmatpush1.msra.mxu0 0.0
        %2448 = vmatprep.subr.mxu0 0.0
        %2449 = vmatpush1.msra.mxu0 0.0
        %2450 = vmatprep.subr.mxu0 0.0
        %2451 = vmatpush1.msra.mxu0 0.0
        %2452 = vmatprep.subr.mxu0 0.0
        %2453 = vmatpush1.msra.mxu0 0.0
        %2454 = vmatprep.subr.mxu0 0.0
        %2455 = vmatpush1.msra.mxu0 0.0
        %2456 = vmatprep.subr.mxu0 0.0
        %2457 = vmatpush1.msra.mxu0 0.0
        %2458 = vmatprep.subr.mxu0 0.0
        %2459 = vmatpush1.msra.mxu0 0.0
        %2460 = vmatprep.subr.mxu0 0.0
        %2461 = vmatpush1.msra.mxu0 0.0
        %2462 = vmatprep.subr.mxu0 0.0
        %2463 = vmatpush1.msra.mxu0 0.0
        %2464 = vmatprep.subr.mxu0 %v2343
        %2465 = vmatpush1.msra.mxu0 %v1005
        %2466 = vmatprep.subr.mxu0 0.0
        %2467 = vmatpush2.msra.mxu0 0.0
        %2468 = vmatprep.subr.mxu0 0.0
        %2469 = vmatpush2.msra.mxu0 0.0
        %2470 = vmatprep.subr.mxu0 0.0
        %2471 = vmatpush2.msra.mxu0 0.0
        %2472 = vmatprep.subr.mxu0 0.0
        %2473 = vmatpush2.msra.mxu0 0.0
        %2474 = vmatprep.subr.mxu0 0.0
        %2475 = vmatpush2.msra.mxu0 0.0
        %2476 = vmatprep.subr.mxu0 0.0
        %2477 = vmatpush2.msra.mxu0 0.0
        %2478 = vmatprep.subr.mxu0 0.0
        %2479 = vmatpush2.msra.mxu0 0.0
        %2480 = vmatprep.subr.mxu0 0.0
        %2481 = vmatpush2.msra.mxu0 0.0
        %2482 = vmatprep.subr.mxu0 0.0
        %2483 = vmatpush2.msra.mxu0 0.0
        %2484 = vmatprep.subr.mxu0 0.0
        %2485 = vmatpush2.msra.mxu0 0.0
        %2486 = vmatprep.subr.mxu0 0.0
        %2487 = vmatpush2.msra.mxu0 0.0
        %2488 = vmatprep.subr.mxu0 0.0
        %2489 = vmatpush2.msra.mxu0 0.0
        %2490 = vmatprep.subr.mxu0 0.0
        %2491 = vmatpush2.msra.mxu0 0.0
        %2492 = vmatprep.subr.mxu0 0.0
        %2493 = vmatpush2.msra.mxu0 0.0
        %2494 = vmatprep.subr.mxu0 0.0
        %2495 = vmatpush2.msra.mxu0 0.0
        %2496 = vmatprep.subr.mxu0 0.0
        %2497 = vmatpush2.msra.mxu0 0.0
        %2498 = vmatprep.mubr.f32.mxu0 0.0
        %2499 = vmatmul.mubr.f32.gmra.mxu0 %v2332
        %v2500 = vpop.f32.mrf.mxu0
        %v2501 = vadd.f32 0.0, %v2500
        %v2502 = vpop.f32.mrf.mxu0
        %v2503 = vadd.f32 0.0, %v2502
        %2504 = vmatprep.mubr.f32.mxu0 0.0
        %2505 = vmatmul.mubr.f32.gmra.mxu0 %v2335
        %v2506 = vpop.f32.mrf.mxu0
        %v2507 = vadd.f32 0.0, %v2506
        %v2508 = vpop.f32.mrf.mxu0
        %v2509 = vadd.f32 0.0, %v2508
        %2510 = vmatprep.mubr.f32.mxu0 0.0
        %2511 = vmatmul.mubr.f32.gmra.mxu0 %v2338
        %v2512 = vpop.f32.mrf.mxu0
        %v2513 = vadd.f32 0.0, %v2512
        %v2514 = vpop.f32.mrf.mxu0
        %v2515 = vadd.f32 0.0, %v2514
        %2516 = vmatprep.mubr.f32.mxu0 0.0
        %2517 = vmatmul.mubr.f32.gmra.mxu0 %v2341
        %v2518 = vpop.f32.mrf.mxu0
        %v2519 = vadd.f32 0.0, %v2518
        %v2520 = vpop.f32.mrf.mxu0
        %v2521 = vadd.f32 0.0, %v2520
        %2522 = vdwg.mxu0
        %v2523 = vadd.f32 %v2307, %v2412
        %v2524 = vadd.f32 %v2308, %v2414
        %v2525 = vadd.f32 %v2309, %v2501
        %v2526 = vadd.f32 %v2310, %v2503
        %v2527 = vadd.f32 %v2311, %v2418
        %v2528 = vadd.f32 %v2312, %v2420
        %v2529 = vadd.f32 %v2313, %v2507
        %v2530 = vadd.f32 %v2314, %v2509
        %v2531 = vadd.f32 %v2315, %v2424
        %v2532 = vadd.f32 %v2316, %v2426
        %v2533 = vadd.f32 %v2317, %v2513
        %v2534 = vadd.f32 %v2318, %v2515
        %v2535 = vadd.f32 %v2319, %v2430
        %v2536 = vadd.f32 %v2320, %v2432
        %v2537 = vadd.f32 %v2321, %v2519
        %v2538 = vadd.f32 %v2322, %v2521
        %v2539 = vld [vmem:[%s2] sm:$0xff]
        %v2540 = vld [vmem:[%s2 + $0x8] sm:$0xff]
        %v2541 = vld [vmem:[%s2 + $0x10] sm:$0xff]
        %v2542 = vld [vmem:[%s2 + $0x18] sm:$0xff]
        %2544 = vset.pattern.permute.xlu0 0
        %2545 = vperm.xlu0 %2544, %v2539
        %v2546 = vpop.permute.xlu0 %2545
        %2549 = vset.pattern.permute.xlu0 0
        %2550 = vperm.xlu0 %2549, %v2540
        %v2551 = vpop.permute.xlu0 %2550
        %2554 = vset.pattern.permute.xlu0 0
        %2555 = vperm.xlu0 %2554, %v2541
        %v2556 = vpop.permute.xlu0 %2555
        %2559 = vset.pattern.permute.xlu0 0
        %2560 = vperm.xlu0 %2559, %v2542
        %v2561 = vpop.permute.xlu0 %2560
        %v2563 = vmul.f32 %v2523, %v2546
        %v2564 = vmul.f32 %v2524, %v2546
        %v2565 = vmul.f32 %v2525, %v2546
        %v2566 = vmul.f32 %v2526, %v2546
        %v2567 = vmul.f32 %v2527, %v2551
        %v2568 = vmul.f32 %v2528, %v2551
        %v2569 = vmul.f32 %v2529, %v2551
        %v2570 = vmul.f32 %v2530, %v2551
        %v2571 = vmul.f32 %v2531, %v2556
        %v2572 = vmul.f32 %v2532, %v2556
        %v2573 = vmul.f32 %v2533, %v2556
        %v2574 = vmul.f32 %v2534, %v2556
        %v2575 = vmul.f32 %v2535, %v2561
        %v2576 = vmul.f32 %v2536, %v2561
        %v2577 = vmul.f32 %v2537, %v2561
        %v2578 = vmul.f32 %v2538, %v2561
        %v2579 = vld [vmem:[%s3] sm:$0xff]
        %v2580 = vld [vmem:[%s3 + $0x8] sm:$0xff]
        %v2581 = vld [vmem:[%s3 + $0x10] sm:$0xff]
        %v2582 = vld [vmem:[%s3 + $0x18] sm:$0xff]
        %2584 = vset.pattern.permute.xlu0 0
        %2585 = vperm.xlu0 %2584, %v2579
        %v2586 = vpop.permute.xlu0 %2585
        %2589 = vset.pattern.permute.xlu0 0
        %2590 = vperm.xlu0 %2589, %v2580
        %v2591 = vpop.permute.xlu0 %2590
        %2594 = vset.pattern.permute.xlu0 0
        %2595 = vperm.xlu0 %2594, %v2581
        %v2596 = vpop.permute.xlu0 %2595
        %2599 = vset.pattern.permute.xlu0 0
        %2600 = vperm.xlu0 %2599, %v2582
        %v2601 = vpop.permute.xlu0 %2600
        %v2603 = vadd.f32 %v2563, %v2586
        %v2604 = vadd.f32 %v2564, %v2586
        %v2605 = vadd.f32 %v2565, %v2586
        %v2606 = vadd.f32 %v2566, %v2586
        %v2607 = vadd.f32 %v2567, %v2591
        %v2608 = vadd.f32 %v2568, %v2591
        %v2609 = vadd.f32 %v2569, %v2591
        %v2610 = vadd.f32 %v2570, %v2591
        %v2611 = vadd.f32 %v2571, %v2596
        %v2612 = vadd.f32 %v2572, %v2596
        %v2613 = vadd.f32 %v2573, %v2596
        %v2614 = vadd.f32 %v2574, %v2596
        %v2615 = vadd.f32 %v2575, %v2601
        %v2616 = vadd.f32 %v2576, %v2601
        %v2617 = vadd.f32 %v2577, %v2601
        %v2618 = vadd.f32 %v2578, %v2601
        %v2619 = vmax.f32 %v2603, 0.0
        %v2620 = vmax.f32 %v2604, 0.0
        %v2621 = vmax.f32 %v2605, 0.0
        %v2622 = vmax.f32 %v2606, 0.0
        %v2623 = vmax.f32 %v2607, 0.0
        %v2624 = vmax.f32 %v2608, 0.0
        %v2625 = vmax.f32 %v2609, 0.0
        %v2626 = vmax.f32 %v2610, 0.0
        %v2627 = vmax.f32 %v2611, 0.0
        %v2628 = vmax.f32 %v2612, 0.0
        %v2629 = vmax.f32 %v2613, 0.0
        %v2630 = vmax.f32 %v2614, 0.0
        %v2631 = vmax.f32 %v2615, 0.0
        %v2632 = vmax.f32 %v2616, 0.0
        %v2633 = vmax.f32 %v2617, 0.0
        %v2634 = vmax.f32 %v2618, 0.0
        %v2635 = vld [vmem:[%s10] sm:$0xff]
        %v2636 = vld [vmem:[%s10 + $0x8] sm:$0xff]
        %v2637 = vld [vmem:[%s10 + $0x10] sm:$0xff]
        %v2638 = vld [vmem:[%s10 + $0x18] sm:$0xff]
        %v2639 = vld [vmem:[%s10 + $0x20] sm:$0xff]
        %v2640 = vld [vmem:[%s10 + $0x28] sm:$0xff]
        %v2641 = vld [vmem:[%s10 + $0x30] sm:$0xff]
        %v2642 = vld [vmem:[%s10 + $0x38] sm:$0xff]
        %v2643 = vld [vmem:[%s10 + $0x40] sm:$0xff]
        %v2644 = vld [vmem:[%s10 + $0x48] sm:$0xff]
        %v2645 = vld [vmem:[%s10 + $0x50] sm:$0xff]
        %v2646 = vld [vmem:[%s10 + $0x58] sm:$0xff]
        %v2647 = vld [vmem:[%s10 + $0x60] sm:$0xff]
        %v2648 = vld [vmem:[%s10 + $0x68] sm:$0xff]
        %v2649 = vld [vmem:[%s10 + $0x70] sm:$0xff]
        %v2650 = vld [vmem:[%s10 + $0x78] sm:$0xff]
        %v2651 = vld [vmem:[%s10 + $0x80] sm:$0xff]
        %v2652 = vld [vmem:[%s10 + $0x88] sm:$0xff]
        %v2653 = vld [vmem:[%s10 + $0x90] sm:$0xff]
        %v2654 = vld [vmem:[%s10 + $0x98] sm:$0xff]
        %v2655 = vld [vmem:[%s10 + $0xa0] sm:$0xff]
        %v2656 = vld [vmem:[%s10 + $0xa8] sm:$0xff]
        %v2657 = vld [vmem:[%s10 + $0xb0] sm:$0xff]
        %v2658 = vld [vmem:[%s10 + $0xb8] sm:$0xff]
        %v2659 = vld [vmem:[%s10 + $0xc0] sm:$0xff]
        %v2660 = vld [vmem:[%s10 + $0xc8] sm:$0xff]
        %v2661 = vld [vmem:[%s10 + $0xd0] sm:$0xff]
        %v2662 = vld [vmem:[%s10 + $0xd8] sm:$0xff]
        %v2663 = vld [vmem:[%s10 + $0xe0] sm:$0xff]
        %v2664 = vld [vmem:[%s10 + $0xe8] sm:$0xff]
        %v2665 = vld [vmem:[%s10 + $0xf0] sm:$0xff]
        %v2666 = vld [vmem:[%s10 + $0xf8] sm:$0xff]
        %v2667 = vld [vmem:[%s10 + $0x100] sm:$0xff]
        %v2668 = vld [vmem:[%s10 + $0x108] sm:$0xff]
        %v2669 = vld [vmem:[%s10 + $0x110] sm:$0xff]
        %v2670 = vld [vmem:[%s10 + $0x118] sm:$0xff]
        %v2671 = vld [vmem:[%s10 + $0x120] sm:$0xff]
        %v2672 = vld [vmem:[%s10 + $0x128] sm:$0xff]
        %v2673 = vld [vmem:[%s10 + $0x130] sm:$0xff]
        %v2674 = vld [vmem:[%s10 + $0x138] sm:$0xff]
        %v2675 = vld [vmem:[%s10 + $0x140] sm:$0xff]
        %v2676 = vld [vmem:[%s10 + $0x148] sm:$0xff]
        %v2677 = vld [vmem:[%s10 + $0x150] sm:$0xff]
        %v2678 = vld [vmem:[%s10 + $0x158] sm:$0xff]
        %v2679 = vld [vmem:[%s10 + $0x160] sm:$0xff]
        %v2680 = vld [vmem:[%s10 + $0x168] sm:$0xff]
        %v2681 = vld [vmem:[%s10 + $0x170] sm:$0xff]
        %v2682 = vld [vmem:[%s10 + $0x178] sm:$0xff]
        %v2683 = vld [vmem:[%s10 + $0x180] sm:$0xff]
        %v2684 = vld [vmem:[%s10 + $0x188] sm:$0xff]
        %v2685 = vld [vmem:[%s10 + $0x190] sm:$0xff]
        %v2686 = vld [vmem:[%s10 + $0x198] sm:$0xff]
        %v2687 = vld [vmem:[%s10 + $0x1a0] sm:$0xff]
        %v2688 = vld [vmem:[%s10 + $0x1a8] sm:$0xff]
        %v2689 = vld [vmem:[%s10 + $0x1b0] sm:$0xff]
        %v2690 = vld [vmem:[%s10 + $0x1b8] sm:$0xff]
        %v2691 = vld [vmem:[%s10 + $0x1c0] sm:$0xff]
        %v2692 = vld [vmem:[%s10 + $0x1c8] sm:$0xff]
        %v2693 = vld [vmem:[%s10 + $0x1d0] sm:$0xff]
        %v2694 = vld [vmem:[%s10 + $0x1d8] sm:$0xff]
        %v2695 = vld [vmem:[%s10 + $0x1e0] sm:$0xff]
        %v2696 = vld [vmem:[%s10 + $0x1e8] sm:$0xff]
        %v2697 = vld [vmem:[%s10 + $0x1f0] sm:$0xff]
        %v2698 = vld [vmem:[%s10 + $0x1f8] sm:$0xff]
        %2699 = vmatprep.subr.mxu0 0.0
        %2700 = vmatpush1.msra.mxu0 %v2650
        %2701 = vmatprep.subr.mxu0 0.0
        %2702 = vmatpush1.msra.mxu0 %v2649
        %2703 = vmatprep.subr.mxu0 0.0
        %2704 = vmatpush1.msra.mxu0 %v2648
        %2705 = vmatprep.subr.mxu0 0.0
        %2706 = vmatpush1.msra.mxu0 %v2647
        %2707 = vmatprep.subr.mxu0 0.0
        %2708 = vmatpush1.msra.mxu0 %v2646
        %2709 = vmatprep.subr.mxu0 0.0
        %2710 = vmatpush1.msra.mxu0 %v2645
        %2711 = vmatprep.subr.mxu0 0.0
        %2712 = vmatpush1.msra.mxu0 %v2644
        %2713 = vmatprep.subr.mxu0 0.0
        %2714 = vmatpush1.msra.mxu0 %v2643
        %2715 = vmatprep.subr.mxu0 0.0
        %2716 = vmatpush1.msra.mxu0 %v2642
        %2717 = vmatprep.subr.mxu0 0.0
        %2718 = vmatpush1.msra.mxu0 %v2641
        %2719 = vmatprep.subr.mxu0 0.0
        %2720 = vmatpush1.msra.mxu0 %v2640
        %2721 = vmatprep.subr.mxu0 0.0
        %2722 = vmatpush1.msra.mxu0 %v2639
        %2723 = vmatprep.subr.mxu0 0.0
        %2724 = vmatpush1.msra.mxu0 %v2638
        %2725 = vmatprep.subr.mxu0 0.0
        %2726 = vmatpush1.msra.mxu0 %v2637
        %2727 = vmatprep.subr.mxu0 0.0
        %2728 = vmatpush1.msra.mxu0 %v2636
        %2729 = vmatprep.subr.mxu0 0.0
        %2730 = vmatpush1.msra.mxu0 %v2635
        %2731 = vmatprep.subr.mxu0 0.0
        %2732 = vmatpush2.msra.mxu0 %v2666
        %2733 = vmatprep.subr.mxu0 0.0
        %2734 = vmatpush2.msra.mxu0 %v2665
        %2735 = vmatprep.subr.mxu0 0.0
        %2736 = vmatpush2.msra.mxu0 %v2664
        %2737 = vmatprep.subr.mxu0 0.0
        %2738 = vmatpush2.msra.mxu0 %v2663
        %2739 = vmatprep.subr.mxu0 0.0
        %2740 = vmatpush2.msra.mxu0 %v2662
        %2741 = vmatprep.subr.mxu0 0.0
        %2742 = vmatpush2.msra.mxu0 %v2661
        %2743 = vmatprep.subr.mxu0 0.0
        %2744 = vmatpush2.msra.mxu0 %v2660
        %2745 = vmatprep.subr.mxu0 0.0
        %2746 = vmatpush2.msra.mxu0 %v2659
        %2747 = vmatprep.subr.mxu0 0.0
        %2748 = vmatpush2.msra.mxu0 %v2658
        %2749 = vmatprep.subr.mxu0 0.0
        %2750 = vmatpush2.msra.mxu0 %v2657
        %2751 = vmatprep.subr.mxu0 0.0
        %2752 = vmatpush2.msra.mxu0 %v2656
        %2753 = vmatprep.subr.mxu0 0.0
        %2754 = vmatpush2.msra.mxu0 %v2655
        %2755 = vmatprep.subr.mxu0 0.0
        %2756 = vmatpush2.msra.mxu0 %v2654
        %2757 = vmatprep.subr.mxu0 0.0
        %2758 = vmatpush2.msra.mxu0 %v2653
        %2759 = vmatprep.subr.mxu0 0.0
        %2760 = vmatpush2.msra.mxu0 %v2652
        %2761 = vmatprep.subr.mxu0 0.0
        %2762 = vmatpush2.msra.mxu0 %v2651
        %2763 = vmatprep.mubr.f32.mxu0 %v2620
        %2764 = vmatmul.mubr.f32.gmra.mxu0 %v2619
        %v2765 = vpop.f32.mrf.mxu0
        %v2766 = vadd.f32 0.0, %v2765
        %v2767 = vpop.f32.mrf.mxu0
        %2768 = vmatprep.mubr.f32.mxu0 %v2624
        %2769 = vmatmul.mubr.f32.gmra.mxu0 %v2623
        %v2770 = vpop.f32.mrf.mxu0
        %v2771 = vadd.f32 0.0, %v2770
        %v2772 = vpop.f32.mrf.mxu0
        %2773 = vmatprep.mubr.f32.mxu0 %v2628
        %2774 = vmatmul.mubr.f32.gmra.mxu0 %v2627
        %v2775 = vpop.f32.mrf.mxu0
        %v2776 = vadd.f32 0.0, %v2775
        %v2777 = vpop.f32.mrf.mxu0
        %2778 = vmatprep.mubr.f32.mxu0 %v2632
        %2779 = vmatmul.mubr.f32.gmra.mxu0 %v2631
        %v2780 = vpop.f32.mrf.mxu0
        %v2781 = vadd.f32 0.0, %v2780
        %v2782 = vpop.f32.mrf.mxu0
        %2783 = vdwg.mxu0
        %2784 = vmatprep.subr.mxu0 0.0
        %2785 = vmatpush1.msra.mxu0 %v2682
        %2786 = vmatprep.subr.mxu0 0.0
        %2787 = vmatpush1.msra.mxu0 %v2681
        %2788 = vmatprep.subr.mxu0 0.0
        %2789 = vmatpush1.msra.mxu0 %v2680
        %2790 = vmatprep.subr.mxu0 0.0
        %2791 = vmatpush1.msra.mxu0 %v2679
        %2792 = vmatprep.subr.mxu0 0.0
        %2793 = vmatpush1.msra.mxu0 %v2678
        %2794 = vmatprep.subr.mxu0 0.0
        %2795 = vmatpush1.msra.mxu0 %v2677
        %2796 = vmatprep.subr.mxu0 0.0
        %2797 = vmatpush1.msra.mxu0 %v2676
        %2798 = vmatprep.subr.mxu0 0.0
        %2799 = vmatpush1.msra.mxu0 %v2675
        %2800 = vmatprep.subr.mxu0 0.0
        %2801 = vmatpush1.msra.mxu0 %v2674
        %2802 = vmatprep.subr.mxu0 0.0
        %2803 = vmatpush1.msra.mxu0 %v2673
        %2804 = vmatprep.subr.mxu0 0.0
        %2805 = vmatpush1.msra.mxu0 %v2672
        %2806 = vmatprep.subr.mxu0 0.0
        %2807 = vmatpush1.msra.mxu0 %v2671
        %2808 = vmatprep.subr.mxu0 0.0
        %2809 = vmatpush1.msra.mxu0 %v2670
        %2810 = vmatprep.subr.mxu0 0.0
        %2811 = vmatpush1.msra.mxu0 %v2669
        %2812 = vmatprep.subr.mxu0 0.0
        %2813 = vmatpush1.msra.mxu0 %v2668
        %2814 = vmatprep.subr.mxu0 0.0
        %2815 = vmatpush1.msra.mxu0 %v2667
        %2816 = vmatprep.subr.mxu0 0.0
        %2817 = vmatpush2.msra.mxu0 %v2698
        %2818 = vmatprep.subr.mxu0 0.0
        %2819 = vmatpush2.msra.mxu0 %v2697
        %2820 = vmatprep.subr.mxu0 0.0
        %2821 = vmatpush2.msra.mxu0 %v2696
        %2822 = vmatprep.subr.mxu0 0.0
        %2823 = vmatpush2.msra.mxu0 %v2695
        %2824 = vmatprep.subr.mxu0 0.0
        %2825 = vmatpush2.msra.mxu0 %v2694
        %2826 = vmatprep.subr.mxu0 0.0
        %2827 = vmatpush2.msra.mxu0 %v2693
        %2828 = vmatprep.subr.mxu0 0.0
        %2829 = vmatpush2.msra.mxu0 %v2692
        %2830 = vmatprep.subr.mxu0 0.0
        %2831 = vmatpush2.msra.mxu0 %v2691
        %2832 = vmatprep.subr.mxu0 0.0
        %2833 = vmatpush2.msra.mxu0 %v2690
        %2834 = vmatprep.subr.mxu0 0.0
        %2835 = vmatpush2.msra.mxu0 %v2689
        %2836 = vmatprep.subr.mxu0 0.0
        %2837 = vmatpush2.msra.mxu0 %v2688
        %2838 = vmatprep.subr.mxu0 0.0
        %2839 = vmatpush2.msra.mxu0 %v2687
        %2840 = vmatprep.subr.mxu0 0.0
        %2841 = vmatpush2.msra.mxu0 %v2686
        %2842 = vmatprep.subr.mxu0 0.0
        %2843 = vmatpush2.msra.mxu0 %v2685
        %2844 = vmatprep.subr.mxu0 0.0
        %2845 = vmatpush2.msra.mxu0 %v2684
        %2846 = vmatprep.subr.mxu0 0.0
        %2847 = vmatpush2.msra.mxu0 %v2683
        %2848 = vmatprep.mubr.f32.mxu0 %v2622
        %2849 = vmatmul.mubr.f32.gmra.mxu0 %v2621
        %v2850 = vpop.f32.mrf.mxu0
        %v2851 = vadd.f32 %v2766, %v2850
        %v2852 = vpop.f32.mrf.mxu0
        %2853 = vmatprep.mubr.f32.mxu0 %v2626
        %2854 = vmatmul.mubr.f32.gmra.mxu0 %v2625
        %v2855 = vpop.f32.mrf.mxu0
        %v2856 = vadd.f32 %v2771, %v2855
        %v2857 = vpop.f32.mrf.mxu0
        %2858 = vmatprep.mubr.f32.mxu0 %v2630
        %2859 = vmatmul.mubr.f32.gmra.mxu0 %v2629
        %v2860 = vpop.f32.mrf.mxu0
        %v2861 = vadd.f32 %v2776, %v2860
        %v2862 = vpop.f32.mrf.mxu0
        %2863 = vmatprep.mubr.f32.mxu0 %v2634
        %2864 = vmatmul.mubr.f32.gmra.mxu0 %v2633
        %v2865 = vpop.f32.mrf.mxu0
        %v2866 = vadd.f32 %v2781, %v2865
        %v2867 = vpop.f32.mrf.mxu0
        %2868 = vdwg.mxu0
        %2869 = vst [vmem:[#allocation2] sm:$0xff] 0.0
        %2870 = vst [vmem:[#allocation2 + $0x30] sm:$0xff] 0.0
        %2871 = vst [vmem:[#allocation2 + $0x60] sm:$0xff] 0.0
        %2872 = vst [vmem:[#allocation2 + $0x90] sm:$0xff] 0.0
        %2873 = vst [vmem:[#allocation2 + $0x10] sm:$0xff] 0.0
        %2874 = vst [vmem:[#allocation2 + $0x40] sm:$0xff] 0.0
        %2875 = vst [vmem:[#allocation2 + $0x70] sm:$0xff] 0.0
        %2876 = vst [vmem:[#allocation2 + $0xa0] sm:$0xff] 0.0
        %2877 = vst [vmem:[#allocation2 + $0x8] sm:$0xff] %v2851
        %2878 = vst [vmem:[#allocation2 + $0x38] sm:$0xff] %v2856
        %2879 = vst [vmem:[#allocation2 + $0x68] sm:$0xff] %v2861
        %2880 = vst [vmem:[#allocation2 + $0x98] sm:$0xff] %v2866
        %v2881 = vld [vmem:[#allocation2] sm:$0xff]
        %v2882 = vld [vmem:[#allocation2 + $0x8] sm:$0xff]
        %v2883 = vld [vmem:[#allocation2 + $0x10] sm:$0xff]
        %v2884 = vld [vmem:[#allocation2 + $0x30] sm:$0xff]
        %v2885 = vld [vmem:[#allocation2 + $0x38] sm:$0xff]
        %v2886 = vld [vmem:[#allocation2 + $0x40] sm:$0xff]
        %v2887 = vld [vmem:[#allocation2 + $0x60] sm:$0xff]
        %v2888 = vld [vmem:[#allocation2 + $0x68] sm:$0xff]
        %v2889 = vld [vmem:[#allocation2 + $0x70] sm:$0xff]
        %v2890 = vld [vmem:[#allocation2 + $0x90] sm:$0xff]
        %v2891 = vld [vmem:[#allocation2 + $0x98] sm:$0xff]
        %v2892 = vld [vmem:[#allocation2 + $0xa0] sm:$0xff]
        %v2893 = vand.u32 %v455, 15
        %v2894 = vand.u32 %v456, 15
        %v2895 = vand.u32 %v457, 15
        %vm2896 = vcmp.eq.s32.totalorder %v2893, 15
        %vm2897 = vcmp.eq.s32.totalorder %v2894, 15
        %vm2898 = vcmp.eq.s32.totalorder %v2895, 15
        %v2899 = vsel %vm2896, 1, 0
        %v2900 = vsel %vm2897, 1, 0
        %v2901 = vsel %vm2898, 1, 0
        %vm2902 = vcmp.eq.s32.totalorder %v2899, 1
        %vm2903 = vcmp.eq.s32.totalorder %v2900, 1
        %vm2904 = vcmp.eq.s32.totalorder %v2901, 1
        %v2905 = vsel %vm2902, 0.0, %v2881
        %v2906 = vsel %vm2903, 0.0, %v2882
        %v2907 = vsel %vm2904, 0.0, %v2883
        %v2908 = vsel %vm2902, 0.0, %v2884
        %v2909 = vsel %vm2903, 0.0, %v2885
        %v2910 = vsel %vm2904, 0.0, %v2886
        %v2911 = vsel %vm2902, 0.0, %v2887
        %v2912 = vsel %vm2903, 0.0, %v2888
        %v2913 = vsel %vm2904, 0.0, %v2889
        %v2914 = vsel %vm2902, 0.0, %v2890
        %v2915 = vsel %vm2903, 0.0, %v2891
        %v2916 = vsel %vm2904, 0.0, %v2892
        %vm2917 = vcmp.eq.s32.totalorder %v2893, 0
        %vm2918 = vcmp.eq.s32.totalorder %v2894, 0
        %vm2919 = vcmp.eq.s32.totalorder %v2895, 0
        %v2920 = vsel %vm2917, 1, 0
        %v2921 = vsel %vm2918, 1, 0
        %v2922 = vsel %vm2919, 1, 0
        %vm2923 = vcmp.eq.s32.totalorder %v2920, 1
        %vm2924 = vcmp.eq.s32.totalorder %v2921, 1
        %vm2925 = vcmp.eq.s32.totalorder %v2922, 1
        %v2926 = vsel %vm2923, 0.0, %v2881
        %v2927 = vsel %vm2924, 0.0, %v2882
        %v2928 = vsel %vm2925, 0.0, %v2883
        %v2929 = vsel %vm2923, 0.0, %v2884
        %v2930 = vsel %vm2924, 0.0, %v2885
        %v2931 = vsel %vm2925, 0.0, %v2886
        %v2932 = vsel %vm2923, 0.0, %v2887
        %v2933 = vsel %vm2924, 0.0, %v2888
        %v2934 = vsel %vm2925, 0.0, %v2889
        %v2935 = vsel %vm2923, 0.0, %v2890
        %v2936 = vsel %vm2924, 0.0, %v2891
        %v2937 = vsel %vm2925, 0.0, %v2892
        %v2938 = vld [vmem:[#allocation5] sm:$0xff]
        %v2939 = vld [vmem:[#allocation5 + $0x8] sm:$0xff]
        %v2940 = vld [vmem:[#allocation5 + $0x10] sm:$0xff]
        %v2941 = vld [vmem:[#allocation5 + $0x18] sm:$0xff]
        %s2942 = scalar_lea.vmem [#allocation5], 32
        %v2943 = vld [vmem:[%s2942] sm:$0xff]
        %v2944 = vld [vmem:[%s2942 + $0x8] sm:$0xff]
        %v2945 = vld [vmem:[%s2942 + $0x10] sm:$0xff]
        %v2946 = vld [vmem:[%s2942 + $0x18] sm:$0xff]
        %2955 = vrot.lane.b32.xlu0 %v2881, 16
        %v2956 = vpop.permute.xlu0 %2955
        %2957 = vrot.lane.b32.xlu0 %v2882, 16
        %v2958 = vpop.permute.xlu0 %2957
        %2959 = vrot.lane.b32.xlu0 %v2884, 16
        %v2960 = vpop.permute.xlu0 %2959
        %2961 = vrot.lane.b32.xlu0 %v2885, 16
        %v2962 = vpop.permute.xlu0 %2961
        %2963 = vrot.lane.b32.xlu0 %v2887, 16
        %v2964 = vpop.permute.xlu0 %2963
        %2965 = vrot.lane.b32.xlu0 %v2888, 16
        %v2966 = vpop.permute.xlu0 %2965
        %2967 = vrot.lane.b32.xlu0 %v2890, 16
        %v2968 = vpop.permute.xlu0 %2967
        %2969 = vrot.lane.b32.xlu0 %v2891, 16
        %v2970 = vpop.permute.xlu0 %2969
        %vm2971 = vcmask 130048
        %v2972 = vsel %vm2971, %v2956, %v2958
        %v2973 = vsel %vm2971, %v2960, %v2962
        %v2974 = vsel %vm2971, %v2964, %v2966
        %v2975 = vsel %vm2971, %v2968, %v2970
        %vm2980 = vcmask 261120
        %v2982 = vsel %vm2980, %v2943, 0
        %v2985 = vsel %vm2980, %v2944, 0
        %v2988 = vsel %vm2980, %v2945, 0
        %v2991 = vsel %vm2980, %v2946, 0
        %2993 = vmatprep.subr.mxu0 0.0
        %2994 = vmatpush1.msra.mxu0 0.0
        %2995 = vmatprep.subr.mxu0 0.0
        %2996 = vmatpush1.msra.mxu0 0.0
        %2997 = vmatprep.subr.mxu0 0.0
        %2998 = vmatpush1.msra.mxu0 0.0
        %2999 = vmatprep.subr.mxu0 0.0
        %3000 = vmatpush1.msra.mxu0 0.0
        %3001 = vmatprep.subr.mxu0 0.0
        %3002 = vmatpush1.msra.mxu0 0.0
        %3003 = vmatprep.subr.mxu0 0.0
        %3004 = vmatpush1.msra.mxu0 0.0
        %3005 = vmatprep.subr.mxu0 0.0
        %3006 = vmatpush1.msra.mxu0 0.0
        %3007 = vmatprep.subr.mxu0 0.0
        %3008 = vmatpush1.msra.mxu0 0.0
        %3009 = vmatprep.subr.mxu0 0.0
        %3010 = vmatpush1.msra.mxu0 0.0
        %3011 = vmatprep.subr.mxu0 0.0
        %3012 = vmatpush1.msra.mxu0 0.0
        %3013 = vmatprep.subr.mxu0 0.0
        %3014 = vmatpush1.msra.mxu0 0.0
        %3015 = vmatprep.subr.mxu0 0.0
        %3016 = vmatpush1.msra.mxu0 0.0
        %3017 = vmatprep.subr.mxu0 0.0
        %3018 = vmatpush1.msra.mxu0 %v2975
        %3019 = vmatprep.subr.mxu0 0.0
        %3020 = vmatpush1.msra.mxu0 %v2974
        %3021 = vmatprep.subr.mxu0 0.0
        %3022 = vmatpush1.msra.mxu0 %v2973
        %3023 = vmatprep.subr.mxu0 0.0
        %3024 = vmatpush1.msra.mxu0 %v2972
        %3025 = vmatprep.subr.mxu0 0.0
        %3026 = vmatpush2.msra.mxu0 0.0
        %3027 = vmatprep.subr.mxu0 0.0
        %3028 = vmatpush2.msra.mxu0 0.0
        %3029 = vmatprep.subr.mxu0 0.0
        %3030 = vmatpush2.msra.mxu0 0.0
        %3031 = vmatprep.subr.mxu0 0.0
        %3032 = vmatpush2.msra.mxu0 0.0
        %3033 = vmatprep.subr.mxu0 0.0
        %3034 = vmatpush2.msra.mxu0 0.0
        %3035 = vmatprep.subr.mxu0 0.0
        %3036 = vmatpush2.msra.mxu0 0.0
        %3037 = vmatprep.subr.mxu0 0.0
        %3038 = vmatpush2.msra.mxu0 0.0
        %3039 = vmatprep.subr.mxu0 0.0
        %3040 = vmatpush2.msra.mxu0 0.0
        %3041 = vmatprep.subr.mxu0 0.0
        %3042 = vmatpush2.msra.mxu0 0.0
        %3043 = vmatprep.subr.mxu0 0.0
        %3044 = vmatpush2.msra.mxu0 0.0
        %3045 = vmatprep.subr.mxu0 0.0
        %3046 = vmatpush2.msra.mxu0 0.0
        %3047 = vmatprep.subr.mxu0 0.0
        %3048 = vmatpush2.msra.mxu0 0.0
        %3049 = vmatprep.subr.mxu0 0.0
        %3050 = vmatpush2.msra.mxu0 0.0
        %3051 = vmatprep.subr.mxu0 0.0
        %3052 = vmatpush2.msra.mxu0 0.0
        %3053 = vmatprep.subr.mxu0 0.0
        %3054 = vmatpush2.msra.mxu0 0.0
        %3055 = vmatprep.subr.mxu0 0.0
        %3056 = vmatpush2.msra.mxu0 0.0
        %3057 = vmatprep.mubr.f32.mxu0 0.0
        %3058 = vmatmul.mubr.f32.gmra.mxu0 %v2982
        %v3059 = vpop.f32.mrf.mxu0
        %v3060 = vadd.f32 0.0, %v3059
        %v3061 = vpop.f32.mrf.mxu0
        %3062 = vmatprep.mubr.f32.mxu0 0.0
        %3063 = vmatmul.mubr.f32.gmra.mxu0 %v2985
        %v3064 = vpop.f32.mrf.mxu0
        %v3065 = vadd.f32 0.0, %v3064
        %v3066 = vpop.f32.mrf.mxu0
        %3067 = vmatprep.mubr.f32.mxu0 0.0
        %3068 = vmatmul.mubr.f32.gmra.mxu0 %v2988
        %v3069 = vpop.f32.mrf.mxu0
        %v3070 = vadd.f32 0.0, %v3069
        %v3071 = vpop.f32.mrf.mxu0
        %3072 = vmatprep.mubr.f32.mxu0 0.0
        %3073 = vmatmul.mubr.f32.gmra.mxu0 %v2991
        %v3074 = vpop.f32.mrf.mxu0
        %v3075 = vadd.f32 0.0, %v3074
        %v3076 = vpop.f32.mrf.mxu0
        %3077 = vdwg.mxu0
        %3086 = vrot.lane.b32.xlu0 %v2905, 17
        %v3087 = vpop.permute.xlu0 %3086
        %3088 = vrot.lane.b32.xlu0 %v2906, 17
        %v3089 = vpop.permute.xlu0 %3088
        %3090 = vrot.lane.b32.xlu0 %v2908, 17
        %v3091 = vpop.permute.xlu0 %3090
        %3092 = vrot.lane.b32.xlu0 %v2909, 17
        %v3093 = vpop.permute.xlu0 %3092
        %3094 = vrot.lane.b32.xlu0 %v2911, 17
        %v3095 = vpop.permute.xlu0 %3094
        %3096 = vrot.lane.b32.xlu0 %v2912, 17
        %v3097 = vpop.permute.xlu0 %3096
        %3098 = vrot.lane.b32.xlu0 %v2914, 17
        %v3099 = vpop.permute.xlu0 %3098
        %3100 = vrot.lane.b32.xlu0 %v2915, 17
        %v3101 = vpop.permute.xlu0 %3100
        %vm3102 = vcmask 138240
        %v3103 = vsel %vm3102, %v3087, %v3089
        %v3104 = vsel %vm3102, %v3091, %v3093
        %v3105 = vsel %vm3102, %v3095, %v3097
        %v3106 = vsel %vm3102, %v3099, %v3101
        %v3112 = vsel %vm2980, %v2938, 0
        %v3115 = vsel %vm2980, %v2939, 0
        %v3118 = vsel %vm2980, %v2940, 0
        %v3121 = vsel %vm2980, %v2941, 0
        %3123 = vmatprep.subr.mxu0 0.0
        %3124 = vmatpush1.msra.mxu0 0.0
        %3125 = vmatprep.subr.mxu0 0.0
        %3126 = vmatpush1.msra.mxu0 0.0
        %3127 = vmatprep.subr.mxu0 0.0
        %3128 = vmatpush1.msra.mxu0 0.0
        %3129 = vmatprep.subr.mxu0 0.0
        %3130 = vmatpush1.msra.mxu0 0.0
        %3131 = vmatprep.subr.mxu0 0.0
        %3132 = vmatpush1.msra.mxu0 0.0
        %3133 = vmatprep.subr.mxu0 0.0
        %3134 = vmatpush1.msra.mxu0 0.0
        %3135 = vmatprep.subr.mxu0 0.0
        %3136 = vmatpush1.msra.mxu0 0.0
        %3137 = vmatprep.subr.mxu0 0.0
        %3138 = vmatpush1.msra.mxu0 0.0
        %3139 = vmatprep.subr.mxu0 0.0
        %3140 = vmatpush1.msra.mxu0 0.0
        %3141 = vmatprep.subr.mxu0 0.0
        %3142 = vmatpush1.msra.mxu0 0.0
        %3143 = vmatprep.subr.mxu0 0.0
        %3144 = vmatpush1.msra.mxu0 0.0
        %3145 = vmatprep.subr.mxu0 0.0
        %3146 = vmatpush1.msra.mxu0 0.0
        %3147 = vmatprep.subr.mxu0 0.0
        %3148 = vmatpush1.msra.mxu0 %v3106
        %3149 = vmatprep.subr.mxu0 0.0
        %3150 = vmatpush1.msra.mxu0 %v3105
        %3151 = vmatprep.subr.mxu0 0.0
        %3152 = vmatpush1.msra.mxu0 %v3104
        %3153 = vmatprep.subr.mxu0 0.0
        %3154 = vmatpush1.msra.mxu0 %v3103
        %3155 = vmatprep.subr.mxu0 0.0
        %3156 = vmatpush2.msra.mxu0 0.0
        %3157 = vmatprep.subr.mxu0 0.0
        %3158 = vmatpush2.msra.mxu0 0.0
        %3159 = vmatprep.subr.mxu0 0.0
        %3160 = vmatpush2.msra.mxu0 0.0
        %3161 = vmatprep.subr.mxu0 0.0
        %3162 = vmatpush2.msra.mxu0 0.0
        %3163 = vmatprep.subr.mxu0 0.0
        %3164 = vmatpush2.msra.mxu0 0.0
        %3165 = vmatprep.subr.mxu0 0.0
        %3166 = vmatpush2.msra.mxu0 0.0
        %3167 = vmatprep.subr.mxu0 0.0
        %3168 = vmatpush2.msra.mxu0 0.0
        %3169 = vmatprep.subr.mxu0 0.0
        %3170 = vmatpush2.msra.mxu0 0.0
        %3171 = vmatprep.subr.mxu0 0.0
        %3172 = vmatpush2.msra.mxu0 0.0
        %3173 = vmatprep.subr.mxu0 0.0
        %3174 = vmatpush2.msra.mxu0 0.0
        %3175 = vmatprep.subr.mxu0 0.0
        %3176 = vmatpush2.msra.mxu0 0.0
        %3177 = vmatprep.subr.mxu0 0.0
        %3178 = vmatpush2.msra.mxu0 0.0
        %3179 = vmatprep.subr.mxu0 0.0
        %3180 = vmatpush2.msra.mxu0 0.0
        %3181 = vmatprep.subr.mxu0 0.0
        %3182 = vmatpush2.msra.mxu0 0.0
        %3183 = vmatprep.subr.mxu0 0.0
        %3184 = vmatpush2.msra.mxu0 0.0
        %3185 = vmatprep.subr.mxu0 0.0
        %3186 = vmatpush2.msra.mxu0 0.0
        %3187 = vmatprep.mubr.f32.mxu0 0.0
        %3188 = vmatmul.mubr.f32.gmra.mxu0 %v3112
        %v3189 = vpop.f32.mrf.mxu0
        %v3190 = vadd.f32 %v3060, %v3189
        %v3191 = vpop.f32.mrf.mxu0
        %3192 = vmatprep.mubr.f32.mxu0 0.0
        %3193 = vmatmul.mubr.f32.gmra.mxu0 %v3115
        %v3194 = vpop.f32.mrf.mxu0
        %v3195 = vadd.f32 %v3065, %v3194
        %v3196 = vpop.f32.mrf.mxu0
        %3197 = vmatprep.mubr.f32.mxu0 0.0
        %3198 = vmatmul.mubr.f32.gmra.mxu0 %v3118
        %v3199 = vpop.f32.mrf.mxu0
        %v3200 = vadd.f32 %v3070, %v3199
        %v3201 = vpop.f32.mrf.mxu0
        %3202 = vmatprep.mubr.f32.mxu0 0.0
        %3203 = vmatmul.mubr.f32.gmra.mxu0 %v3121
        %v3204 = vpop.f32.mrf.mxu0
        %v3205 = vadd.f32 %v3075, %v3204
        %v3206 = vpop.f32.mrf.mxu0
        %3207 = vdwg.mxu0
        %s3208 = scalar_lea.vmem [#allocation5], 64
        %v3209 = vld [vmem:[%s3208] sm:$0xff]
        %v3210 = vld [vmem:[%s3208 + $0x8] sm:$0xff]
        %v3211 = vld [vmem:[%s3208 + $0x10] sm:$0xff]
        %v3212 = vld [vmem:[%s3208 + $0x18] sm:$0xff]
        %3221 = vrot.lane.b32.xlu0 %v2926, 15
        %v3222 = vpop.permute.xlu0 %3221
        %3223 = vrot.lane.b32.xlu0 %v2927, 15
        %v3224 = vpop.permute.xlu0 %3223
        %3225 = vrot.lane.b32.xlu0 %v2929, 15
        %v3226 = vpop.permute.xlu0 %3225
        %3227 = vrot.lane.b32.xlu0 %v2930, 15
        %v3228 = vpop.permute.xlu0 %3227
        %3229 = vrot.lane.b32.xlu0 %v2932, 15
        %v3230 = vpop.permute.xlu0 %3229
        %3231 = vrot.lane.b32.xlu0 %v2933, 15
        %v3232 = vpop.permute.xlu0 %3231
        %3233 = vrot.lane.b32.xlu0 %v2935, 15
        %v3234 = vpop.permute.xlu0 %3233
        %3235 = vrot.lane.b32.xlu0 %v2936, 15
        %v3236 = vpop.permute.xlu0 %3235
        %vm3237 = vcmask 121856
        %v3238 = vsel %vm3237, %v3222, %v3224
        %v3239 = vsel %vm3237, %v3226, %v3228
        %v3240 = vsel %vm3237, %v3230, %v3232
        %v3241 = vsel %vm3237, %v3234, %v3236
        %v3247 = vsel %vm2980, %v3209, 0
        %v3250 = vsel %vm2980, %v3210, 0
        %v3253 = vsel %vm2980, %v3211, 0
        %v3256 = vsel %vm2980, %v3212, 0
        %3258 = vmatprep.subr.mxu0 0.0
        %3259 = vmatpush1.msra.mxu0 0.0
        %3260 = vmatprep.subr.mxu0 0.0
        %3261 = vmatpush1.msra.mxu0 0.0
        %3262 = vmatprep.subr.mxu0 0.0
        %3263 = vmatpush1.msra.mxu0 0.0
        %3264 = vmatprep.subr.mxu0 0.0
        %3265 = vmatpush1.msra.mxu0 0.0
        %3266 = vmatprep.subr.mxu0 0.0
        %3267 = vmatpush1.msra.mxu0 0.0
        %3268 = vmatprep.subr.mxu0 0.0
        %3269 = vmatpush1.msra.mxu0 0.0
        %3270 = vmatprep.subr.mxu0 0.0
        %3271 = vmatpush1.msra.mxu0 0.0
        %3272 = vmatprep.subr.mxu0 0.0
        %3273 = vmatpush1.msra.mxu0 0.0
        %3274 = vmatprep.subr.mxu0 0.0
        %3275 = vmatpush1.msra.mxu0 0.0
        %3276 = vmatprep.subr.mxu0 0.0
        %3277 = vmatpush1.msra.mxu0 0.0
        %3278 = vmatprep.subr.mxu0 0.0
        %3279 = vmatpush1.msra.mxu0 0.0
        %3280 = vmatprep.subr.mxu0 0.0
        %3281 = vmatpush1.msra.mxu0 0.0
        %3282 = vmatprep.subr.mxu0 0.0
        %3283 = vmatpush1.msra.mxu0 %v3241
        %3284 = vmatprep.subr.mxu0 0.0
        %3285 = vmatpush1.msra.mxu0 %v3240
        %3286 = vmatprep.subr.mxu0 0.0
        %3287 = vmatpush1.msra.mxu0 %v3239
        %3288 = vmatprep.subr.mxu0 0.0
        %3289 = vmatpush1.msra.mxu0 %v3238
        %3290 = vmatprep.subr.mxu0 0.0
        %3291 = vmatpush2.msra.mxu0 0.0
        %3292 = vmatprep.subr.mxu0 0.0
        %3293 = vmatpush2.msra.mxu0 0.0
        %3294 = vmatprep.subr.mxu0 0.0
        %3295 = vmatpush2.msra.mxu0 0.0
        %3296 = vmatprep.subr.mxu0 0.0
        %3297 = vmatpush2.msra.mxu0 0.0
        %3298 = vmatprep.subr.mxu0 0.0
        %3299 = vmatpush2.msra.mxu0 0.0
        %3300 = vmatprep.subr.mxu0 0.0
        %3301 = vmatpush2.msra.mxu0 0.0
        %3302 = vmatprep.subr.mxu0 0.0
        %3303 = vmatpush2.msra.mxu0 0.0
        %3304 = vmatprep.subr.mxu0 0.0
        %3305 = vmatpush2.msra.mxu0 0.0
        %3306 = vmatprep.subr.mxu0 0.0
        %3307 = vmatpush2.msra.mxu0 0.0
        %3308 = vmatprep.subr.mxu0 0.0
        %3309 = vmatpush2.msra.mxu0 0.0
        %3310 = vmatprep.subr.mxu0 0.0
        %3311 = vmatpush2.msra.mxu0 0.0
        %3312 = vmatprep.subr.mxu0 0.0
        %3313 = vmatpush2.msra.mxu0 0.0
        %3314 = vmatprep.subr.mxu0 0.0
        %3315 = vmatpush2.msra.mxu0 0.0
        %3316 = vmatprep.subr.mxu0 0.0
        %3317 = vmatpush2.msra.mxu0 0.0
        %3318 = vmatprep.subr.mxu0 0.0
        %3319 = vmatpush2.msra.mxu0 0.0
        %3320 = vmatprep.subr.mxu0 0.0
        %3321 = vmatpush2.msra.mxu0 0.0
        %3322 = vmatprep.mubr.f32.mxu0 0.0
        %3323 = vmatmul.mubr.f32.gmra.mxu0 %v3247
        %v3324 = vpop.f32.mrf.mxu0
        %v3325 = vadd.f32 0.0, %v3324
        %v3326 = vpop.f32.mrf.mxu0
        %3327 = vmatprep.mubr.f32.mxu0 0.0
        %3328 = vmatmul.mubr.f32.gmra.mxu0 %v3250
        %v3329 = vpop.f32.mrf.mxu0
        %v3330 = vadd.f32 0.0, %v3329
        %v3331 = vpop.f32.mrf.mxu0
        %3332 = vmatprep.mubr.f32.mxu0 0.0
        %3333 = vmatmul.mubr.f32.gmra.mxu0 %v3253
        %v3334 = vpop.f32.mrf.mxu0
        %v3335 = vadd.f32 0.0, %v3334
        %v3336 = vpop.f32.mrf.mxu0
        %3337 = vmatprep.mubr.f32.mxu0 0.0
        %3338 = vmatmul.mubr.f32.gmra.mxu0 %v3256
        %v3339 = vpop.f32.mrf.mxu0
        %v3340 = vadd.f32 0.0, %v3339
        %v3341 = vpop.f32.mrf.mxu0
        %3342 = vdwg.mxu0
        %v3343 = vadd.f32 %v3190, %v3325
        %v3344 = vadd.f32 %v3195, %v3330
        %v3345 = vadd.f32 %v3200, %v3335
        %v3346 = vadd.f32 %v3205, %v3340
        %s3347 = scalar_lea.vmem [#allocation5], 96
        %v3348 = vld [vmem:[%s3347] sm:$0xff]
        %v3349 = vld [vmem:[%s3347 + $0x8] sm:$0xff]
        %v3350 = vld [vmem:[%s3347 + $0x10] sm:$0xff]
        %v3351 = vld [vmem:[%s3347 + $0x18] sm:$0xff]
        %3352 = vrot.lane.b32.xlu0 %v2905, 1
        %v3353 = vpop.permute.xlu0 %3352
        %3354 = vrot.lane.b32.xlu0 %v2906, 1
        %v3355 = vpop.permute.xlu0 %3354
        %3356 = vrot.lane.b32.xlu0 %v2908, 1
        %v3357 = vpop.permute.xlu0 %3356
        %3358 = vrot.lane.b32.xlu0 %v2909, 1
        %v3359 = vpop.permute.xlu0 %3358
        %3360 = vrot.lane.b32.xlu0 %v2911, 1
        %v3361 = vpop.permute.xlu0 %3360
        %3362 = vrot.lane.b32.xlu0 %v2912, 1
        %v3363 = vpop.permute.xlu0 %3362
        %3364 = vrot.lane.b32.xlu0 %v2914, 1
        %v3365 = vpop.permute.xlu0 %3364
        %3366 = vrot.lane.b32.xlu0 %v2915, 1
        %v3367 = vpop.permute.xlu0 %3366
        %v3368 = vsel %vm1216, %v3353, %v3355
        %v3369 = vsel %vm1216, %v3357, %v3359
        %v3370 = vsel %vm1216, %v3361, %v3363
        %v3371 = vsel %vm1216, %v3365, %v3367
        %v3377 = vsel %vm2980, %v3348, 0
        %v3380 = vsel %vm2980, %v3349, 0
        %v3383 = vsel %vm2980, %v3350, 0
        %v3386 = vsel %vm2980, %v3351, 0
        %3388 = vmatprep.subr.mxu0 0.0
        %3389 = vmatpush1.msra.mxu0 0.0
        %3390 = vmatprep.subr.mxu0 0.0
        %3391 = vmatpush1.msra.mxu0 0.0
        %3392 = vmatprep.subr.mxu0 0.0
        %3393 = vmatpush1.msra.mxu0 0.0
        %3394 = vmatprep.subr.mxu0 0.0
        %3395 = vmatpush1.msra.mxu0 0.0
        %3396 = vmatprep.subr.mxu0 0.0
        %3397 = vmatpush1.msra.mxu0 0.0
        %3398 = vmatprep.subr.mxu0 0.0
        %3399 = vmatpush1.msra.mxu0 0.0
        %3400 = vmatprep.subr.mxu0 0.0
        %3401 = vmatpush1.msra.mxu0 0.0
        %3402 = vmatprep.subr.mxu0 0.0
        %3403 = vmatpush1.msra.mxu0 0.0
        %3404 = vmatprep.subr.mxu0 0.0
        %3405 = vmatpush1.msra.mxu0 0.0
        %3406 = vmatprep.subr.mxu0 0.0
        %3407 = vmatpush1.msra.mxu0 0.0
        %3408 = vmatprep.subr.mxu0 0.0
        %3409 = vmatpush1.msra.mxu0 0.0
        %3410 = vmatprep.subr.mxu0 0.0
        %3411 = vmatpush1.msra.mxu0 0.0
        %3412 = vmatprep.subr.mxu0 0.0
        %3413 = vmatpush1.msra.mxu0 %v3371
        %3414 = vmatprep.subr.mxu0 0.0
        %3415 = vmatpush1.msra.mxu0 %v3370
        %3416 = vmatprep.subr.mxu0 0.0
        %3417 = vmatpush1.msra.mxu0 %v3369
        %3418 = vmatprep.subr.mxu0 0.0
        %3419 = vmatpush1.msra.mxu0 %v3368
        %3420 = vmatprep.subr.mxu0 0.0
        %3421 = vmatpush2.msra.mxu0 0.0
        %3422 = vmatprep.subr.mxu0 0.0
        %3423 = vmatpush2.msra.mxu0 0.0
        %3424 = vmatprep.subr.mxu0 0.0
        %3425 = vmatpush2.msra.mxu0 0.0
        %3426 = vmatprep.subr.mxu0 0.0
        %3427 = vmatpush2.msra.mxu0 0.0
        %3428 = vmatprep.subr.mxu0 0.0
        %3429 = vmatpush2.msra.mxu0 0.0
        %3430 = vmatprep.subr.mxu0 0.0
        %3431 = vmatpush2.msra.mxu0 0.0
        %3432 = vmatprep.subr.mxu0 0.0
        %3433 = vmatpush2.msra.mxu0 0.0
        %3434 = vmatprep.subr.mxu0 0.0
        %3435 = vmatpush2.msra.mxu0 0.0
        %3436 = vmatprep.subr.mxu0 0.0
        %3437 = vmatpush2.msra.mxu0 0.0
        %3438 = vmatprep.subr.mxu0 0.0
        %3439 = vmatpush2.msra.mxu0 0.0
        %3440 = vmatprep.subr.mxu0 0.0
        %3441 = vmatpush2.msra.mxu0 0.0
        %3442 = vmatprep.subr.mxu0 0.0
        %3443 = vmatpush2.msra.mxu0 0.0
        %3444 = vmatprep.subr.mxu0 0.0
        %3445 = vmatpush2.msra.mxu0 0.0
        %3446 = vmatprep.subr.mxu0 0.0
        %3447 = vmatpush2.msra.mxu0 0.0
        %3448 = vmatprep.subr.mxu0 0.0
        %3449 = vmatpush2.msra.mxu0 0.0
        %3450 = vmatprep.subr.mxu0 0.0
        %3451 = vmatpush2.msra.mxu0 0.0
        %3452 = vmatprep.mubr.f32.mxu0 0.0
        %3453 = vmatmul.mubr.f32.gmra.mxu0 %v3377
        %v3454 = vpop.f32.mrf.mxu0
        %v3455 = vadd.f32 0.0, %v3454
        %v3456 = vpop.f32.mrf.mxu0
        %3457 = vmatprep.mubr.f32.mxu0 0.0
        %3458 = vmatmul.mubr.f32.gmra.mxu0 %v3380
        %v3459 = vpop.f32.mrf.mxu0
        %v3460 = vadd.f32 0.0, %v3459
        %v3461 = vpop.f32.mrf.mxu0
        %3462 = vmatprep.mubr.f32.mxu0 0.0
        %3463 = vmatmul.mubr.f32.gmra.mxu0 %v3383
        %v3464 = vpop.f32.mrf.mxu0
        %v3465 = vadd.f32 0.0, %v3464
        %v3466 = vpop.f32.mrf.mxu0
        %3467 = vmatprep.mubr.f32.mxu0 0.0
        %3468 = vmatmul.mubr.f32.gmra.mxu0 %v3386
        %v3469 = vpop.f32.mrf.mxu0
        %v3470 = vadd.f32 0.0, %v3469
        %v3471 = vpop.f32.mrf.mxu0
        %3472 = vdwg.mxu0
        %v3473 = vadd.f32 %v3343, %v3455
        %v3474 = vadd.f32 %v3344, %v3460
        %v3475 = vadd.f32 %v3345, %v3465
        %v3476 = vadd.f32 %v3346, %v3470
        %s3477 = scalar_lea.vmem [#allocation5], 128
        %v3478 = vld [vmem:[%s3477] sm:$0xff]
        %v3479 = vld [vmem:[%s3477 + $0x8] sm:$0xff]
        %v3480 = vld [vmem:[%s3477 + $0x10] sm:$0xff]
        %v3481 = vld [vmem:[%s3477 + $0x18] sm:$0xff]
        %v3483 = vsel %vm2980, %v3478, 0
        %v3486 = vsel %vm2980, %v3479, 0
        %v3489 = vsel %vm2980, %v3480, 0
        %v3492 = vsel %vm2980, %v3481, 0
        %3494 = vmatprep.subr.mxu0 0.0
        %3495 = vmatpush1.msra.mxu0 0.0
        %3496 = vmatprep.subr.mxu0 0.0
        %3497 = vmatpush1.msra.mxu0 0.0
        %3498 = vmatprep.subr.mxu0 0.0
        %3499 = vmatpush1.msra.mxu0 0.0
        %3500 = vmatprep.subr.mxu0 0.0
        %3501 = vmatpush1.msra.mxu0 0.0
        %3502 = vmatprep.subr.mxu0 0.0
        %3503 = vmatpush1.msra.mxu0 0.0
        %3504 = vmatprep.subr.mxu0 0.0
        %3505 = vmatpush1.msra.mxu0 0.0
        %3506 = vmatprep.subr.mxu0 0.0
        %3507 = vmatpush1.msra.mxu0 0.0
        %3508 = vmatprep.subr.mxu0 0.0
        %3509 = vmatpush1.msra.mxu0 0.0
        %3510 = vmatprep.subr.mxu0 0.0
        %3511 = vmatpush1.msra.mxu0 0.0
        %3512 = vmatprep.subr.mxu0 0.0
        %3513 = vmatpush1.msra.mxu0 0.0
        %3514 = vmatprep.subr.mxu0 0.0
        %3515 = vmatpush1.msra.mxu0 0.0
        %3516 = vmatprep.subr.mxu0 0.0
        %3517 = vmatpush1.msra.mxu0 0.0
        %3518 = vmatprep.subr.mxu0 0.0
        %3519 = vmatpush1.msra.mxu0 %v2891
        %3520 = vmatprep.subr.mxu0 0.0
        %3521 = vmatpush1.msra.mxu0 %v2888
        %3522 = vmatprep.subr.mxu0 0.0
        %3523 = vmatpush1.msra.mxu0 %v2885
        %3524 = vmatprep.subr.mxu0 0.0
        %3525 = vmatpush1.msra.mxu0 %v2882
        %3526 = vmatprep.subr.mxu0 0.0
        %3527 = vmatpush2.msra.mxu0 0.0
        %3528 = vmatprep.subr.mxu0 0.0
        %3529 = vmatpush2.msra.mxu0 0.0
        %3530 = vmatprep.subr.mxu0 0.0
        %3531 = vmatpush2.msra.mxu0 0.0
        %3532 = vmatprep.subr.mxu0 0.0
        %3533 = vmatpush2.msra.mxu0 0.0
        %3534 = vmatprep.subr.mxu0 0.0
        %3535 = vmatpush2.msra.mxu0 0.0
        %3536 = vmatprep.subr.mxu0 0.0
        %3537 = vmatpush2.msra.mxu0 0.0
        %3538 = vmatprep.subr.mxu0 0.0
        %3539 = vmatpush2.msra.mxu0 0.0
        %3540 = vmatprep.subr.mxu0 0.0
        %3541 = vmatpush2.msra.mxu0 0.0
        %3542 = vmatprep.subr.mxu0 0.0
        %3543 = vmatpush2.msra.mxu0 0.0
        %3544 = vmatprep.subr.mxu0 0.0
        %3545 = vmatpush2.msra.mxu0 0.0
        %3546 = vmatprep.subr.mxu0 0.0
        %3547 = vmatpush2.msra.mxu0 0.0
        %3548 = vmatprep.subr.mxu0 0.0
        %3549 = vmatpush2.msra.mxu0 0.0
        %3550 = vmatprep.subr.mxu0 0.0
        %3551 = vmatpush2.msra.mxu0 0.0
        %3552 = vmatprep.subr.mxu0 0.0
        %3553 = vmatpush2.msra.mxu0 0.0
        %3554 = vmatprep.subr.mxu0 0.0
        %3555 = vmatpush2.msra.mxu0 0.0
        %3556 = vmatprep.subr.mxu0 0.0
        %3557 = vmatpush2.msra.mxu0 0.0
        %3558 = vmatprep.mubr.f32.mxu0 0.0
        %3559 = vmatmul.mubr.f32.gmra.mxu0 %v3483
        %v3560 = vpop.f32.mrf.mxu0
        %v3561 = vadd.f32 0.0, %v3560
        %v3562 = vpop.f32.mrf.mxu0
        %3563 = vmatprep.mubr.f32.mxu0 0.0
        %3564 = vmatmul.mubr.f32.gmra.mxu0 %v3486
        %v3565 = vpop.f32.mrf.mxu0
        %v3566 = vadd.f32 0.0, %v3565
        %v3567 = vpop.f32.mrf.mxu0
        %3568 = vmatprep.mubr.f32.mxu0 0.0
        %3569 = vmatmul.mubr.f32.gmra.mxu0 %v3489
        %v3570 = vpop.f32.mrf.mxu0
        %v3571 = vadd.f32 0.0, %v3570
        %v3572 = vpop.f32.mrf.mxu0
        %3573 = vmatprep.mubr.f32.mxu0 0.0
        %3574 = vmatmul.mubr.f32.gmra.mxu0 %v3492
        %v3575 = vpop.f32.mrf.mxu0
        %v3576 = vadd.f32 0.0, %v3575
        %v3577 = vpop.f32.mrf.mxu0
        %3578 = vdwg.mxu0
        %v3579 = vadd.f32 %v3473, %v3561
        %v3580 = vadd.f32 %v3474, %v3566
        %v3581 = vadd.f32 %v3475, %v3571
        %v3582 = vadd.f32 %v3476, %v3576
        %s3583 = scalar_lea.vmem [#allocation5], 160
        %v3584 = vld [vmem:[%s3583] sm:$0xff]
        %v3585 = vld [vmem:[%s3583 + $0x8] sm:$0xff]
        %v3586 = vld [vmem:[%s3583 + $0x10] sm:$0xff]
        %v3587 = vld [vmem:[%s3583 + $0x18] sm:$0xff]
        %3592 = vrot.lane.b32.xlu0 %v2927, 127
        %v3593 = vpop.permute.xlu0 %3592
        %3594 = vrot.lane.b32.xlu0 %v2928, 127
        %v3595 = vpop.permute.xlu0 %3594
        %3596 = vrot.lane.b32.xlu0 %v2930, 127
        %v3597 = vpop.permute.xlu0 %3596
        %3598 = vrot.lane.b32.xlu0 %v2931, 127
        %v3599 = vpop.permute.xlu0 %3598
        %3600 = vrot.lane.b32.xlu0 %v2933, 127
        %v3601 = vpop.permute.xlu0 %3600
        %3602 = vrot.lane.b32.xlu0 %v2934, 127
        %v3603 = vpop.permute.xlu0 %3602
        %3604 = vrot.lane.b32.xlu0 %v2936, 127
        %v3605 = vpop.permute.xlu0 %3604
        %3606 = vrot.lane.b32.xlu0 %v2937, 127
        %v3607 = vpop.permute.xlu0 %3606
        %v3608 = vsel %vm1670, %v3593, %v3595
        %v3609 = vsel %vm1670, %v3597, %v3599
        %v3610 = vsel %vm1670, %v3601, %v3603
        %v3611 = vsel %vm1670, %v3605, %v3607
        %v3617 = vsel %vm2980, %v3584, 0
        %v3620 = vsel %vm2980, %v3585, 0
        %v3623 = vsel %vm2980, %v3586, 0
        %v3626 = vsel %vm2980, %v3587, 0
        %3628 = vmatprep.subr.mxu0 0.0
        %3629 = vmatpush1.msra.mxu0 0.0
        %3630 = vmatprep.subr.mxu0 0.0
        %3631 = vmatpush1.msra.mxu0 0.0
        %3632 = vmatprep.subr.mxu0 0.0
        %3633 = vmatpush1.msra.mxu0 0.0
        %3634 = vmatprep.subr.mxu0 0.0
        %3635 = vmatpush1.msra.mxu0 0.0
        %3636 = vmatprep.subr.mxu0 0.0
        %3637 = vmatpush1.msra.mxu0 0.0
        %3638 = vmatprep.subr.mxu0 0.0
        %3639 = vmatpush1.msra.mxu0 0.0
        %3640 = vmatprep.subr.mxu0 0.0
        %3641 = vmatpush1.msra.mxu0 0.0
        %3642 = vmatprep.subr.mxu0 0.0
        %3643 = vmatpush1.msra.mxu0 0.0
        %3644 = vmatprep.subr.mxu0 0.0
        %3645 = vmatpush1.msra.mxu0 0.0
        %3646 = vmatprep.subr.mxu0 0.0
        %3647 = vmatpush1.msra.mxu0 0.0
        %3648 = vmatprep.subr.mxu0 0.0
        %3649 = vmatpush1.msra.mxu0 0.0
        %3650 = vmatprep.subr.mxu0 0.0
        %3651 = vmatpush1.msra.mxu0 0.0
        %3652 = vmatprep.subr.mxu0 0.0
        %3653 = vmatpush1.msra.mxu0 %v3611
        %3654 = vmatprep.subr.mxu0 0.0
        %3655 = vmatpush1.msra.mxu0 %v3610
        %3656 = vmatprep.subr.mxu0 0.0
        %3657 = vmatpush1.msra.mxu0 %v3609
        %3658 = vmatprep.subr.mxu0 0.0
        %3659 = vmatpush1.msra.mxu0 %v3608
        %3660 = vmatprep.subr.mxu0 0.0
        %3661 = vmatpush2.msra.mxu0 0.0
        %3662 = vmatprep.subr.mxu0 0.0
        %3663 = vmatpush2.msra.mxu0 0.0
        %3664 = vmatprep.subr.mxu0 0.0
        %3665 = vmatpush2.msra.mxu0 0.0
        %3666 = vmatprep.subr.mxu0 0.0
        %3667 = vmatpush2.msra.mxu0 0.0
        %3668 = vmatprep.subr.mxu0 0.0
        %3669 = vmatpush2.msra.mxu0 0.0
        %3670 = vmatprep.subr.mxu0 0.0
        %3671 = vmatpush2.msra.mxu0 0.0
        %3672 = vmatprep.subr.mxu0 0.0
        %3673 = vmatpush2.msra.mxu0 0.0
        %3674 = vmatprep.subr.mxu0 0.0
        %3675 = vmatpush2.msra.mxu0 0.0
        %3676 = vmatprep.subr.mxu0 0.0
        %3677 = vmatpush2.msra.mxu0 0.0
        %3678 = vmatprep.subr.mxu0 0.0
        %3679 = vmatpush2.msra.mxu0 0.0
        %3680 = vmatprep.subr.mxu0 0.0
        %3681 = vmatpush2.msra.mxu0 0.0
        %3682 = vmatprep.subr.mxu0 0.0
        %3683 = vmatpush2.msra.mxu0 0.0
        %3684 = vmatprep.subr.mxu0 0.0
        %3685 = vmatpush2.msra.mxu0 0.0
        %3686 = vmatprep.subr.mxu0 0.0
        %3687 = vmatpush2.msra.mxu0 0.0
        %3688 = vmatprep.subr.mxu0 0.0
        %3689 = vmatpush2.msra.mxu0 0.0
        %3690 = vmatprep.subr.mxu0 0.0
        %3691 = vmatpush2.msra.mxu0 0.0
        %3692 = vmatprep.mubr.f32.mxu0 0.0
        %3693 = vmatmul.mubr.f32.gmra.mxu0 %v3617
        %v3694 = vpop.f32.mrf.mxu0
        %v3695 = vadd.f32 0.0, %v3694
        %v3696 = vpop.f32.mrf.mxu0
        %3697 = vmatprep.mubr.f32.mxu0 0.0
        %3698 = vmatmul.mubr.f32.gmra.mxu0 %v3620
        %v3699 = vpop.f32.mrf.mxu0
        %v3700 = vadd.f32 0.0, %v3699
        %v3701 = vpop.f32.mrf.mxu0
        %3702 = vmatprep.mubr.f32.mxu0 0.0
        %3703 = vmatmul.mubr.f32.gmra.mxu0 %v3623
        %v3704 = vpop.f32.mrf.mxu0
        %v3705 = vadd.f32 0.0, %v3704
        %v3706 = vpop.f32.mrf.mxu0
        %3707 = vmatprep.mubr.f32.mxu0 0.0
        %3708 = vmatmul.mubr.f32.gmra.mxu0 %v3626
        %v3709 = vpop.f32.mrf.mxu0
        %v3710 = vadd.f32 0.0, %v3709
        %v3711 = vpop.f32.mrf.mxu0
        %3712 = vdwg.mxu0
        %v3713 = vadd.f32 %v3579, %v3695
        %v3714 = vadd.f32 %v3580, %v3700
        %v3715 = vadd.f32 %v3581, %v3705
        %v3716 = vadd.f32 %v3582, %v3710
        %s3717 = scalar_lea.vmem [#allocation5], 192
        %v3718 = vld [vmem:[%s3717] sm:$0xff]
        %v3719 = vld [vmem:[%s3717 + $0x8] sm:$0xff]
        %v3720 = vld [vmem:[%s3717 + $0x10] sm:$0xff]
        %v3721 = vld [vmem:[%s3717 + $0x18] sm:$0xff]
        %3726 = vrot.lane.b32.xlu0 %v2906, 113
        %v3727 = vpop.permute.xlu0 %3726
        %3728 = vrot.lane.b32.xlu0 %v2907, 113
        %v3729 = vpop.permute.xlu0 %3728
        %3730 = vrot.lane.b32.xlu0 %v2909, 113
        %v3731 = vpop.permute.xlu0 %3730
        %3732 = vrot.lane.b32.xlu0 %v2910, 113
        %v3733 = vpop.permute.xlu0 %3732
        %3734 = vrot.lane.b32.xlu0 %v2912, 113
        %v3735 = vpop.permute.xlu0 %3734
        %3736 = vrot.lane.b32.xlu0 %v2913, 113
        %v3737 = vpop.permute.xlu0 %3736
        %3738 = vrot.lane.b32.xlu0 %v2915, 113
        %v3739 = vpop.permute.xlu0 %3738
        %3740 = vrot.lane.b32.xlu0 %v2916, 113
        %v3741 = vpop.permute.xlu0 %3740
        %vm3742 = vcmask 924672
        %v3743 = vsel %vm3742, %v3727, %v3729
        %v3744 = vsel %vm3742, %v3731, %v3733
        %v3745 = vsel %vm3742, %v3735, %v3737
        %v3746 = vsel %vm3742, %v3739, %v3741
        %v3752 = vsel %vm2980, %v3718, 0
        %v3755 = vsel %vm2980, %v3719, 0
        %v3758 = vsel %vm2980, %v3720, 0
        %v3761 = vsel %vm2980, %v3721, 0
        %3763 = vmatprep.subr.mxu0 0.0
        %3764 = vmatpush1.msra.mxu0 0.0
        %3765 = vmatprep.subr.mxu0 0.0
        %3766 = vmatpush1.msra.mxu0 0.0
        %3767 = vmatprep.subr.mxu0 0.0
        %3768 = vmatpush1.msra.mxu0 0.0
        %3769 = vmatprep.subr.mxu0 0.0
        %3770 = vmatpush1.msra.mxu0 0.0
        %3771 = vmatprep.subr.mxu0 0.0
        %3772 = vmatpush1.msra.mxu0 0.0
        %3773 = vmatprep.subr.mxu0 0.0
        %3774 = vmatpush1.msra.mxu0 0.0
        %3775 = vmatprep.subr.mxu0 0.0
        %3776 = vmatpush1.msra.mxu0 0.0
        %3777 = vmatprep.subr.mxu0 0.0
        %3778 = vmatpush1.msra.mxu0 0.0
        %3779 = vmatprep.subr.mxu0 0.0
        %3780 = vmatpush1.msra.mxu0 0.0
        %3781 = vmatprep.subr.mxu0 0.0
        %3782 = vmatpush1.msra.mxu0 0.0
        %3783 = vmatprep.subr.mxu0 0.0
        %3784 = vmatpush1.msra.mxu0 0.0
        %3785 = vmatprep.subr.mxu0 0.0
        %3786 = vmatpush1.msra.mxu0 0.0
        %3787 = vmatprep.subr.mxu0 0.0
        %3788 = vmatpush1.msra.mxu0 %v3746
        %3789 = vmatprep.subr.mxu0 0.0
        %3790 = vmatpush1.msra.mxu0 %v3745
        %3791 = vmatprep.subr.mxu0 0.0
        %3792 = vmatpush1.msra.mxu0 %v3744
        %3793 = vmatprep.subr.mxu0 0.0
        %3794 = vmatpush1.msra.mxu0 %v3743
        %3795 = vmatprep.subr.mxu0 0.0
        %3796 = vmatpush2.msra.mxu0 0.0
        %3797 = vmatprep.subr.mxu0 0.0
        %3798 = vmatpush2.msra.mxu0 0.0
        %3799 = vmatprep.subr.mxu0 0.0
        %3800 = vmatpush2.msra.mxu0 0.0
        %3801 = vmatprep.subr.mxu0 0.0
        %3802 = vmatpush2.msra.mxu0 0.0
        %3803 = vmatprep.subr.mxu0 0.0
        %3804 = vmatpush2.msra.mxu0 0.0
        %3805 = vmatprep.subr.mxu0 0.0
        %3806 = vmatpush2.msra.mxu0 0.0
        %3807 = vmatprep.subr.mxu0 0.0
        %3808 = vmatpush2.msra.mxu0 0.0
        %3809 = vmatprep.subr.mxu0 0.0
        %3810 = vmatpush2.msra.mxu0 0.0
        %3811 = vmatprep.subr.mxu0 0.0
        %3812 = vmatpush2.msra.mxu0 0.0
        %3813 = vmatprep.subr.mxu0 0.0
        %3814 = vmatpush2.msra.mxu0 0.0
        %3815 = vmatprep.subr.mxu0 0.0
        %3816 = vmatpush2.msra.mxu0 0.0
        %3817 = vmatprep.subr.mxu0 0.0
        %3818 = vmatpush2.msra.mxu0 0.0
        %3819 = vmatprep.subr.mxu0 0.0
        %3820 = vmatpush2.msra.mxu0 0.0
        %3821 = vmatprep.subr.mxu0 0.0
        %3822 = vmatpush2.msra.mxu0 0.0
        %3823 = vmatprep.subr.mxu0 0.0
        %3824 = vmatpush2.msra.mxu0 0.0
        %3825 = vmatprep.subr.mxu0 0.0
        %3826 = vmatpush2.msra.mxu0 0.0
        %3827 = vmatprep.mubr.f32.mxu0 0.0
        %3828 = vmatmul.mubr.f32.gmra.mxu0 %v3752
        %v3829 = vpop.f32.mrf.mxu0
        %v3830 = vadd.f32 0.0, %v3829
        %v3831 = vpop.f32.mrf.mxu0
        %3832 = vmatprep.mubr.f32.mxu0 0.0
        %3833 = vmatmul.mubr.f32.gmra.mxu0 %v3755
        %v3834 = vpop.f32.mrf.mxu0
        %v3835 = vadd.f32 0.0, %v3834
        %v3836 = vpop.f32.mrf.mxu0
        %3837 = vmatprep.mubr.f32.mxu0 0.0
        %3838 = vmatmul.mubr.f32.gmra.mxu0 %v3758
        %v3839 = vpop.f32.mrf.mxu0
        %v3840 = vadd.f32 0.0, %v3839
        %v3841 = vpop.f32.mrf.mxu0
        %3842 = vmatprep.mubr.f32.mxu0 0.0
        %3843 = vmatmul.mubr.f32.gmra.mxu0 %v3761
        %v3844 = vpop.f32.mrf.mxu0
        %v3845 = vadd.f32 0.0, %v3844
        %v3846 = vpop.f32.mrf.mxu0
        %3847 = vdwg.mxu0
        %v3848 = vadd.f32 %v3713, %v3830
        %v3849 = vadd.f32 %v3714, %v3835
        %v3850 = vadd.f32 %v3715, %v3840
        %v3851 = vadd.f32 %v3716, %v3845
        %s3852 = scalar_lea.vmem [#allocation5], 224
        %v3853 = vld [vmem:[%s3852] sm:$0xff]
        %v3854 = vld [vmem:[%s3852 + $0x8] sm:$0xff]
        %v3855 = vld [vmem:[%s3852 + $0x10] sm:$0xff]
        %v3856 = vld [vmem:[%s3852 + $0x18] sm:$0xff]
        %3861 = vrot.lane.b32.xlu0 %v2882, 112
        %v3862 = vpop.permute.xlu0 %3861
        %3863 = vrot.lane.b32.xlu0 %v2883, 112
        %v3864 = vpop.permute.xlu0 %3863
        %3865 = vrot.lane.b32.xlu0 %v2885, 112
        %v3866 = vpop.permute.xlu0 %3865
        %3867 = vrot.lane.b32.xlu0 %v2886, 112
        %v3868 = vpop.permute.xlu0 %3867
        %3869 = vrot.lane.b32.xlu0 %v2888, 112
        %v3870 = vpop.permute.xlu0 %3869
        %3871 = vrot.lane.b32.xlu0 %v2889, 112
        %v3872 = vpop.permute.xlu0 %3871
        %3873 = vrot.lane.b32.xlu0 %v2891, 112
        %v3874 = vpop.permute.xlu0 %3873
        %3875 = vrot.lane.b32.xlu0 %v2892, 112
        %v3876 = vpop.permute.xlu0 %3875
        %vm3877 = vcmask 916480
        %v3878 = vsel %vm3877, %v3862, %v3864
        %v3879 = vsel %vm3877, %v3866, %v3868
        %v3880 = vsel %vm3877, %v3870, %v3872
        %v3881 = vsel %vm3877, %v3874, %v3876
        %v3887 = vsel %vm2980, %v3853, 0
        %v3890 = vsel %vm2980, %v3854, 0
        %v3893 = vsel %vm2980, %v3855, 0
        %v3896 = vsel %vm2980, %v3856, 0
        %3898 = vmatprep.subr.mxu0 0.0
        %3899 = vmatpush1.msra.mxu0 0.0
        %3900 = vmatprep.subr.mxu0 0.0
        %3901 = vmatpush1.msra.mxu0 0.0
        %3902 = vmatprep.subr.mxu0 0.0
        %3903 = vmatpush1.msra.mxu0 0.0
        %3904 = vmatprep.subr.mxu0 0.0
        %3905 = vmatpush1.msra.mxu0 0.0
        %3906 = vmatprep.subr.mxu0 0.0
        %3907 = vmatpush1.msra.mxu0 0.0
        %3908 = vmatprep.subr.mxu0 0.0
        %3909 = vmatpush1.msra.mxu0 0.0
        %3910 = vmatprep.subr.mxu0 0.0
        %3911 = vmatpush1.msra.mxu0 0.0
        %3912 = vmatprep.subr.mxu0 0.0
        %3913 = vmatpush1.msra.mxu0 0.0
        %3914 = vmatprep.subr.mxu0 0.0
        %3915 = vmatpush1.msra.mxu0 0.0
        %3916 = vmatprep.subr.mxu0 0.0
        %3917 = vmatpush1.msra.mxu0 0.0
        %3918 = vmatprep.subr.mxu0 0.0
        %3919 = vmatpush1.msra.mxu0 0.0
        %3920 = vmatprep.subr.mxu0 0.0
        %3921 = vmatpush1.msra.mxu0 0.0
        %3922 = vmatprep.subr.mxu0 0.0
        %3923 = vmatpush1.msra.mxu0 %v3881
        %3924 = vmatprep.subr.mxu0 0.0
        %3925 = vmatpush1.msra.mxu0 %v3880
        %3926 = vmatprep.subr.mxu0 0.0
        %3927 = vmatpush1.msra.mxu0 %v3879
        %3928 = vmatprep.subr.mxu0 0.0
        %3929 = vmatpush1.msra.mxu0 %v3878
        %3930 = vmatprep.subr.mxu0 0.0
        %3931 = vmatpush2.msra.mxu0 0.0
        %3932 = vmatprep.subr.mxu0 0.0
        %3933 = vmatpush2.msra.mxu0 0.0
        %3934 = vmatprep.subr.mxu0 0.0
        %3935 = vmatpush2.msra.mxu0 0.0
        %3936 = vmatprep.subr.mxu0 0.0
        %3937 = vmatpush2.msra.mxu0 0.0
        %3938 = vmatprep.subr.mxu0 0.0
        %3939 = vmatpush2.msra.mxu0 0.0
        %3940 = vmatprep.subr.mxu0 0.0
        %3941 = vmatpush2.msra.mxu0 0.0
        %3942 = vmatprep.subr.mxu0 0.0
        %3943 = vmatpush2.msra.mxu0 0.0
        %3944 = vmatprep.subr.mxu0 0.0
        %3945 = vmatpush2.msra.mxu0 0.0
        %3946 = vmatprep.subr.mxu0 0.0
        %3947 = vmatpush2.msra.mxu0 0.0
        %3948 = vmatprep.subr.mxu0 0.0
        %3949 = vmatpush2.msra.mxu0 0.0
        %3950 = vmatprep.subr.mxu0 0.0
        %3951 = vmatpush2.msra.mxu0 0.0
        %3952 = vmatprep.subr.mxu0 0.0
        %3953 = vmatpush2.msra.mxu0 0.0
        %3954 = vmatprep.subr.mxu0 0.0
        %3955 = vmatpush2.msra.mxu0 0.0
        %3956 = vmatprep.subr.mxu0 0.0
        %3957 = vmatpush2.msra.mxu0 0.0
        %3958 = vmatprep.subr.mxu0 0.0
        %3959 = vmatpush2.msra.mxu0 0.0
        %3960 = vmatprep.subr.mxu0 0.0
        %3961 = vmatpush2.msra.mxu0 0.0
        %3962 = vmatprep.mubr.f32.mxu0 0.0
        %3963 = vmatmul.mubr.f32.gmra.mxu0 %v3887
        %v3964 = vpop.f32.mrf.mxu0
        %v3965 = vadd.f32 0.0, %v3964
        %v3966 = vpop.f32.mrf.mxu0
        %3967 = vmatprep.mubr.f32.mxu0 0.0
        %3968 = vmatmul.mubr.f32.gmra.mxu0 %v3890
        %v3969 = vpop.f32.mrf.mxu0
        %v3970 = vadd.f32 0.0, %v3969
        %v3971 = vpop.f32.mrf.mxu0
        %3972 = vmatprep.mubr.f32.mxu0 0.0
        %3973 = vmatmul.mubr.f32.gmra.mxu0 %v3893
        %v3974 = vpop.f32.mrf.mxu0
        %v3975 = vadd.f32 0.0, %v3974
        %v3976 = vpop.f32.mrf.mxu0
        %3977 = vmatprep.mubr.f32.mxu0 0.0
        %3978 = vmatmul.mubr.f32.gmra.mxu0 %v3896
        %v3979 = vpop.f32.mrf.mxu0
        %v3980 = vadd.f32 0.0, %v3979
        %v3981 = vpop.f32.mrf.mxu0
        %3982 = vdwg.mxu0
        %v3983 = vadd.f32 %v3848, %v3965
        %v3984 = vadd.f32 %v3849, %v3970
        %v3985 = vadd.f32 %v3850, %v3975
        %v3986 = vadd.f32 %v3851, %v3980
        %s3987 = scalar_lea.vmem [#allocation5], 256
        %v3988 = vld [vmem:[%s3987] sm:$0xff]
        %v3989 = vld [vmem:[%s3987 + $0x8] sm:$0xff]
        %v3990 = vld [vmem:[%s3987 + $0x10] sm:$0xff]
        %v3991 = vld [vmem:[%s3987 + $0x18] sm:$0xff]
        %3992 = vrot.lane.b32.xlu0 %v2927, 111
        %v3993 = vpop.permute.xlu0 %3992
        %3994 = vrot.lane.b32.xlu0 %v2928, 111
        %v3995 = vpop.permute.xlu0 %3994
        %3996 = vrot.lane.b32.xlu0 %v2930, 111
        %v3997 = vpop.permute.xlu0 %3996
        %3998 = vrot.lane.b32.xlu0 %v2931, 111
        %v3999 = vpop.permute.xlu0 %3998
        %4000 = vrot.lane.b32.xlu0 %v2933, 111
        %v4001 = vpop.permute.xlu0 %4000
        %4002 = vrot.lane.b32.xlu0 %v2934, 111
        %v4003 = vpop.permute.xlu0 %4002
        %4004 = vrot.lane.b32.xlu0 %v2936, 111
        %v4005 = vpop.permute.xlu0 %4004
        %4006 = vrot.lane.b32.xlu0 %v2937, 111
        %v4007 = vpop.permute.xlu0 %4006
        %vm4008 = vcmask 908288
        %v4009 = vsel %vm4008, %v3993, %v3995
        %v4010 = vsel %vm4008, %v3997, %v3999
        %v4011 = vsel %vm4008, %v4001, %v4003
        %v4012 = vsel %vm4008, %v4005, %v4007
        %v4018 = vsel %vm2980, %v3988, 0
        %v4021 = vsel %vm2980, %v3989, 0
        %v4024 = vsel %vm2980, %v3990, 0
        %v4027 = vsel %vm2980, %v3991, 0
        %4029 = vmatprep.subr.mxu0 0.0
        %4030 = vmatpush1.msra.mxu0 0.0
        %4031 = vmatprep.subr.mxu0 0.0
        %4032 = vmatpush1.msra.mxu0 0.0
        %4033 = vmatprep.subr.mxu0 0.0
        %4034 = vmatpush1.msra.mxu0 0.0
        %4035 = vmatprep.subr.mxu0 0.0
        %4036 = vmatpush1.msra.mxu0 0.0
        %4037 = vmatprep.subr.mxu0 0.0
        %4038 = vmatpush1.msra.mxu0 0.0
        %4039 = vmatprep.subr.mxu0 0.0
        %4040 = vmatpush1.msra.mxu0 0.0
        %4041 = vmatprep.subr.mxu0 0.0
        %4042 = vmatpush1.msra.mxu0 0.0
        %4043 = vmatprep.subr.mxu0 0.0
        %4044 = vmatpush1.msra.mxu0 0.0
        %4045 = vmatprep.subr.mxu0 0.0
        %4046 = vmatpush1.msra.mxu0 0.0
        %4047 = vmatprep.subr.mxu0 0.0
        %4048 = vmatpush1.msra.mxu0 0.0
        %4049 = vmatprep.subr.mxu0 0.0
        %4050 = vmatpush1.msra.mxu0 0.0
        %4051 = vmatprep.subr.mxu0 0.0
        %4052 = vmatpush1.msra.mxu0 0.0
        %4053 = vmatprep.subr.mxu0 0.0
        %4054 = vmatpush1.msra.mxu0 %v4012
        %4055 = vmatprep.subr.mxu0 0.0
        %4056 = vmatpush1.msra.mxu0 %v4011
        %4057 = vmatprep.subr.mxu0 0.0
        %4058 = vmatpush1.msra.mxu0 %v4010
        %4059 = vmatprep.subr.mxu0 0.0
        %4060 = vmatpush1.msra.mxu0 %v4009
        %4061 = vmatprep.subr.mxu0 0.0
        %4062 = vmatpush2.msra.mxu0 0.0
        %4063 = vmatprep.subr.mxu0 0.0
        %4064 = vmatpush2.msra.mxu0 0.0
        %4065 = vmatprep.subr.mxu0 0.0
        %4066 = vmatpush2.msra.mxu0 0.0
        %4067 = vmatprep.subr.mxu0 0.0
        %4068 = vmatpush2.msra.mxu0 0.0
        %4069 = vmatprep.subr.mxu0 0.0
        %4070 = vmatpush2.msra.mxu0 0.0
        %4071 = vmatprep.subr.mxu0 0.0
        %4072 = vmatpush2.msra.mxu0 0.0
        %4073 = vmatprep.subr.mxu0 0.0
        %4074 = vmatpush2.msra.mxu0 0.0
        %4075 = vmatprep.subr.mxu0 0.0
        %4076 = vmatpush2.msra.mxu0 0.0
        %4077 = vmatprep.subr.mxu0 0.0
        %4078 = vmatpush2.msra.mxu0 0.0
        %4079 = vmatprep.subr.mxu0 0.0
        %4080 = vmatpush2.msra.mxu0 0.0
        %4081 = vmatprep.subr.mxu0 0.0
        %4082 = vmatpush2.msra.mxu0 0.0
        %4083 = vmatprep.subr.mxu0 0.0
        %4084 = vmatpush2.msra.mxu0 0.0
        %4085 = vmatprep.subr.mxu0 0.0
        %4086 = vmatpush2.msra.mxu0 0.0
        %4087 = vmatprep.subr.mxu0 0.0
        %4088 = vmatpush2.msra.mxu0 0.0
        %4089 = vmatprep.subr.mxu0 0.0
        %4090 = vmatpush2.msra.mxu0 0.0
        %4091 = vmatprep.subr.mxu0 0.0
        %4092 = vmatpush2.msra.mxu0 0.0
        %4093 = vmatprep.mubr.f32.mxu0 0.0
        %4094 = vmatmul.mubr.f32.gmra.mxu0 %v4018
        %v4095 = vpop.f32.mrf.mxu0
        %v4096 = vadd.f32 0.0, %v4095
        %v4097 = vpop.f32.mrf.mxu0
        %4098 = vmatprep.mubr.f32.mxu0 0.0
        %4099 = vmatmul.mubr.f32.gmra.mxu0 %v4021
        %v4100 = vpop.f32.mrf.mxu0
        %v4101 = vadd.f32 0.0, %v4100
        %v4102 = vpop.f32.mrf.mxu0
        %4103 = vmatprep.mubr.f32.mxu0 0.0
        %4104 = vmatmul.mubr.f32.gmra.mxu0 %v4024
        %v4105 = vpop.f32.mrf.mxu0
        %v4106 = vadd.f32 0.0, %v4105
        %v4107 = vpop.f32.mrf.mxu0
        %4108 = vmatprep.mubr.f32.mxu0 0.0
        %4109 = vmatmul.mubr.f32.gmra.mxu0 %v4027
        %v4110 = vpop.f32.mrf.mxu0
        %v4111 = vadd.f32 0.0, %v4110
        %v4112 = vpop.f32.mrf.mxu0
        %4113 = vdwg.mxu0
        %v4114 = vadd.f32 %v3983, %v4096
        %v4115 = vadd.f32 %v3984, %v4101
        %v4116 = vadd.f32 %v3985, %v4106
        %v4117 = vadd.f32 %v3986, %v4111
        %v4118 = vld [vmem:[%s5] sm:$0xff]
        %v4119 = vld [vmem:[%s5 + $0x8] sm:$0xff]
        %v4120 = vld [vmem:[%s5 + $0x10] sm:$0xff]
        %v4121 = vld [vmem:[%s5 + $0x18] sm:$0xff]
        %4123 = vset.pattern.permute.xlu0 0
        %4124 = vperm.xlu0 %4123, %v4118
        %v4125 = vpop.permute.xlu0 %4124
        %4128 = vset.pattern.permute.xlu0 0
        %4129 = vperm.xlu0 %4128, %v4119
        %v4130 = vpop.permute.xlu0 %4129
        %4133 = vset.pattern.permute.xlu0 0
        %4134 = vperm.xlu0 %4133, %v4120
        %v4135 = vpop.permute.xlu0 %4134
        %4138 = vset.pattern.permute.xlu0 0
        %4139 = vperm.xlu0 %4138, %v4121
        %v4140 = vpop.permute.xlu0 %4139
        %v4142 = vmul.f32 %v4114, %v4125
        %v4143 = vmul.f32 %v4115, %v4130
        %v4144 = vmul.f32 %v4116, %v4135
        %v4145 = vmul.f32 %v4117, %v4140
        %v4146 = vld [vmem:[%s6] sm:$0xff]
        %v4147 = vld [vmem:[%s6 + $0x8] sm:$0xff]
        %v4148 = vld [vmem:[%s6 + $0x10] sm:$0xff]
        %v4149 = vld [vmem:[%s6 + $0x18] sm:$0xff]
        %4151 = vset.pattern.permute.xlu0 0
        %4152 = vperm.xlu0 %4151, %v4146
        %v4153 = vpop.permute.xlu0 %4152
        %4156 = vset.pattern.permute.xlu0 0
        %4157 = vperm.xlu0 %4156, %v4147
        %v4158 = vpop.permute.xlu0 %4157
        %4161 = vset.pattern.permute.xlu0 0
        %4162 = vperm.xlu0 %4161, %v4148
        %v4163 = vpop.permute.xlu0 %4162
        %4166 = vset.pattern.permute.xlu0 0
        %4167 = vperm.xlu0 %4166, %v4149
        %v4168 = vpop.permute.xlu0 %4167
        %v4170 = vadd.f32 %v4142, %v4153
        %v4171 = vadd.f32 %v4143, %v4158
        %v4172 = vadd.f32 %v4144, %v4163
        %v4173 = vadd.f32 %v4145, %v4168
        %v4174 = vmax.f32 %v4170, 0.0
        %v4175 = vmax.f32 %v4171, 0.0
        %v4176 = vmax.f32 %v4172, 0.0
        %v4177 = vmax.f32 %v4173, 0.0
        %v4178 = vld [vmem:[%s10] sm:$0xff]
        %v4179 = vld [vmem:[%s10 + $0x8] sm:$0xff]
        %v4180 = vld [vmem:[%s10 + $0x10] sm:$0xff]
        %v4181 = vld [vmem:[%s10 + $0x18] sm:$0xff]
        %v4182 = vld [vmem:[%s10 + $0x20] sm:$0xff]
        %v4183 = vld [vmem:[%s10 + $0x28] sm:$0xff]
        %v4184 = vld [vmem:[%s10 + $0x30] sm:$0xff]
        %v4185 = vld [vmem:[%s10 + $0x38] sm:$0xff]
        %v4186 = vld [vmem:[%s10 + $0x40] sm:$0xff]
        %v4187 = vld [vmem:[%s10 + $0x48] sm:$0xff]
        %v4188 = vld [vmem:[%s10 + $0x50] sm:$0xff]
        %v4189 = vld [vmem:[%s10 + $0x58] sm:$0xff]
        %v4190 = vld [vmem:[%s10 + $0x60] sm:$0xff]
        %v4191 = vld [vmem:[%s10 + $0x68] sm:$0xff]
        %v4192 = vld [vmem:[%s10 + $0x70] sm:$0xff]
        %v4193 = vld [vmem:[%s10 + $0x78] sm:$0xff]
        %4194 = vmatprep.subr.mxu0 0.0
        %4195 = vmatpush1.msra.mxu0 %v4193
        %4196 = vmatprep.subr.mxu0 0.0
        %4197 = vmatpush1.msra.mxu0 %v4192
        %4198 = vmatprep.subr.mxu0 0.0
        %4199 = vmatpush1.msra.mxu0 %v4191
        %4200 = vmatprep.subr.mxu0 0.0
        %4201 = vmatpush1.msra.mxu0 %v4190
        %4202 = vmatprep.subr.mxu0 0.0
        %4203 = vmatpush1.msra.mxu0 %v4189
        %4204 = vmatprep.subr.mxu0 0.0
        %4205 = vmatpush1.msra.mxu0 %v4188
        %4206 = vmatprep.subr.mxu0 0.0
        %4207 = vmatpush1.msra.mxu0 %v4187
        %4208 = vmatprep.subr.mxu0 0.0
        %4209 = vmatpush1.msra.mxu0 %v4186
        %4210 = vmatprep.subr.mxu0 0.0
        %4211 = vmatpush1.msra.mxu0 %v4185
        %4212 = vmatprep.subr.mxu0 0.0
        %4213 = vmatpush1.msra.mxu0 %v4184
        %4214 = vmatprep.subr.mxu0 0.0
        %4215 = vmatpush1.msra.mxu0 %v4183
        %4216 = vmatprep.subr.mxu0 0.0
        %4217 = vmatpush1.msra.mxu0 %v4182
        %4218 = vmatprep.subr.mxu0 0.0
        %4219 = vmatpush1.msra.mxu0 %v4181
        %4220 = vmatprep.subr.mxu0 0.0
        %4221 = vmatpush1.msra.mxu0 %v4180
        %4222 = vmatprep.subr.mxu0 0.0
        %4223 = vmatpush1.msra.mxu0 %v4179
        %4224 = vmatprep.subr.mxu0 0.0
        %4225 = vmatpush1.msra.mxu0 %v4178
        %4226 = vmatprep.subr.mxu0 0.0
        %4227 = vmatpush2.msra.mxu0 0.0
        %4228 = vmatprep.subr.mxu0 0.0
        %4229 = vmatpush2.msra.mxu0 0.0
        %4230 = vmatprep.subr.mxu0 0.0
        %4231 = vmatpush2.msra.mxu0 0.0
        %4232 = vmatprep.subr.mxu0 0.0
        %4233 = vmatpush2.msra.mxu0 0.0
        %4234 = vmatprep.subr.mxu0 0.0
        %4235 = vmatpush2.msra.mxu0 0.0
        %4236 = vmatprep.subr.mxu0 0.0
        %4237 = vmatpush2.msra.mxu0 0.0
        %4238 = vmatprep.subr.mxu0 0.0
        %4239 = vmatpush2.msra.mxu0 0.0
        %4240 = vmatprep.subr.mxu0 0.0
        %4241 = vmatpush2.msra.mxu0 0.0
        %4242 = vmatprep.subr.mxu0 0.0
        %4243 = vmatpush2.msra.mxu0 0.0
        %4244 = vmatprep.subr.mxu0 0.0
        %4245 = vmatpush2.msra.mxu0 0.0
        %4246 = vmatprep.subr.mxu0 0.0
        %4247 = vmatpush2.msra.mxu0 0.0
        %4248 = vmatprep.subr.mxu0 0.0
        %4249 = vmatpush2.msra.mxu0 0.0
        %4250 = vmatprep.subr.mxu0 0.0
        %4251 = vmatpush2.msra.mxu0 0.0
        %4252 = vmatprep.subr.mxu0 0.0
        %4253 = vmatpush2.msra.mxu0 0.0
        %4254 = vmatprep.subr.mxu0 0.0
        %4255 = vmatpush2.msra.mxu0 0.0
        %4256 = vmatprep.subr.mxu0 0.0
        %4257 = vmatpush2.msra.mxu0 0.0
        %4258 = vmatprep.mubr.f32.mxu0 0.0
        %4259 = vmatmul.mubr.f32.gmra.mxu0 %v4174
        %v4260 = vpop.f32.mrf.mxu0
        %v4261 = vadd.f32 0.0, %v4260
        %v4262 = vpop.f32.mrf.mxu0
        %4263 = vmatprep.mubr.f32.mxu0 0.0
        %4264 = vmatmul.mubr.f32.gmra.mxu0 %v4175
        %v4265 = vpop.f32.mrf.mxu0
        %v4266 = vadd.f32 0.0, %v4265
        %v4267 = vpop.f32.mrf.mxu0
        %4268 = vmatprep.mubr.f32.mxu0 0.0
        %4269 = vmatmul.mubr.f32.gmra.mxu0 %v4176
        %v4270 = vpop.f32.mrf.mxu0
        %v4271 = vadd.f32 0.0, %v4270
        %v4272 = vpop.f32.mrf.mxu0
        %4273 = vmatprep.mubr.f32.mxu0 0.0
        %4274 = vmatmul.mubr.f32.gmra.mxu0 %v4177
        %v4275 = vpop.f32.mrf.mxu0
        %v4276 = vadd.f32 0.0, %v4275
        %v4277 = vpop.f32.mrf.mxu0
        %4278 = vdwg.mxu0
        %4279 = vst [vmem:[#allocation2] sm:$0xff] 0.0
        %4280 = vst [vmem:[#allocation2 + $0x30] sm:$0xff] 0.0
        %4281 = vst [vmem:[#allocation2 + $0x60] sm:$0xff] 0.0
        %4282 = vst [vmem:[#allocation2 + $0x90] sm:$0xff] 0.0
        %vm4283 = vcmask 1047808
        %4284 = vst.msk [vmem:[#allocation2 + $0x8] sm:$0xff] %vm4283, 0.0
        %4285 = vst.msk [vmem:[#allocation2 + $0x10] sm:$0xff] %vm2980, 0.0
        %4286 = vst.msk [vmem:[#allocation2 + $0x38] sm:$0xff] %vm4283, 0.0
        %4287 = vst.msk [vmem:[#allocation2 + $0x40] sm:$0xff] %vm2980, 0.0
        %4288 = vst.msk [vmem:[#allocation2 + $0x68] sm:$0xff] %vm4283, 0.0
        %4289 = vst.msk [vmem:[#allocation2 + $0x70] sm:$0xff] %vm2980, 0.0
        %4290 = vst.msk [vmem:[#allocation2 + $0x98] sm:$0xff] %vm4283, 0.0
        %4291 = vst.msk [vmem:[#allocation2 + $0xa0] sm:$0xff] %vm2980, 0.0
        %4292 = vst.msk [vmem:[#allocation2 + $0x8] sm:$0xff] %vm2980, %v4261
        %4293 = vst.msk [vmem:[#allocation2 + $0x38] sm:$0xff] %vm2980, %v4266
        %4294 = vst.msk [vmem:[#allocation2 + $0x68] sm:$0xff] %vm2980, %v4271
        %4295 = vst.msk [vmem:[#allocation2 + $0x98] sm:$0xff] %vm2980, %v4276
        %v4296 = vld [vmem:[#allocation2] sm:$0xff]
        %v4297 = vld [vmem:[#allocation2 + $0x8] sm:$0xff]
        %v4298 = vld [vmem:[#allocation2 + $0x30] sm:$0xff]
        %v4299 = vld [vmem:[#allocation2 + $0x38] sm:$0xff]
        %v4300 = vld [vmem:[#allocation2 + $0x60] sm:$0xff]
        %v4301 = vld [vmem:[#allocation2 + $0x68] sm:$0xff]
        %v4302 = vld [vmem:[#allocation2 + $0x90] sm:$0xff]
        %v4303 = vld [vmem:[#allocation2 + $0x98] sm:$0xff]
        %v4304 = vand.u32 %v455, 3
        %v4305 = vand.u32 %v456, 3
        %vm4306 = vcmp.eq.s32.totalorder %v4304, 3
        %vm4307 = vcmp.eq.s32.totalorder %v4305, 3
        %v4308 = vsel %vm4306, 1, 0
        %v4309 = vsel %vm4307, 1, 0
        %vm4310 = vcmp.eq.s32.totalorder %v4308, 1
        %vm4311 = vcmp.eq.s32.totalorder %v4309, 1
        %v4312 = vsel %vm4310, 0.0, %v4296
        %v4313 = vsel %vm4311, 0.0, %v4297
        %v4314 = vsel %vm4310, 0.0, %v4298
        %v4315 = vsel %vm4311, 0.0, %v4299
        %v4316 = vsel %vm4310, 0.0, %v4300
        %v4317 = vsel %vm4311, 0.0, %v4301
        %v4318 = vsel %vm4310, 0.0, %v4302
        %v4319 = vsel %vm4311, 0.0, %v4303
        %vm4320 = vcmp.eq.s32.totalorder %v4304, 0
        %vm4321 = vcmp.eq.s32.totalorder %v4305, 0
        %v4322 = vsel %vm4320, 1, 0
        %v4323 = vsel %vm4321, 1, 0
        %vm4324 = vcmp.eq.s32.totalorder %v4322, 1
        %vm4325 = vcmp.eq.s32.totalorder %v4323, 1
        %v4326 = vsel %vm4324, 0.0, %v4296
        %v4327 = vsel %vm4325, 0.0, %v4297
        %v4328 = vsel %vm4324, 0.0, %v4298
        %v4329 = vsel %vm4325, 0.0, %v4299
        %v4330 = vsel %vm4324, 0.0, %v4300
        %v4331 = vsel %vm4325, 0.0, %v4301
        %v4332 = vsel %vm4324, 0.0, %v4302
        %v4333 = vsel %vm4325, 0.0, %v4303
        %v4334 = vld [vmem:[#allocation7] sm:$0xff]
        %v4335 = vld [vmem:[#allocation7 + $0x8] sm:$0xff]
        %v4336 = vld [vmem:[#allocation7 + $0x10] sm:$0xff]
        %v4337 = vld [vmem:[#allocation7 + $0x18] sm:$0xff]
        %s4338 = scalar_lea.vmem [#allocation7], 32
        %v4339 = vld [vmem:[%s4338] sm:$0xff]
        %v4340 = vld [vmem:[%s4338 + $0x8] sm:$0xff]
        %v4341 = vld [vmem:[%s4338 + $0x10] sm:$0xff]
        %v4342 = vld [vmem:[%s4338 + $0x18] sm:$0xff]
        %4351 = vrot.lane.b32.xlu0 %v4296, 4
        %v4352 = vpop.permute.xlu0 %4351
        %4353 = vrot.lane.b32.xlu0 %v4297, 4
        %v4354 = vpop.permute.xlu0 %4353
        %4355 = vrot.lane.b32.xlu0 %v4298, 4
        %v4356 = vpop.permute.xlu0 %4355
        %4357 = vrot.lane.b32.xlu0 %v4299, 4
        %v4358 = vpop.permute.xlu0 %4357
        %4359 = vrot.lane.b32.xlu0 %v4300, 4
        %v4360 = vpop.permute.xlu0 %4359
        %4361 = vrot.lane.b32.xlu0 %v4301, 4
        %v4362 = vpop.permute.xlu0 %4361
        %4363 = vrot.lane.b32.xlu0 %v4302, 4
        %v4364 = vpop.permute.xlu0 %4363
        %4365 = vrot.lane.b32.xlu0 %v4303, 4
        %v4366 = vpop.permute.xlu0 %4365
        %v4367 = vsel %vm544, %v4352, %v4354
        %v4368 = vsel %vm544, %v4356, %v4358
        %v4369 = vsel %vm544, %v4360, %v4362
        %v4370 = vsel %vm544, %v4364, %v4366
        %v4376 = vsel %vm2980, %v4339, 0
        %v4379 = vsel %vm2980, %v4340, 0
        %v4382 = vsel %vm2980, %v4341, 0
        %v4385 = vsel %vm2980, %v4342, 0
        %4387 = vmatprep.subr.mxu0 0.0
        %4388 = vmatpush1.msra.mxu0 0.0
        %4389 = vmatprep.subr.mxu0 0.0
        %4390 = vmatpush1.msra.mxu0 0.0
        %4391 = vmatprep.subr.mxu0 0.0
        %4392 = vmatpush1.msra.mxu0 0.0
        %4393 = vmatprep.subr.mxu0 0.0
        %4394 = vmatpush1.msra.mxu0 0.0
        %4395 = vmatprep.subr.mxu0 0.0
        %4396 = vmatpush1.msra.mxu0 0.0
        %4397 = vmatprep.subr.mxu0 0.0
        %4398 = vmatpush1.msra.mxu0 0.0
        %4399 = vmatprep.subr.mxu0 0.0
        %4400 = vmatpush1.msra.mxu0 0.0
        %4401 = vmatprep.subr.mxu0 0.0
        %4402 = vmatpush1.msra.mxu0 0.0
        %4403 = vmatprep.subr.mxu0 0.0
        %4404 = vmatpush1.msra.mxu0 0.0
        %4405 = vmatprep.subr.mxu0 0.0
        %4406 = vmatpush1.msra.mxu0 0.0
        %4407 = vmatprep.subr.mxu0 0.0
        %4408 = vmatpush1.msra.mxu0 0.0
        %4409 = vmatprep.subr.mxu0 0.0
        %4410 = vmatpush1.msra.mxu0 0.0
        %4411 = vmatprep.subr.mxu0 0.0
        %4412 = vmatpush1.msra.mxu0 %v4370
        %4413 = vmatprep.subr.mxu0 0.0
        %4414 = vmatpush1.msra.mxu0 %v4369
        %4415 = vmatprep.subr.mxu0 0.0
        %4416 = vmatpush1.msra.mxu0 %v4368
        %4417 = vmatprep.subr.mxu0 0.0
        %4418 = vmatpush1.msra.mxu0 %v4367
        %4419 = vmatprep.subr.mxu0 0.0
        %4420 = vmatpush2.msra.mxu0 0.0
        %4421 = vmatprep.subr.mxu0 0.0
        %4422 = vmatpush2.msra.mxu0 0.0
        %4423 = vmatprep.subr.mxu0 0.0
        %4424 = vmatpush2.msra.mxu0 0.0
        %4425 = vmatprep.subr.mxu0 0.0
        %4426 = vmatpush2.msra.mxu0 0.0
        %4427 = vmatprep.subr.mxu0 0.0
        %4428 = vmatpush2.msra.mxu0 0.0
        %4429 = vmatprep.subr.mxu0 0.0
        %4430 = vmatpush2.msra.mxu0 0.0
        %4431 = vmatprep.subr.mxu0 0.0
        %4432 = vmatpush2.msra.mxu0 0.0
        %4433 = vmatprep.subr.mxu0 0.0
        %4434 = vmatpush2.msra.mxu0 0.0
        %4435 = vmatprep.subr.mxu0 0.0
        %4436 = vmatpush2.msra.mxu0 0.0
        %4437 = vmatprep.subr.mxu0 0.0
        %4438 = vmatpush2.msra.mxu0 0.0
        %4439 = vmatprep.subr.mxu0 0.0
        %4440 = vmatpush2.msra.mxu0 0.0
        %4441 = vmatprep.subr.mxu0 0.0
        %4442 = vmatpush2.msra.mxu0 0.0
        %4443 = vmatprep.subr.mxu0 0.0
        %4444 = vmatpush2.msra.mxu0 0.0
        %4445 = vmatprep.subr.mxu0 0.0
        %4446 = vmatpush2.msra.mxu0 0.0
        %4447 = vmatprep.subr.mxu0 0.0
        %4448 = vmatpush2.msra.mxu0 0.0
        %4449 = vmatprep.subr.mxu0 0.0
        %4450 = vmatpush2.msra.mxu0 0.0
        %4451 = vmatprep.mubr.f32.mxu0 0.0
        %4452 = vmatmul.mubr.f32.gmra.mxu0 %v4376
        %v4453 = vpop.f32.mrf.mxu0
        %v4454 = vadd.f32 0.0, %v4453
        %v4455 = vpop.f32.mrf.mxu0
        %4456 = vmatprep.mubr.f32.mxu0 0.0
        %4457 = vmatmul.mubr.f32.gmra.mxu0 %v4379
        %v4458 = vpop.f32.mrf.mxu0
        %v4459 = vadd.f32 0.0, %v4458
        %v4460 = vpop.f32.mrf.mxu0
        %4461 = vmatprep.mubr.f32.mxu0 0.0
        %4462 = vmatmul.mubr.f32.gmra.mxu0 %v4382
        %v4463 = vpop.f32.mrf.mxu0
        %v4464 = vadd.f32 0.0, %v4463
        %v4465 = vpop.f32.mrf.mxu0
        %4466 = vmatprep.mubr.f32.mxu0 0.0
        %4467 = vmatmul.mubr.f32.gmra.mxu0 %v4385
        %v4468 = vpop.f32.mrf.mxu0
        %v4469 = vadd.f32 0.0, %v4468
        %v4470 = vpop.f32.mrf.mxu0
        %4471 = vdwg.mxu0
        %4480 = vrot.lane.b32.xlu0 %v4312, 5
        %v4481 = vpop.permute.xlu0 %4480
        %4482 = vrot.lane.b32.xlu0 %v4313, 5
        %v4483 = vpop.permute.xlu0 %4482
        %4484 = vrot.lane.b32.xlu0 %v4314, 5
        %v4485 = vpop.permute.xlu0 %4484
        %4486 = vrot.lane.b32.xlu0 %v4315, 5
        %v4487 = vpop.permute.xlu0 %4486
        %4488 = vrot.lane.b32.xlu0 %v4316, 5
        %v4489 = vpop.permute.xlu0 %4488
        %4490 = vrot.lane.b32.xlu0 %v4317, 5
        %v4491 = vpop.permute.xlu0 %4490
        %4492 = vrot.lane.b32.xlu0 %v4318, 5
        %v4493 = vpop.permute.xlu0 %4492
        %4494 = vrot.lane.b32.xlu0 %v4319, 5
        %v4495 = vpop.permute.xlu0 %4494
        %vm4496 = vcmask 39936
        %v4497 = vsel %vm4496, %v4481, %v4483
        %v4498 = vsel %vm4496, %v4485, %v4487
        %v4499 = vsel %vm4496, %v4489, %v4491
        %v4500 = vsel %vm4496, %v4493, %v4495
        %v4506 = vsel %vm2980, %v4334, 0
        %v4509 = vsel %vm2980, %v4335, 0
        %v4512 = vsel %vm2980, %v4336, 0
        %v4515 = vsel %vm2980, %v4337, 0
        %4517 = vmatprep.subr.mxu0 0.0
        %4518 = vmatpush1.msra.mxu0 0.0
        %4519 = vmatprep.subr.mxu0 0.0
        %4520 = vmatpush1.msra.mxu0 0.0
        %4521 = vmatprep.subr.mxu0 0.0
        %4522 = vmatpush1.msra.mxu0 0.0
        %4523 = vmatprep.subr.mxu0 0.0
        %4524 = vmatpush1.msra.mxu0 0.0
        %4525 = vmatprep.subr.mxu0 0.0
        %4526 = vmatpush1.msra.mxu0 0.0
        %4527 = vmatprep.subr.mxu0 0.0
        %4528 = vmatpush1.msra.mxu0 0.0
        %4529 = vmatprep.subr.mxu0 0.0
        %4530 = vmatpush1.msra.mxu0 0.0
        %4531 = vmatprep.subr.mxu0 0.0
        %4532 = vmatpush1.msra.mxu0 0.0
        %4533 = vmatprep.subr.mxu0 0.0
        %4534 = vmatpush1.msra.mxu0 0.0
        %4535 = vmatprep.subr.mxu0 0.0
        %4536 = vmatpush1.msra.mxu0 0.0
        %4537 = vmatprep.subr.mxu0 0.0
        %4538 = vmatpush1.msra.mxu0 0.0
        %4539 = vmatprep.subr.mxu0 0.0
        %4540 = vmatpush1.msra.mxu0 0.0
        %4541 = vmatprep.subr.mxu0 0.0
        %4542 = vmatpush1.msra.mxu0 %v4500
        %4543 = vmatprep.subr.mxu0 0.0
        %4544 = vmatpush1.msra.mxu0 %v4499
        %4545 = vmatprep.subr.mxu0 0.0
        %4546 = vmatpush1.msra.mxu0 %v4498
        %4547 = vmatprep.subr.mxu0 0.0
        %4548 = vmatpush1.msra.mxu0 %v4497
        %4549 = vmatprep.subr.mxu0 0.0
        %4550 = vmatpush2.msra.mxu0 0.0
        %4551 = vmatprep.subr.mxu0 0.0
        %4552 = vmatpush2.msra.mxu0 0.0
        %4553 = vmatprep.subr.mxu0 0.0
        %4554 = vmatpush2.msra.mxu0 0.0
        %4555 = vmatprep.subr.mxu0 0.0
        %4556 = vmatpush2.msra.mxu0 0.0
        %4557 = vmatprep.subr.mxu0 0.0
        %4558 = vmatpush2.msra.mxu0 0.0
        %4559 = vmatprep.subr.mxu0 0.0
        %4560 = vmatpush2.msra.mxu0 0.0
        %4561 = vmatprep.subr.mxu0 0.0
        %4562 = vmatpush2.msra.mxu0 0.0
        %4563 = vmatprep.subr.mxu0 0.0
        %4564 = vmatpush2.msra.mxu0 0.0
        %4565 = vmatprep.subr.mxu0 0.0
        %4566 = vmatpush2.msra.mxu0 0.0
        %4567 = vmatprep.subr.mxu0 0.0
        %4568 = vmatpush2.msra.mxu0 0.0
        %4569 = vmatprep.subr.mxu0 0.0
        %4570 = vmatpush2.msra.mxu0 0.0
        %4571 = vmatprep.subr.mxu0 0.0
        %4572 = vmatpush2.msra.mxu0 0.0
        %4573 = vmatprep.subr.mxu0 0.0
        %4574 = vmatpush2.msra.mxu0 0.0
        %4575 = vmatprep.subr.mxu0 0.0
        %4576 = vmatpush2.msra.mxu0 0.0
        %4577 = vmatprep.subr.mxu0 0.0
        %4578 = vmatpush2.msra.mxu0 0.0
        %4579 = vmatprep.subr.mxu0 0.0
        %4580 = vmatpush2.msra.mxu0 0.0
        %4581 = vmatprep.mubr.f32.mxu0 0.0
        %4582 = vmatmul.mubr.f32.gmra.mxu0 %v4506
        %v4583 = vpop.f32.mrf.mxu0
        %v4584 = vadd.f32 %v4454, %v4583
        %v4585 = vpop.f32.mrf.mxu0
        %4586 = vmatprep.mubr.f32.mxu0 0.0
        %4587 = vmatmul.mubr.f32.gmra.mxu0 %v4509
        %v4588 = vpop.f32.mrf.mxu0
        %v4589 = vadd.f32 %v4459, %v4588
        %v4590 = vpop.f32.mrf.mxu0
        %4591 = vmatprep.mubr.f32.mxu0 0.0
        %4592 = vmatmul.mubr.f32.gmra.mxu0 %v4512
        %v4593 = vpop.f32.mrf.mxu0
        %v4594 = vadd.f32 %v4464, %v4593
        %v4595 = vpop.f32.mrf.mxu0
        %4596 = vmatprep.mubr.f32.mxu0 0.0
        %4597 = vmatmul.mubr.f32.gmra.mxu0 %v4515
        %v4598 = vpop.f32.mrf.mxu0
        %v4599 = vadd.f32 %v4469, %v4598
        %v4600 = vpop.f32.mrf.mxu0
        %4601 = vdwg.mxu0
        %s4602 = scalar_lea.vmem [#allocation7], 64
        %v4603 = vld [vmem:[%s4602] sm:$0xff]
        %v4604 = vld [vmem:[%s4602 + $0x8] sm:$0xff]
        %v4605 = vld [vmem:[%s4602 + $0x10] sm:$0xff]
        %v4606 = vld [vmem:[%s4602 + $0x18] sm:$0xff]
        %4615 = vrot.lane.b32.xlu0 %v4326, 3
        %v4616 = vpop.permute.xlu0 %4615
        %4617 = vrot.lane.b32.xlu0 %v4327, 3
        %v4618 = vpop.permute.xlu0 %4617
        %4619 = vrot.lane.b32.xlu0 %v4328, 3
        %v4620 = vpop.permute.xlu0 %4619
        %4621 = vrot.lane.b32.xlu0 %v4329, 3
        %v4622 = vpop.permute.xlu0 %4621
        %4623 = vrot.lane.b32.xlu0 %v4330, 3
        %v4624 = vpop.permute.xlu0 %4623
        %4625 = vrot.lane.b32.xlu0 %v4331, 3
        %v4626 = vpop.permute.xlu0 %4625
        %4627 = vrot.lane.b32.xlu0 %v4332, 3
        %v4628 = vpop.permute.xlu0 %4627
        %4629 = vrot.lane.b32.xlu0 %v4333, 3
        %v4630 = vpop.permute.xlu0 %4629
        %vm4631 = vcmask 23552
        %v4632 = vsel %vm4631, %v4616, %v4618
        %v4633 = vsel %vm4631, %v4620, %v4622
        %v4634 = vsel %vm4631, %v4624, %v4626
        %v4635 = vsel %vm4631, %v4628, %v4630
        %v4641 = vsel %vm2980, %v4603, 0
        %v4644 = vsel %vm2980, %v4604, 0
        %v4647 = vsel %vm2980, %v4605, 0
        %v4650 = vsel %vm2980, %v4606, 0
        %4652 = vmatprep.subr.mxu0 0.0
        %4653 = vmatpush1.msra.mxu0 0.0
        %4654 = vmatprep.subr.mxu0 0.0
        %4655 = vmatpush1.msra.mxu0 0.0
        %4656 = vmatprep.subr.mxu0 0.0
        %4657 = vmatpush1.msra.mxu0 0.0
        %4658 = vmatprep.subr.mxu0 0.0
        %4659 = vmatpush1.msra.mxu0 0.0
        %4660 = vmatprep.subr.mxu0 0.0
        %4661 = vmatpush1.msra.mxu0 0.0
        %4662 = vmatprep.subr.mxu0 0.0
        %4663 = vmatpush1.msra.mxu0 0.0
        %4664 = vmatprep.subr.mxu0 0.0
        %4665 = vmatpush1.msra.mxu0 0.0
        %4666 = vmatprep.subr.mxu0 0.0
        %4667 = vmatpush1.msra.mxu0 0.0
        %4668 = vmatprep.subr.mxu0 0.0
        %4669 = vmatpush1.msra.mxu0 0.0
        %4670 = vmatprep.subr.mxu0 0.0
        %4671 = vmatpush1.msra.mxu0 0.0
        %4672 = vmatprep.subr.mxu0 0.0
        %4673 = vmatpush1.msra.mxu0 0.0
        %4674 = vmatprep.subr.mxu0 0.0
        %4675 = vmatpush1.msra.mxu0 0.0
        %4676 = vmatprep.subr.mxu0 0.0
        %4677 = vmatpush1.msra.mxu0 %v4635
        %4678 = vmatprep.subr.mxu0 0.0
        %4679 = vmatpush1.msra.mxu0 %v4634
        %4680 = vmatprep.subr.mxu0 0.0
        %4681 = vmatpush1.msra.mxu0 %v4633
        %4682 = vmatprep.subr.mxu0 0.0
        %4683 = vmatpush1.msra.mxu0 %v4632
        %4684 = vmatprep.subr.mxu0 0.0
        %4685 = vmatpush2.msra.mxu0 0.0
        %4686 = vmatprep.subr.mxu0 0.0
        %4687 = vmatpush2.msra.mxu0 0.0
        %4688 = vmatprep.subr.mxu0 0.0
        %4689 = vmatpush2.msra.mxu0 0.0
        %4690 = vmatprep.subr.mxu0 0.0
        %4691 = vmatpush2.msra.mxu0 0.0
        %4692 = vmatprep.subr.mxu0 0.0
        %4693 = vmatpush2.msra.mxu0 0.0
        %4694 = vmatprep.subr.mxu0 0.0
        %4695 = vmatpush2.msra.mxu0 0.0
        %4696 = vmatprep.subr.mxu0 0.0
        %4697 = vmatpush2.msra.mxu0 0.0
        %4698 = vmatprep.subr.mxu0 0.0
        %4699 = vmatpush2.msra.mxu0 0.0
        %4700 = vmatprep.subr.mxu0 0.0
        %4701 = vmatpush2.msra.mxu0 0.0
        %4702 = vmatprep.subr.mxu0 0.0
        %4703 = vmatpush2.msra.mxu0 0.0
        %4704 = vmatprep.subr.mxu0 0.0
        %4705 = vmatpush2.msra.mxu0 0.0
        %4706 = vmatprep.subr.mxu0 0.0
        %4707 = vmatpush2.msra.mxu0 0.0
        %4708 = vmatprep.subr.mxu0 0.0
        %4709 = vmatpush2.msra.mxu0 0.0
        %4710 = vmatprep.subr.mxu0 0.0
        %4711 = vmatpush2.msra.mxu0 0.0
        %4712 = vmatprep.subr.mxu0 0.0
        %4713 = vmatpush2.msra.mxu0 0.0
        %4714 = vmatprep.subr.mxu0 0.0
        %4715 = vmatpush2.msra.mxu0 0.0
        %4716 = vmatprep.mubr.f32.mxu0 0.0
        %4717 = vmatmul.mubr.f32.gmra.mxu0 %v4641
        %v4718 = vpop.f32.mrf.mxu0
        %v4719 = vadd.f32 0.0, %v4718
        %v4720 = vpop.f32.mrf.mxu0
        %4721 = vmatprep.mubr.f32.mxu0 0.0
        %4722 = vmatmul.mubr.f32.gmra.mxu0 %v4644
        %v4723 = vpop.f32.mrf.mxu0
        %v4724 = vadd.f32 0.0, %v4723
        %v4725 = vpop.f32.mrf.mxu0
        %4726 = vmatprep.mubr.f32.mxu0 0.0
        %4727 = vmatmul.mubr.f32.gmra.mxu0 %v4647
        %v4728 = vpop.f32.mrf.mxu0
        %v4729 = vadd.f32 0.0, %v4728
        %v4730 = vpop.f32.mrf.mxu0
        %4731 = vmatprep.mubr.f32.mxu0 0.0
        %4732 = vmatmul.mubr.f32.gmra.mxu0 %v4650
        %v4733 = vpop.f32.mrf.mxu0
        %v4734 = vadd.f32 0.0, %v4733
        %v4735 = vpop.f32.mrf.mxu0
        %4736 = vdwg.mxu0
        %v4737 = vadd.f32 %v4584, %v4719
        %v4738 = vadd.f32 %v4589, %v4724
        %v4739 = vadd.f32 %v4594, %v4729
        %v4740 = vadd.f32 %v4599, %v4734
        %s4741 = scalar_lea.vmem [#allocation7], 96
        %v4742 = vld [vmem:[%s4741] sm:$0xff]
        %v4743 = vld [vmem:[%s4741 + $0x8] sm:$0xff]
        %v4744 = vld [vmem:[%s4741 + $0x10] sm:$0xff]
        %v4745 = vld [vmem:[%s4741 + $0x18] sm:$0xff]
        %4746 = vrot.lane.b32.xlu0 %v4312, 1
        %v4747 = vpop.permute.xlu0 %4746
        %4748 = vrot.lane.b32.xlu0 %v4313, 1
        %v4749 = vpop.permute.xlu0 %4748
        %4750 = vrot.lane.b32.xlu0 %v4314, 1
        %v4751 = vpop.permute.xlu0 %4750
        %4752 = vrot.lane.b32.xlu0 %v4315, 1
        %v4753 = vpop.permute.xlu0 %4752
        %4754 = vrot.lane.b32.xlu0 %v4316, 1
        %v4755 = vpop.permute.xlu0 %4754
        %4756 = vrot.lane.b32.xlu0 %v4317, 1
        %v4757 = vpop.permute.xlu0 %4756
        %4758 = vrot.lane.b32.xlu0 %v4318, 1
        %v4759 = vpop.permute.xlu0 %4758
        %4760 = vrot.lane.b32.xlu0 %v4319, 1
        %v4761 = vpop.permute.xlu0 %4760
        %v4762 = vsel %vm1216, %v4747, %v4749
        %v4763 = vsel %vm1216, %v4751, %v4753
        %v4764 = vsel %vm1216, %v4755, %v4757
        %v4765 = vsel %vm1216, %v4759, %v4761
        %v4771 = vsel %vm2980, %v4742, 0
        %v4774 = vsel %vm2980, %v4743, 0
        %v4777 = vsel %vm2980, %v4744, 0
        %v4780 = vsel %vm2980, %v4745, 0
        %4782 = vmatprep.subr.mxu0 0.0
        %4783 = vmatpush1.msra.mxu0 0.0
        %4784 = vmatprep.subr.mxu0 0.0
        %4785 = vmatpush1.msra.mxu0 0.0
        %4786 = vmatprep.subr.mxu0 0.0
        %4787 = vmatpush1.msra.mxu0 0.0
        %4788 = vmatprep.subr.mxu0 0.0
        %4789 = vmatpush1.msra.mxu0 0.0
        %4790 = vmatprep.subr.mxu0 0.0
        %4791 = vmatpush1.msra.mxu0 0.0
        %4792 = vmatprep.subr.mxu0 0.0
        %4793 = vmatpush1.msra.mxu0 0.0
        %4794 = vmatprep.subr.mxu0 0.0
        %4795 = vmatpush1.msra.mxu0 0.0
        %4796 = vmatprep.subr.mxu0 0.0
        %4797 = vmatpush1.msra.mxu0 0.0
        %4798 = vmatprep.subr.mxu0 0.0
        %4799 = vmatpush1.msra.mxu0 0.0
        %4800 = vmatprep.subr.mxu0 0.0
        %4801 = vmatpush1.msra.mxu0 0.0
        %4802 = vmatprep.subr.mxu0 0.0
        %4803 = vmatpush1.msra.mxu0 0.0
        %4804 = vmatprep.subr.mxu0 0.0
        %4805 = vmatpush1.msra.mxu0 0.0
        %4806 = vmatprep.subr.mxu0 0.0
        %4807 = vmatpush1.msra.mxu0 %v4765
        %4808 = vmatprep.subr.mxu0 0.0
        %4809 = vmatpush1.msra.mxu0 %v4764
        %4810 = vmatprep.subr.mxu0 0.0
        %4811 = vmatpush1.msra.mxu0 %v4763
        %4812 = vmatprep.subr.mxu0 0.0
        %4813 = vmatpush1.msra.mxu0 %v4762
        %4814 = vmatprep.subr.mxu0 0.0
        %4815 = vmatpush2.msra.mxu0 0.0
        %4816 = vmatprep.subr.mxu0 0.0
        %4817 = vmatpush2.msra.mxu0 0.0
        %4818 = vmatprep.subr.mxu0 0.0
        %4819 = vmatpush2.msra.mxu0 0.0
        %4820 = vmatprep.subr.mxu0 0.0
        %4821 = vmatpush2.msra.mxu0 0.0
        %4822 = vmatprep.subr.mxu0 0.0
        %4823 = vmatpush2.msra.mxu0 0.0
        %4824 = vmatprep.subr.mxu0 0.0
        %4825 = vmatpush2.msra.mxu0 0.0
        %4826 = vmatprep.subr.mxu0 0.0
        %4827 = vmatpush2.msra.mxu0 0.0
        %4828 = vmatprep.subr.mxu0 0.0
        %4829 = vmatpush2.msra.mxu0 0.0
        %4830 = vmatprep.subr.mxu0 0.0
        %4831 = vmatpush2.msra.mxu0 0.0
        %4832 = vmatprep.subr.mxu0 0.0
        %4833 = vmatpush2.msra.mxu0 0.0
        %4834 = vmatprep.subr.mxu0 0.0
        %4835 = vmatpush2.msra.mxu0 0.0
        %4836 = vmatprep.subr.mxu0 0.0
        %4837 = vmatpush2.msra.mxu0 0.0
        %4838 = vmatprep.subr.mxu0 0.0
        %4839 = vmatpush2.msra.mxu0 0.0
        %4840 = vmatprep.subr.mxu0 0.0
        %4841 = vmatpush2.msra.mxu0 0.0
        %4842 = vmatprep.subr.mxu0 0.0
        %4843 = vmatpush2.msra.mxu0 0.0
        %4844 = vmatprep.subr.mxu0 0.0
        %4845 = vmatpush2.msra.mxu0 0.0
        %4846 = vmatprep.mubr.f32.mxu0 0.0
        %4847 = vmatmul.mubr.f32.gmra.mxu0 %v4771
        %v4848 = vpop.f32.mrf.mxu0
        %v4849 = vadd.f32 0.0, %v4848
        %v4850 = vpop.f32.mrf.mxu0
        %4851 = vmatprep.mubr.f32.mxu0 0.0
        %4852 = vmatmul.mubr.f32.gmra.mxu0 %v4774
        %v4853 = vpop.f32.mrf.mxu0
        %v4854 = vadd.f32 0.0, %v4853
        %v4855 = vpop.f32.mrf.mxu0
        %4856 = vmatprep.mubr.f32.mxu0 0.0
        %4857 = vmatmul.mubr.f32.gmra.mxu0 %v4777
        %v4858 = vpop.f32.mrf.mxu0
        %v4859 = vadd.f32 0.0, %v4858
        %v4860 = vpop.f32.mrf.mxu0
        %4861 = vmatprep.mubr.f32.mxu0 0.0
        %4862 = vmatmul.mubr.f32.gmra.mxu0 %v4780
        %v4863 = vpop.f32.mrf.mxu0
        %v4864 = vadd.f32 0.0, %v4863
        %v4865 = vpop.f32.mrf.mxu0
        %4866 = vdwg.mxu0
        %v4867 = vadd.f32 %v4737, %v4849
        %v4868 = vadd.f32 %v4738, %v4854
        %v4869 = vadd.f32 %v4739, %v4859
        %v4870 = vadd.f32 %v4740, %v4864
        %s4871 = scalar_lea.vmem [#allocation7], 128
        %v4872 = vld [vmem:[%s4871] sm:$0xff]
        %v4873 = vld [vmem:[%s4871 + $0x8] sm:$0xff]
        %v4874 = vld [vmem:[%s4871 + $0x10] sm:$0xff]
        %v4875 = vld [vmem:[%s4871 + $0x18] sm:$0xff]
        %v4877 = vsel %vm2980, %v4872, 0
        %v4880 = vsel %vm2980, %v4873, 0
        %v4883 = vsel %vm2980, %v4874, 0
        %v4886 = vsel %vm2980, %v4875, 0
        %4888 = vmatprep.subr.mxu0 0.0
        %4889 = vmatpush1.msra.mxu0 0.0
        %4890 = vmatprep.subr.mxu0 0.0
        %4891 = vmatpush1.msra.mxu0 0.0
        %4892 = vmatprep.subr.mxu0 0.0
        %4893 = vmatpush1.msra.mxu0 0.0
        %4894 = vmatprep.subr.mxu0 0.0
        %4895 = vmatpush1.msra.mxu0 0.0
        %4896 = vmatprep.subr.mxu0 0.0
        %4897 = vmatpush1.msra.mxu0 0.0
        %4898 = vmatprep.subr.mxu0 0.0
        %4899 = vmatpush1.msra.mxu0 0.0
        %4900 = vmatprep.subr.mxu0 0.0
        %4901 = vmatpush1.msra.mxu0 0.0
        %4902 = vmatprep.subr.mxu0 0.0
        %4903 = vmatpush1.msra.mxu0 0.0
        %4904 = vmatprep.subr.mxu0 0.0
        %4905 = vmatpush1.msra.mxu0 0.0
        %4906 = vmatprep.subr.mxu0 0.0
        %4907 = vmatpush1.msra.mxu0 0.0
        %4908 = vmatprep.subr.mxu0 0.0
        %4909 = vmatpush1.msra.mxu0 0.0
        %4910 = vmatprep.subr.mxu0 0.0
        %4911 = vmatpush1.msra.mxu0 0.0
        %4912 = vmatprep.subr.mxu0 0.0
        %4913 = vmatpush1.msra.mxu0 %v4303
        %4914 = vmatprep.subr.mxu0 0.0
        %4915 = vmatpush1.msra.mxu0 %v4301
        %4916 = vmatprep.subr.mxu0 0.0
        %4917 = vmatpush1.msra.mxu0 %v4299
        %4918 = vmatprep.subr.mxu0 0.0
        %4919 = vmatpush1.msra.mxu0 %v4297
        %4920 = vmatprep.subr.mxu0 0.0
        %4921 = vmatpush2.msra.mxu0 0.0
        %4922 = vmatprep.subr.mxu0 0.0
        %4923 = vmatpush2.msra.mxu0 0.0
        %4924 = vmatprep.subr.mxu0 0.0
        %4925 = vmatpush2.msra.mxu0 0.0
        %4926 = vmatprep.subr.mxu0 0.0
        %4927 = vmatpush2.msra.mxu0 0.0
        %4928 = vmatprep.subr.mxu0 0.0
        %4929 = vmatpush2.msra.mxu0 0.0
        %4930 = vmatprep.subr.mxu0 0.0
        %4931 = vmatpush2.msra.mxu0 0.0
        %4932 = vmatprep.subr.mxu0 0.0
        %4933 = vmatpush2.msra.mxu0 0.0
        %4934 = vmatprep.subr.mxu0 0.0
        %4935 = vmatpush2.msra.mxu0 0.0
        %4936 = vmatprep.subr.mxu0 0.0
        %4937 = vmatpush2.msra.mxu0 0.0
        %4938 = vmatprep.subr.mxu0 0.0
        %4939 = vmatpush2.msra.mxu0 0.0
        %4940 = vmatprep.subr.mxu0 0.0
        %4941 = vmatpush2.msra.mxu0 0.0
        %4942 = vmatprep.subr.mxu0 0.0
        %4943 = vmatpush2.msra.mxu0 0.0
        %4944 = vmatprep.subr.mxu0 0.0
        %4945 = vmatpush2.msra.mxu0 0.0
        %4946 = vmatprep.subr.mxu0 0.0
        %4947 = vmatpush2.msra.mxu0 0.0
        %4948 = vmatprep.subr.mxu0 0.0
        %4949 = vmatpush2.msra.mxu0 0.0
        %4950 = vmatprep.subr.mxu0 0.0
        %4951 = vmatpush2.msra.mxu0 0.0
        %4952 = vmatprep.mubr.f32.mxu0 0.0
        %4953 = vmatmul.mubr.f32.gmra.mxu0 %v4877
        %v4954 = vpop.f32.mrf.mxu0
        %v4955 = vadd.f32 0.0, %v4954
        %v4956 = vpop.f32.mrf.mxu0
        %4957 = vmatprep.mubr.f32.mxu0 0.0
        %4958 = vmatmul.mubr.f32.gmra.mxu0 %v4880
        %v4959 = vpop.f32.mrf.mxu0
        %v4960 = vadd.f32 0.0, %v4959
        %v4961 = vpop.f32.mrf.mxu0
        %4962 = vmatprep.mubr.f32.mxu0 0.0
        %4963 = vmatmul.mubr.f32.gmra.mxu0 %v4883
        %v4964 = vpop.f32.mrf.mxu0
        %v4965 = vadd.f32 0.0, %v4964
        %v4966 = vpop.f32.mrf.mxu0
        %4967 = vmatprep.mubr.f32.mxu0 0.0
        %4968 = vmatmul.mubr.f32.gmra.mxu0 %v4886
        %v4969 = vpop.f32.mrf.mxu0
        %v4970 = vadd.f32 0.0, %v4969
        %v4971 = vpop.f32.mrf.mxu0
        %4972 = vdwg.mxu0
        %v4973 = vadd.f32 %v4867, %v4955
        %v4974 = vadd.f32 %v4868, %v4960
        %v4975 = vadd.f32 %v4869, %v4965
        %v4976 = vadd.f32 %v4870, %v4970
        %s4977 = scalar_lea.vmem [#allocation7], 160
        %v4978 = vld [vmem:[%s4977] sm:$0xff]
        %v4979 = vld [vmem:[%s4977 + $0x8] sm:$0xff]
        %v4980 = vld [vmem:[%s4977 + $0x10] sm:$0xff]
        %v4981 = vld [vmem:[%s4977 + $0x18] sm:$0xff]
        %4982 = vrot.lane.b32.xlu0 %v4327, 127
        %v4983 = vpop.permute.xlu0 %4982
        %4984 = vrot.lane.b32.xlu0 %v4329, 127
        %v4985 = vpop.permute.xlu0 %4984
        %4986 = vrot.lane.b32.xlu0 %v4331, 127
        %v4987 = vpop.permute.xlu0 %4986
        %4988 = vrot.lane.b32.xlu0 %v4333, 127
        %v4989 = vpop.permute.xlu0 %4988
        %v4995 = vsel %vm2980, %v4978, 0
        %v4998 = vsel %vm2980, %v4979, 0
        %v5001 = vsel %vm2980, %v4980, 0
        %v5004 = vsel %vm2980, %v4981, 0
        %5006 = vmatprep.subr.mxu0 0.0
        %5007 = vmatpush1.msra.mxu0 0.0
        %5008 = vmatprep.subr.mxu0 0.0
        %5009 = vmatpush1.msra.mxu0 0.0
        %5010 = vmatprep.subr.mxu0 0.0
        %5011 = vmatpush1.msra.mxu0 0.0
        %5012 = vmatprep.subr.mxu0 0.0
        %5013 = vmatpush1.msra.mxu0 0.0
        %5014 = vmatprep.subr.mxu0 0.0
        %5015 = vmatpush1.msra.mxu0 0.0
        %5016 = vmatprep.subr.mxu0 0.0
        %5017 = vmatpush1.msra.mxu0 0.0
        %5018 = vmatprep.subr.mxu0 0.0
        %5019 = vmatpush1.msra.mxu0 0.0
        %5020 = vmatprep.subr.mxu0 0.0
        %5021 = vmatpush1.msra.mxu0 0.0
        %5022 = vmatprep.subr.mxu0 0.0
        %5023 = vmatpush1.msra.mxu0 0.0
        %5024 = vmatprep.subr.mxu0 0.0
        %5025 = vmatpush1.msra.mxu0 0.0
        %5026 = vmatprep.subr.mxu0 0.0
        %5027 = vmatpush1.msra.mxu0 0.0
        %5028 = vmatprep.subr.mxu0 0.0
        %5029 = vmatpush1.msra.mxu0 0.0
        %5030 = vmatprep.subr.mxu0 0.0
        %5031 = vmatpush1.msra.mxu0 %v4989
        %5032 = vmatprep.subr.mxu0 0.0
        %5033 = vmatpush1.msra.mxu0 %v4987
        %5034 = vmatprep.subr.mxu0 0.0
        %5035 = vmatpush1.msra.mxu0 %v4985
        %5036 = vmatprep.subr.mxu0 0.0
        %5037 = vmatpush1.msra.mxu0 %v4983
        %5038 = vmatprep.subr.mxu0 0.0
        %5039 = vmatpush2.msra.mxu0 0.0
        %5040 = vmatprep.subr.mxu0 0.0
        %5041 = vmatpush2.msra.mxu0 0.0
        %5042 = vmatprep.subr.mxu0 0.0
        %5043 = vmatpush2.msra.mxu0 0.0
        %5044 = vmatprep.subr.mxu0 0.0
        %5045 = vmatpush2.msra.mxu0 0.0
        %5046 = vmatprep.subr.mxu0 0.0
        %5047 = vmatpush2.msra.mxu0 0.0
        %5048 = vmatprep.subr.mxu0 0.0
        %5049 = vmatpush2.msra.mxu0 0.0
        %5050 = vmatprep.subr.mxu0 0.0
        %5051 = vmatpush2.msra.mxu0 0.0
        %5052 = vmatprep.subr.mxu0 0.0
        %5053 = vmatpush2.msra.mxu0 0.0
        %5054 = vmatprep.subr.mxu0 0.0
        %5055 = vmatpush2.msra.mxu0 0.0
        %5056 = vmatprep.subr.mxu0 0.0
        %5057 = vmatpush2.msra.mxu0 0.0
        %5058 = vmatprep.subr.mxu0 0.0
        %5059 = vmatpush2.msra.mxu0 0.0
        %5060 = vmatprep.subr.mxu0 0.0
        %5061 = vmatpush2.msra.mxu0 0.0
        %5062 = vmatprep.subr.mxu0 0.0
        %5063 = vmatpush2.msra.mxu0 0.0
        %5064 = vmatprep.subr.mxu0 0.0
        %5065 = vmatpush2.msra.mxu0 0.0
        %5066 = vmatprep.subr.mxu0 0.0
        %5067 = vmatpush2.msra.mxu0 0.0
        %5068 = vmatprep.subr.mxu0 0.0
        %5069 = vmatpush2.msra.mxu0 0.0
        %5070 = vmatprep.mubr.f32.mxu0 0.0
        %5071 = vmatmul.mubr.f32.gmra.mxu0 %v4995
        %v5072 = vpop.f32.mrf.mxu0
        %v5073 = vadd.f32 0.0, %v5072
        %v5074 = vpop.f32.mrf.mxu0
        %5075 = vmatprep.mubr.f32.mxu0 0.0
        %5076 = vmatmul.mubr.f32.gmra.mxu0 %v4998
        %v5077 = vpop.f32.mrf.mxu0
        %v5078 = vadd.f32 0.0, %v5077
        %v5079 = vpop.f32.mrf.mxu0
        %5080 = vmatprep.mubr.f32.mxu0 0.0
        %5081 = vmatmul.mubr.f32.gmra.mxu0 %v5001
        %v5082 = vpop.f32.mrf.mxu0
        %v5083 = vadd.f32 0.0, %v5082
        %v5084 = vpop.f32.mrf.mxu0
        %5085 = vmatprep.mubr.f32.mxu0 0.0
        %5086 = vmatmul.mubr.f32.gmra.mxu0 %v5004
        %v5087 = vpop.f32.mrf.mxu0
        %v5088 = vadd.f32 0.0, %v5087
        %v5089 = vpop.f32.mrf.mxu0
        %5090 = vdwg.mxu0
        %v5091 = vadd.f32 %v4973, %v5073
        %v5092 = vadd.f32 %v4974, %v5078
        %v5093 = vadd.f32 %v4975, %v5083
        %v5094 = vadd.f32 %v4976, %v5088
        %s5095 = scalar_lea.vmem [#allocation7], 192
        %v5096 = vld [vmem:[%s5095] sm:$0xff]
        %v5097 = vld [vmem:[%s5095 + $0x8] sm:$0xff]
        %v5098 = vld [vmem:[%s5095 + $0x10] sm:$0xff]
        %v5099 = vld [vmem:[%s5095 + $0x18] sm:$0xff]
        %5100 = vrot.lane.b32.xlu0 %v4313, 125
        %v5101 = vpop.permute.xlu0 %5100
        %5102 = vrot.lane.b32.xlu0 %v4315, 125
        %v5103 = vpop.permute.xlu0 %5102
        %5104 = vrot.lane.b32.xlu0 %v4317, 125
        %v5105 = vpop.permute.xlu0 %5104
        %5106 = vrot.lane.b32.xlu0 %v4319, 125
        %v5107 = vpop.permute.xlu0 %5106
        %v5113 = vsel %vm2980, %v5096, 0
        %v5116 = vsel %vm2980, %v5097, 0
        %v5119 = vsel %vm2980, %v5098, 0
        %v5122 = vsel %vm2980, %v5099, 0
        %5124 = vmatprep.subr.mxu0 0.0
        %5125 = vmatpush1.msra.mxu0 0.0
        %5126 = vmatprep.subr.mxu0 0.0
        %5127 = vmatpush1.msra.mxu0 0.0
        %5128 = vmatprep.subr.mxu0 0.0
        %5129 = vmatpush1.msra.mxu0 0.0
        %5130 = vmatprep.subr.mxu0 0.0
        %5131 = vmatpush1.msra.mxu0 0.0
        %5132 = vmatprep.subr.mxu0 0.0
        %5133 = vmatpush1.msra.mxu0 0.0
        %5134 = vmatprep.subr.mxu0 0.0
        %5135 = vmatpush1.msra.mxu0 0.0
        %5136 = vmatprep.subr.mxu0 0.0
        %5137 = vmatpush1.msra.mxu0 0.0
        %5138 = vmatprep.subr.mxu0 0.0
        %5139 = vmatpush1.msra.mxu0 0.0
        %5140 = vmatprep.subr.mxu0 0.0
        %5141 = vmatpush1.msra.mxu0 0.0
        %5142 = vmatprep.subr.mxu0 0.0
        %5143 = vmatpush1.msra.mxu0 0.0
        %5144 = vmatprep.subr.mxu0 0.0
        %5145 = vmatpush1.msra.mxu0 0.0
        %5146 = vmatprep.subr.mxu0 0.0
        %5147 = vmatpush1.msra.mxu0 0.0
        %5148 = vmatprep.subr.mxu0 0.0
        %5149 = vmatpush1.msra.mxu0 %v5107
        %5150 = vmatprep.subr.mxu0 0.0
        %5151 = vmatpush1.msra.mxu0 %v5105
        %5152 = vmatprep.subr.mxu0 0.0
        %5153 = vmatpush1.msra.mxu0 %v5103
        %5154 = vmatprep.subr.mxu0 0.0
        %5155 = vmatpush1.msra.mxu0 %v5101
        %5156 = vmatprep.subr.mxu0 0.0
        %5157 = vmatpush2.msra.mxu0 0.0
        %5158 = vmatprep.subr.mxu0 0.0
        %5159 = vmatpush2.msra.mxu0 0.0
        %5160 = vmatprep.subr.mxu0 0.0
        %5161 = vmatpush2.msra.mxu0 0.0
        %5162 = vmatprep.subr.mxu0 0.0
        %5163 = vmatpush2.msra.mxu0 0.0
        %5164 = vmatprep.subr.mxu0 0.0
        %5165 = vmatpush2.msra.mxu0 0.0
        %5166 = vmatprep.subr.mxu0 0.0
        %5167 = vmatpush2.msra.mxu0 0.0
        %5168 = vmatprep.subr.mxu0 0.0
        %5169 = vmatpush2.msra.mxu0 0.0
        %5170 = vmatprep.subr.mxu0 0.0
        %5171 = vmatpush2.msra.mxu0 0.0
        %5172 = vmatprep.subr.mxu0 0.0
        %5173 = vmatpush2.msra.mxu0 0.0
        %5174 = vmatprep.subr.mxu0 0.0
        %5175 = vmatpush2.msra.mxu0 0.0
        %5176 = vmatprep.subr.mxu0 0.0
        %5177 = vmatpush2.msra.mxu0 0.0
        %5178 = vmatprep.subr.mxu0 0.0
        %5179 = vmatpush2.msra.mxu0 0.0
        %5180 = vmatprep.subr.mxu0 0.0
        %5181 = vmatpush2.msra.mxu0 0.0
        %5182 = vmatprep.subr.mxu0 0.0
        %5183 = vmatpush2.msra.mxu0 0.0
        %5184 = vmatprep.subr.mxu0 0.0
        %5185 = vmatpush2.msra.mxu0 0.0
        %5186 = vmatprep.subr.mxu0 0.0
        %5187 = vmatpush2.msra.mxu0 0.0
        %5188 = vmatprep.mubr.f32.mxu0 0.0
        %5189 = vmatmul.mubr.f32.gmra.mxu0 %v5113
        %v5190 = vpop.f32.mrf.mxu0
        %v5191 = vadd.f32 0.0, %v5190
        %v5192 = vpop.f32.mrf.mxu0
        %5193 = vmatprep.mubr.f32.mxu0 0.0
        %5194 = vmatmul.mubr.f32.gmra.mxu0 %v5116
        %v5195 = vpop.f32.mrf.mxu0
        %v5196 = vadd.f32 0.0, %v5195
        %v5197 = vpop.f32.mrf.mxu0
        %5198 = vmatprep.mubr.f32.mxu0 0.0
        %5199 = vmatmul.mubr.f32.gmra.mxu0 %v5119
        %v5200 = vpop.f32.mrf.mxu0
        %v5201 = vadd.f32 0.0, %v5200
        %v5202 = vpop.f32.mrf.mxu0
        %5203 = vmatprep.mubr.f32.mxu0 0.0
        %5204 = vmatmul.mubr.f32.gmra.mxu0 %v5122
        %v5205 = vpop.f32.mrf.mxu0
        %v5206 = vadd.f32 0.0, %v5205
        %v5207 = vpop.f32.mrf.mxu0
        %5208 = vdwg.mxu0
        %v5209 = vadd.f32 %v5091, %v5191
        %v5210 = vadd.f32 %v5092, %v5196
        %v5211 = vadd.f32 %v5093, %v5201
        %v5212 = vadd.f32 %v5094, %v5206
        %s5213 = scalar_lea.vmem [#allocation7], 224
        %v5214 = vld [vmem:[%s5213] sm:$0xff]
        %v5215 = vld [vmem:[%s5213 + $0x8] sm:$0xff]
        %v5216 = vld [vmem:[%s5213 + $0x10] sm:$0xff]
        %v5217 = vld [vmem:[%s5213 + $0x18] sm:$0xff]
        %5218 = vrot.lane.b32.xlu0 %v4297, 124
        %v5219 = vpop.permute.xlu0 %5218
        %5220 = vrot.lane.b32.xlu0 %v4299, 124
        %v5221 = vpop.permute.xlu0 %5220
        %5222 = vrot.lane.b32.xlu0 %v4301, 124
        %v5223 = vpop.permute.xlu0 %5222
        %5224 = vrot.lane.b32.xlu0 %v4303, 124
        %v5225 = vpop.permute.xlu0 %5224
        %v5231 = vsel %vm2980, %v5214, 0
        %v5234 = vsel %vm2980, %v5215, 0
        %v5237 = vsel %vm2980, %v5216, 0
        %v5240 = vsel %vm2980, %v5217, 0
        %5242 = vmatprep.subr.mxu0 0.0
        %5243 = vmatpush1.msra.mxu0 0.0
        %5244 = vmatprep.subr.mxu0 0.0
        %5245 = vmatpush1.msra.mxu0 0.0
        %5246 = vmatprep.subr.mxu0 0.0
        %5247 = vmatpush1.msra.mxu0 0.0
        %5248 = vmatprep.subr.mxu0 0.0
        %5249 = vmatpush1.msra.mxu0 0.0
        %5250 = vmatprep.subr.mxu0 0.0
        %5251 = vmatpush1.msra.mxu0 0.0
        %5252 = vmatprep.subr.mxu0 0.0
        %5253 = vmatpush1.msra.mxu0 0.0
        %5254 = vmatprep.subr.mxu0 0.0
        %5255 = vmatpush1.msra.mxu0 0.0
        %5256 = vmatprep.subr.mxu0 0.0
        %5257 = vmatpush1.msra.mxu0 0.0
        %5258 = vmatprep.subr.mxu0 0.0
        %5259 = vmatpush1.msra.mxu0 0.0
        %5260 = vmatprep.subr.mxu0 0.0
        %5261 = vmatpush1.msra.mxu0 0.0
        %5262 = vmatprep.subr.mxu0 0.0
        %5263 = vmatpush1.msra.mxu0 0.0
        %5264 = vmatprep.subr.mxu0 0.0
        %5265 = vmatpush1.msra.mxu0 0.0
        %5266 = vmatprep.subr.mxu0 0.0
        %5267 = vmatpush1.msra.mxu0 %v5225
        %5268 = vmatprep.subr.mxu0 0.0
        %5269 = vmatpush1.msra.mxu0 %v5223
        %5270 = vmatprep.subr.mxu0 0.0
        %5271 = vmatpush1.msra.mxu0 %v5221
        %5272 = vmatprep.subr.mxu0 0.0
        %5273 = vmatpush1.msra.mxu0 %v5219
        %5274 = vmatprep.subr.mxu0 0.0
        %5275 = vmatpush2.msra.mxu0 0.0
        %5276 = vmatprep.subr.mxu0 0.0
        %5277 = vmatpush2.msra.mxu0 0.0
        %5278 = vmatprep.subr.mxu0 0.0
        %5279 = vmatpush2.msra.mxu0 0.0
        %5280 = vmatprep.subr.mxu0 0.0
        %5281 = vmatpush2.msra.mxu0 0.0
        %5282 = vmatprep.subr.mxu0 0.0
        %5283 = vmatpush2.msra.mxu0 0.0
        %5284 = vmatprep.subr.mxu0 0.0
        %5285 = vmatpush2.msra.mxu0 0.0
        %5286 = vmatprep.subr.mxu0 0.0
        %5287 = vmatpush2.msra.mxu0 0.0
        %5288 = vmatprep.subr.mxu0 0.0
        %5289 = vmatpush2.msra.mxu0 0.0
        %5290 = vmatprep.subr.mxu0 0.0
        %5291 = vmatpush2.msra.mxu0 0.0
        %5292 = vmatprep.subr.mxu0 0.0
        %5293 = vmatpush2.msra.mxu0 0.0
        %5294 = vmatprep.subr.mxu0 0.0
        %5295 = vmatpush2.msra.mxu0 0.0
        %5296 = vmatprep.subr.mxu0 0.0
        %5297 = vmatpush2.msra.mxu0 0.0
        %5298 = vmatprep.subr.mxu0 0.0
        %5299 = vmatpush2.msra.mxu0 0.0
        %5300 = vmatprep.subr.mxu0 0.0
        %5301 = vmatpush2.msra.mxu0 0.0
        %5302 = vmatprep.subr.mxu0 0.0
        %5303 = vmatpush2.msra.mxu0 0.0
        %5304 = vmatprep.subr.mxu0 0.0
        %5305 = vmatpush2.msra.mxu0 0.0
        %5306 = vmatprep.mubr.f32.mxu0 0.0
        %5307 = vmatmul.mubr.f32.gmra.mxu0 %v5231
        %v5308 = vpop.f32.mrf.mxu0
        %v5309 = vadd.f32 0.0, %v5308
        %v5310 = vpop.f32.mrf.mxu0
        %5311 = vmatprep.mubr.f32.mxu0 0.0
        %5312 = vmatmul.mubr.f32.gmra.mxu0 %v5234
        %v5313 = vpop.f32.mrf.mxu0
        %v5314 = vadd.f32 0.0, %v5313
        %v5315 = vpop.f32.mrf.mxu0
        %5316 = vmatprep.mubr.f32.mxu0 0.0
        %5317 = vmatmul.mubr.f32.gmra.mxu0 %v5237
        %v5318 = vpop.f32.mrf.mxu0
        %v5319 = vadd.f32 0.0, %v5318
        %v5320 = vpop.f32.mrf.mxu0
        %5321 = vmatprep.mubr.f32.mxu0 0.0
        %5322 = vmatmul.mubr.f32.gmra.mxu0 %v5240
        %v5323 = vpop.f32.mrf.mxu0
        %v5324 = vadd.f32 0.0, %v5323
        %v5325 = vpop.f32.mrf.mxu0
        %5326 = vdwg.mxu0
        %v5327 = vadd.f32 %v5209, %v5309
        %v5328 = vadd.f32 %v5210, %v5314
        %v5329 = vadd.f32 %v5211, %v5319
        %v5330 = vadd.f32 %v5212, %v5324
        %s5331 = scalar_lea.vmem [#allocation7], 256
        %v5332 = vld [vmem:[%s5331] sm:$0xff]
        %v5333 = vld [vmem:[%s5331 + $0x8] sm:$0xff]
        %v5334 = vld [vmem:[%s5331 + $0x10] sm:$0xff]
        %v5335 = vld [vmem:[%s5331 + $0x18] sm:$0xff]
        %5336 = vrot.lane.b32.xlu0 %v4327, 123
        %v5337 = vpop.permute.xlu0 %5336
        %5338 = vrot.lane.b32.xlu0 %v4329, 123
        %v5339 = vpop.permute.xlu0 %5338
        %5340 = vrot.lane.b32.xlu0 %v4331, 123
        %v5341 = vpop.permute.xlu0 %5340
        %5342 = vrot.lane.b32.xlu0 %v4333, 123
        %v5343 = vpop.permute.xlu0 %5342
        %v5349 = vsel %vm2980, %v5332, 0
        %v5352 = vsel %vm2980, %v5333, 0
        %v5355 = vsel %vm2980, %v5334, 0
        %v5358 = vsel %vm2980, %v5335, 0
        %5360 = vmatprep.subr.mxu0 0.0
        %5361 = vmatpush1.msra.mxu0 0.0
        %5362 = vmatprep.subr.mxu0 0.0
        %5363 = vmatpush1.msra.mxu0 0.0
        %5364 = vmatprep.subr.mxu0 0.0
        %5365 = vmatpush1.msra.mxu0 0.0
        %5366 = vmatprep.subr.mxu0 0.0
        %5367 = vmatpush1.msra.mxu0 0.0
        %5368 = vmatprep.subr.mxu0 0.0
        %5369 = vmatpush1.msra.mxu0 0.0
        %5370 = vmatprep.subr.mxu0 0.0
        %5371 = vmatpush1.msra.mxu0 0.0
        %5372 = vmatprep.subr.mxu0 0.0
        %5373 = vmatpush1.msra.mxu0 0.0
        %5374 = vmatprep.subr.mxu0 0.0
        %5375 = vmatpush1.msra.mxu0 0.0
        %5376 = vmatprep.subr.mxu0 0.0
        %5377 = vmatpush1.msra.mxu0 0.0
        %5378 = vmatprep.subr.mxu0 0.0
        %5379 = vmatpush1.msra.mxu0 0.0
        %5380 = vmatprep.subr.mxu0 0.0
        %5381 = vmatpush1.msra.mxu0 0.0
        %5382 = vmatprep.subr.mxu0 0.0
        %5383 = vmatpush1.msra.mxu0 0.0
        %5384 = vmatprep.subr.mxu0 0.0
        %5385 = vmatpush1.msra.mxu0 %v5343
        %5386 = vmatprep.subr.mxu0 0.0
        %5387 = vmatpush1.msra.mxu0 %v5341
        %5388 = vmatprep.subr.mxu0 0.0
        %5389 = vmatpush1.msra.mxu0 %v5339
        %5390 = vmatprep.subr.mxu0 0.0
        %5391 = vmatpush1.msra.mxu0 %v5337
        %5392 = vmatprep.subr.mxu0 0.0
        %5393 = vmatpush2.msra.mxu0 0.0
        %5394 = vmatprep.subr.mxu0 0.0
        %5395 = vmatpush2.msra.mxu0 0.0
        %5396 = vmatprep.subr.mxu0 0.0
        %5397 = vmatpush2.msra.mxu0 0.0
        %5398 = vmatprep.subr.mxu0 0.0
        %5399 = vmatpush2.msra.mxu0 0.0
        %5400 = vmatprep.subr.mxu0 0.0
        %5401 = vmatpush2.msra.mxu0 0.0
        %5402 = vmatprep.subr.mxu0 0.0
        %5403 = vmatpush2.msra.mxu0 0.0
        %5404 = vmatprep.subr.mxu0 0.0
        %5405 = vmatpush2.msra.mxu0 0.0
        %5406 = vmatprep.subr.mxu0 0.0
        %5407 = vmatpush2.msra.mxu0 0.0
        %5408 = vmatprep.subr.mxu0 0.0
        %5409 = vmatpush2.msra.mxu0 0.0
        %5410 = vmatprep.subr.mxu0 0.0
        %5411 = vmatpush2.msra.mxu0 0.0
        %5412 = vmatprep.subr.mxu0 0.0
        %5413 = vmatpush2.msra.mxu0 0.0
        %5414 = vmatprep.subr.mxu0 0.0
        %5415 = vmatpush2.msra.mxu0 0.0
        %5416 = vmatprep.subr.mxu0 0.0
        %5417 = vmatpush2.msra.mxu0 0.0
        %5418 = vmatprep.subr.mxu0 0.0
        %5419 = vmatpush2.msra.mxu0 0.0
        %5420 = vmatprep.subr.mxu0 0.0
        %5421 = vmatpush2.msra.mxu0 0.0
        %5422 = vmatprep.subr.mxu0 0.0
        %5423 = vmatpush2.msra.mxu0 0.0
        %5424 = vmatprep.mubr.f32.mxu0 0.0
        %5425 = vmatmul.mubr.f32.gmra.mxu0 %v5349
        %v5426 = vpop.f32.mrf.mxu0
        %v5427 = vadd.f32 0.0, %v5426
        %v5428 = vpop.f32.mrf.mxu0
        %5429 = vmatprep.mubr.f32.mxu0 0.0
        %5430 = vmatmul.mubr.f32.gmra.mxu0 %v5352
        %v5431 = vpop.f32.mrf.mxu0
        %v5432 = vadd.f32 0.0, %v5431
        %v5433 = vpop.f32.mrf.mxu0
        %5434 = vmatprep.mubr.f32.mxu0 0.0
        %5435 = vmatmul.mubr.f32.gmra.mxu0 %v5355
        %v5436 = vpop.f32.mrf.mxu0
        %v5437 = vadd.f32 0.0, %v5436
        %v5438 = vpop.f32.mrf.mxu0
        %5439 = vmatprep.mubr.f32.mxu0 0.0
        %5440 = vmatmul.mubr.f32.gmra.mxu0 %v5358
        %v5441 = vpop.f32.mrf.mxu0
        %v5442 = vadd.f32 0.0, %v5441
        %v5443 = vpop.f32.mrf.mxu0
        %5444 = vdwg.mxu0
        %v5445 = vadd.f32 %v5327, %v5427
        %v5446 = vadd.f32 %v5328, %v5432
        %v5447 = vadd.f32 %v5329, %v5437
        %v5448 = vadd.f32 %v5330, %v5442
        %v5449 = vld [vmem:[%s8] sm:$0xff]
        %v5450 = vld [vmem:[%s8 + $0x8] sm:$0xff]
        %v5451 = vld [vmem:[%s8 + $0x10] sm:$0xff]
        %v5452 = vld [vmem:[%s8 + $0x18] sm:$0xff]
        %5454 = vset.pattern.permute.xlu0 0
        %5455 = vperm.xlu0 %5454, %v5449
        %v5456 = vpop.permute.xlu0 %5455
        %5459 = vset.pattern.permute.xlu0 0
        %5460 = vperm.xlu0 %5459, %v5450
        %v5461 = vpop.permute.xlu0 %5460
        %5464 = vset.pattern.permute.xlu0 0
        %5465 = vperm.xlu0 %5464, %v5451
        %v5466 = vpop.permute.xlu0 %5465
        %5469 = vset.pattern.permute.xlu0 0
        %5470 = vperm.xlu0 %5469, %v5452
        %v5471 = vpop.permute.xlu0 %5470
        %v5473 = vmul.f32 %v5445, %v5456
        %v5474 = vmul.f32 %v5446, %v5461
        %v5475 = vmul.f32 %v5447, %v5466
        %v5476 = vmul.f32 %v5448, %v5471
        %v5477 = vld [vmem:[%s9] sm:$0xff]
        %v5478 = vld [vmem:[%s9 + $0x8] sm:$0xff]
        %v5479 = vld [vmem:[%s9 + $0x10] sm:$0xff]
        %v5480 = vld [vmem:[%s9 + $0x18] sm:$0xff]
        %5482 = vset.pattern.permute.xlu0 0
        %5483 = vperm.xlu0 %5482, %v5477
        %v5484 = vpop.permute.xlu0 %5483
        %5487 = vset.pattern.permute.xlu0 0
        %5488 = vperm.xlu0 %5487, %v5478
        %v5489 = vpop.permute.xlu0 %5488
        %5492 = vset.pattern.permute.xlu0 0
        %5493 = vperm.xlu0 %5492, %v5479
        %v5494 = vpop.permute.xlu0 %5493
        %5497 = vset.pattern.permute.xlu0 0
        %5498 = vperm.xlu0 %5497, %v5480
        %v5499 = vpop.permute.xlu0 %5498
        %v5501 = vadd.f32 %v5473, %v5484
        %v5502 = vadd.f32 %v5474, %v5489
        %v5503 = vadd.f32 %v5475, %v5494
        %v5504 = vadd.f32 %v5476, %v5499
        %v5505 = vmax.f32 %v5501, 0.0
        %v5506 = vmax.f32 %v5502, 0.0
        %v5507 = vmax.f32 %v5503, 0.0
        %v5508 = vmax.f32 %v5504, 0.0
        %v5509 = vld [vmem:[%s10] sm:$0xff]
        %v5510 = vld [vmem:[%s10 + $0x8] sm:$0xff]
        %v5511 = vld [vmem:[%s10 + $0x10] sm:$0xff]
        %v5512 = vld [vmem:[%s10 + $0x18] sm:$0xff]
        %v5514 = vsel %vm2980, %v5505, 0
        %v5517 = vsel %vm2980, %v5506, 0
        %v5520 = vsel %vm2980, %v5507, 0
        %v5523 = vsel %vm2980, %v5508, 0
        %5525 = vmatprep.subr.mxu0 0.0
        %5526 = vmatpush1.msra.mxu0 0.0
        %5527 = vmatprep.subr.mxu0 0.0
        %5528 = vmatpush1.msra.mxu0 0.0
        %5529 = vmatprep.subr.mxu0 0.0
        %5530 = vmatpush1.msra.mxu0 0.0
        %5531 = vmatprep.subr.mxu0 0.0
        %5532 = vmatpush1.msra.mxu0 0.0
        %5533 = vmatprep.subr.mxu0 0.0
        %5534 = vmatpush1.msra.mxu0 0.0
        %5535 = vmatprep.subr.mxu0 0.0
        %5536 = vmatpush1.msra.mxu0 0.0
        %5537 = vmatprep.subr.mxu0 0.0
        %5538 = vmatpush1.msra.mxu0 0.0
        %5539 = vmatprep.subr.mxu0 0.0
        %5540 = vmatpush1.msra.mxu0 0.0
        %5541 = vmatprep.subr.mxu0 0.0
        %5542 = vmatpush1.msra.mxu0 0.0
        %5543 = vmatprep.subr.mxu0 0.0
        %5544 = vmatpush1.msra.mxu0 0.0
        %5545 = vmatprep.subr.mxu0 0.0
        %5546 = vmatpush1.msra.mxu0 0.0
        %5547 = vmatprep.subr.mxu0 0.0
        %5548 = vmatpush1.msra.mxu0 0.0
        %5549 = vmatprep.subr.mxu0 0.0
        %5550 = vmatpush1.msra.mxu0 %v5512
        %5551 = vmatprep.subr.mxu0 0.0
        %5552 = vmatpush1.msra.mxu0 %v5511
        %5553 = vmatprep.subr.mxu0 0.0
        %5554 = vmatpush1.msra.mxu0 %v5510
        %5555 = vmatprep.subr.mxu0 0.0
        %5556 = vmatpush1.msra.mxu0 %v5509
        %5557 = vmatprep.subr.mxu0 0.0
        %5558 = vmatpush2.msra.mxu0 0.0
        %5559 = vmatprep.subr.mxu0 0.0
        %5560 = vmatpush2.msra.mxu0 0.0
        %5561 = vmatprep.subr.mxu0 0.0
        %5562 = vmatpush2.msra.mxu0 0.0
        %5563 = vmatprep.subr.mxu0 0.0
        %5564 = vmatpush2.msra.mxu0 0.0
        %5565 = vmatprep.subr.mxu0 0.0
        %5566 = vmatpush2.msra.mxu0 0.0
        %5567 = vmatprep.subr.mxu0 0.0
        %5568 = vmatpush2.msra.mxu0 0.0
        %5569 = vmatprep.subr.mxu0 0.0
        %5570 = vmatpush2.msra.mxu0 0.0
        %5571 = vmatprep.subr.mxu0 0.0
        %5572 = vmatpush2.msra.mxu0 0.0
        %5573 = vmatprep.subr.mxu0 0.0
        %5574 = vmatpush2.msra.mxu0 0.0
        %5575 = vmatprep.subr.mxu0 0.0
        %5576 = vmatpush2.msra.mxu0 0.0
        %5577 = vmatprep.subr.mxu0 0.0
        %5578 = vmatpush2.msra.mxu0 0.0
        %5579 = vmatprep.subr.mxu0 0.0
        %5580 = vmatpush2.msra.mxu0 0.0
        %5581 = vmatprep.subr.mxu0 0.0
        %5582 = vmatpush2.msra.mxu0 0.0
        %5583 = vmatprep.subr.mxu0 0.0
        %5584 = vmatpush2.msra.mxu0 0.0
        %5585 = vmatprep.subr.mxu0 0.0
        %5586 = vmatpush2.msra.mxu0 0.0
        %5587 = vmatprep.subr.mxu0 0.0
        %5588 = vmatpush2.msra.mxu0 0.0
        %5589 = vmatprep.mubr.f32.mxu0 0.0
        %5590 = vmatmul.mubr.f32.gmra.mxu0 %v5514
        %v5591 = vpop.f32.mrf.mxu0
        %v5592 = vadd.f32 0.0, %v5591
        %v5593 = vpop.f32.mrf.mxu0
        %5594 = vmatprep.mubr.f32.mxu0 0.0
        %5595 = vmatmul.mubr.f32.gmra.mxu0 %v5517
        %v5596 = vpop.f32.mrf.mxu0
        %v5597 = vadd.f32 0.0, %v5596
        %v5598 = vpop.f32.mrf.mxu0
        %5599 = vmatprep.mubr.f32.mxu0 0.0
        %5600 = vmatmul.mubr.f32.gmra.mxu0 %v5520
        %v5601 = vpop.f32.mrf.mxu0
        %v5602 = vadd.f32 0.0, %v5601
        %v5603 = vpop.f32.mrf.mxu0
        %5604 = vmatprep.mubr.f32.mxu0 0.0
        %5605 = vmatmul.mubr.f32.gmra.mxu0 %v5523
        %v5606 = vpop.f32.mrf.mxu0
        %v5607 = vadd.f32 0.0, %v5606
        %v5608 = vpop.f32.mrf.mxu0
        %5609 = vdwg.mxu0
        %vm5610 = vcmask 64512
        %5611 = vst.msk [vmem:[%s433] sm:$0xff] %vm5610, %v5592
        %5612 = vst.msk [vmem:[%s433 + $0x8] sm:$0xff] %vm5610, %v5597
        %5613 = vst.msk [vmem:[%s433 + $0x10] sm:$0xff] %vm5610, %v5602
        %5614 = vst.msk [vmem:[%s433 + $0x18] sm:$0xff] %vm5610, %v5607
        %p5615 = scmp.lt.s32.totalorder %s26, 1
        %s5616 = scalar_select %p5615, %s26, 1
        %s5617 = smul.addr %s5616, 4
        %s5618 = smul.addr %s5617, 8
        %s5619 = scalar_lea.vmem %s11, %s5618
        // Predicated region
        $region77: #{tpu_custom_call.1} parent=63 // pred_check
          %p5620 = pneg %p280
        $region78: #{tpu_custom_call.1} parent=63 // pred_check_branch
          %5622 = sbr.rel (%p5620) target = $region80
        $region79: #{tpu_custom_call.1} parent=63 // pred_region
          _
        $region80: #{tpu_custom_call.1} parent=63 // pred_fallthru
          _
      $region64: #{tpu_custom_call.1} parent=5 // pred_fallthru
        _
      %p5623 = scmp.le.s32.totalorder 2, %s21
      // Predicated region
      $region81: #{tpu_custom_call.1} parent=5 // pred_check
        %p5624 = pneg %p5623
      $region82: #{tpu_custom_call.1} parent=5 // pred_check_branch
        %5626 = sbr.rel (%p5624) target = $region84
      $region83: #{tpu_custom_call.1} parent=5 // pred_region
        %s5627 = ssub.s32 %s21, 2
        // Predicated region
        $region85: #{tpu_custom_call.1} parent=83 // pred_check
          %p5628 = pneg %p286
        $region86: #{tpu_custom_call.1} parent=83 // pred_check_branch
          %5630 = sbr.rel (%p5628) target = $region88
        $region87: #{tpu_custom_call.1} parent=83 // pred_region
          %p5631 = scmp.lt.s32.totalorder %s27, 1
          %s5632 = scalar_select %p5631, %s27, 1
          %s5633 = smul.addr %s5632, 4
          %s5634 = smul.addr %s5633, 8
          %s5635 = scalar_lea.vmem %s11, %s5634
        $region88: #{tpu_custom_call.1} parent=83 // pred_fallthru
          _
      $region84: #{tpu_custom_call.1} parent=5 // pred_fallthru
        _
    $region6: #{tpu_custom_call.1} parent=1 // loop_footer
      %s25 = sadd.s32 1, %s21
    $region7: #{tpu_custom_call.1} parent=1 // loop_footer_branch
      %20 = sbr.rel target = $region3
    $region8: #{tpu_custom_call.1} parent=1 // loop_exit
      _
    %5636 = vsyncpa [#allocation4], 1
    %s5637 = scalar_lea.sflag [#allocation4], 1
    %5638 = vsyncpa %s5637, 1
    %5639 = vsyncpa [#allocation6], 1

</llo_original>
